<compile_context>
chip_gen: v7x
topology: tpu7x:2x2x1
jax: 0.10.0
libtpu: 0.0.40
codegen_flags: <defaults>
</compile_context>

<pallas_src>
import numpy as np

import jax
import jax.numpy as jnp
from jax import lax
from jax.experimental import pallas as pl
from jax.experimental.pallas import tpu as pltpu

DATA_SIZE_X = 16                 # small DataSizeX for the example run
PATHLINE_STEP = 1024             # fixed by the module
BN_EPS = 1e-5
IMG_FLAT = DATA_SIZE_X * DATA_SIZE_X
TOTAL_IN = IMG_FLAT + PATHLINE_STEP
OUT_PAD = 128                    # lane-dense padding of the 1-wide output layer


# ----------------------------------------------------------------------------
# Fully fused Pallas kernel: the whole network as a bf16 matmul chain in VMEM.
# ----------------------------------------------------------------------------
def _vortexviz_kernel(
    data_ref,
    wc1_ref, bc1_ref, wc2_ref, bc2_ref, wc3_ref, bc3_ref,
    wf1_ref, bf1_ref, wf2_ref, bf2_ref,
    wfc1_img_ref, wfc1_info_ref, bfc1_ref,
    wout_ref, bout_ref,
    out_ref,
):
    img = data_ref[:, 0:IMG_FLAT]              # (TB, 256)  NCHW-flat binary image
    info = data_ref[:, IMG_FLAT:TOTAL_IN]      # (TB, 1024) information vector

    def dense_relu(x, w_ref, b_ref):
        # bf16 operands -> native MXU path; f32 accumulation; f32 epilogue.
        acc = jnp.dot(x.astype(jnp.bfloat16), w_ref[...],
                      preferred_element_type=jnp.float32)
        return jnp.maximum(acc + b_ref[...], 0.0)

    # conv1/conv2/conv3 (+ folded eval-BN + ReLU) as dense NCHW-flat matmuls.
    h = dense_relu(img, wc1_ref, bc1_ref)      # (TB, 16*8*8 = 1024)
    h = dense_relu(h, wc2_ref, bc2_ref)        # (TB, 32*4*4 =  512)
    h = dense_relu(h, wc3_ref, bc3_ref)        # (TB, 64*2*2 =  256) == .view order

    # FCN branch (Linear + folded BN1d + ReLU) x2.
    g = dense_relu(info, wf1_ref, bf1_ref)     # (TB, 128)
    g = dense_relu(g, wf2_ref, bf2_ref)        # (TB, 256)

    # fc1 over concat([h, g]) expressed as a split matmul (no in-kernel concat).
    y = jnp.dot(h.astype(jnp.bfloat16), wfc1_img_ref[...],
                preferred_element_type=jnp.float32)
    y = y + jnp.dot(g.astype(jnp.bfloat16), wfc1_info_ref[...],
                    preferred_element_type=jnp.float32)
    y = jnp.maximum(y + bfc1_ref[...], 0.0)    # (TB, 256)

    # Output layer (N=1 lane-padded to 128 for an unmasked store) + sigmoid.
    o = jnp.dot(y.astype(jnp.bfloat16), wout_ref[...],
                preferred_element_type=jnp.float32) + bout_ref[...]
    # sigmoid = 1 / (1 + exp(-o)); exp and approx reciprocal both run on the EUP.
    out_ref[...] = pl.reciprocal(1.0 + jnp.exp(-o), approx=True)


def _round_up(x, m):
    return (x + m - 1) // m * m


def _choose_batch_tiling(batch):
    """Return (padded_batch, batch_tile).

    Tiles are multiples of 8 sublanes and capped at 256 rows (fills the
    256-wide MXU on v6e/v7x, keeps VMEM bounded); the grid gets >= 2 steps
    whenever the batch is large enough so both v7x TensorCores receive work.
    """
    if batch <= 8:
        return 8, 8                              # one tiny tile
    if batch <= 512:
        b_pad = _round_up(batch, 16)
        return b_pad, b_pad // 2                 # two equal tiles (<= 256 rows)
    b_pad = _round_up(batch, 256)
    return b_pad, 256                            # many 256-row tiles


def vortexviz_forward(data, weights):
    """One fused pallas_call. `weights` is the tuple from prepare_weights()."""
    B, D = data.shape
    assert D == TOTAL_IN, (D, TOTAL_IN)
    B_pad, TB = _choose_batch_tiling(B)
    if B_pad != B:
        data = jnp.pad(data, ((0, B_pad - B), (0, 0)))
    grid = (B_pad // TB,)

    const2d = lambda i: (0, 0)
    in_specs = [pl.BlockSpec((TB, TOTAL_IN), lambda i: (i, 0))]
    in_specs += [pl.BlockSpec(w.shape, const2d) for w in weights]

    out_pad = pl.pallas_call(
        _vortexviz_kernel,
        out_shape=jax.ShapeDtypeStruct((B_pad, OUT_PAD), jnp.float32),
        grid=grid,
        in_specs=in_specs,
        out_specs=pl.BlockSpec((TB, OUT_PAD), lambda i: (i, 0)),
        compiler_params=pltpu.CompilerParams(
            dimension_semantics=("parallel",),
            vmem_limit_bytes=32 * 1024 * 1024,
        ),
    )(data, *weights)
    # Column 0 is the real logit; mirror PyTorch's .squeeze() on (B, 1).
    return jnp.squeeze(out_pad[:B, 0:1])


# ----------------------------------------------------------------------------
# One-time host-side weight preparation (outside the per-call graph).
# ----------------------------------------------------------------------------
def prepare_weights(params):
    p64 = lambda a: np.asarray(jax.device_get(a), np.float64)

    def fold_conv(cp, bp):
        scale = p64(bp["gamma"]) / np.sqrt(p64(bp["var"]) + BN_EPS)
        wf = p64(cp["w"]) * scale[:, None, None, None]          # (Cout,Cin,3,3)
        bf = (p64(cp["b"]) - p64(bp["mean"])) * scale + p64(bp["beta"])
        return wf, bf

    def fold_linear(lp, bp):
        scale = p64(bp["gamma"]) / np.sqrt(p64(bp["var"]) + BN_EPS)
        wf = (p64(lp["w"]) * scale[:, None]).T                  # (n_in, n_out)
        bf = (p64(lp["b"]) - p64(bp["mean"])) * scale + p64(bp["beta"])
        return wf.astype(np.float32), bf.astype(np.float32)

    def conv_to_dense(wf, bf, cin, hin, win):
        """3x3/stride2/pad1 conv (BN-folded) as a dense NCHW-flat matrix."""
        cout = wf.shape[0]
        oh = (hin - 3 + 2) // 2 + 1
        ow = (win - 3 + 2) // 2 + 1
        W = np.zeros((cin * hin * win, cout * oh * ow), np.float32)
        ohi, owi = np.arange(oh), np.arange(ow)
        ci, co = np.arange(cin), np.arange(cout)
        for kh in range(3):
            ih = 2 * ohi + kh - 1
            vh = (ih >= 0) & (ih < hin)
            for kw in range(3):
                iw = 2 * owi + kw - 1
                vw = (iw >= 0) & (iw < win)
                rows = (ci[:, None, None] * (hin * win)
                        + ih[vh][None, :, None] * win
                        + iw[vw][None, None, :])                # (cin, nh, nw)
                cols = (co[:, None, None] * (oh * ow)
                        + ohi[vh][None, :, None] * ow
                        + owi[vw][None, None, :])               # (cout, nh, nw)
                vals = wf[:, :, kh, kw].astype(np.float32)      # (cout, cin)
                W[rows[None], cols[:, None]] = vals[:, :, None, None]
        b = np.repeat(bf.astype(np.float32), oh * ow)           # NCHW-flat bias
        return W, b, oh

    # Conv stack (BN folded, dense matrices over NCHW-flat activations).
    wc1f, bc1f = fold_conv(params["conv1"], params["bn1"])
    Wc1, bc1, dx1 = conv_to_dense(wc1f, bc1f, 1, DATA_SIZE_X, DATA_SIZE_X)
    wc2f, bc2f = fold_conv(params["conv2"], params["bn2"])
    Wc2, bc2, dx2 = conv_to_dense(wc2f, bc2f, 16, dx1, dx1)
    wc3f, bc3f = fold_conv(params["conv3"], params["bn3"])
    Wc3, bc3, dx3 = conv_to_dense(wc3f, bc3f, 32, dx2, dx2)
    flatten_size = 64 * dx3 * dx3

    # FCN branch (Linear + BN1d folded).
    Wf1, bf1 = fold_linear(params["fcn1"], params["fcn_bn1"])
    Wf2, bf2 = fold_linear(params["fcn2"], params["fcn_bn2"])

    # fc1, split into [image-feature | info-feature] blocks (no runtime concat).
    Wfc1 = np.asarray(jax.device_get(params["fc1"]["w"]), np.float32).T
    bfc1 = np.asarray(jax.device_get(params["fc1"]["b"]), np.float32)
    Wfc1_img, Wfc1_info = Wfc1[:flatten_size], Wfc1[flatten_size:]

    # Output layer, zero-padded from N=1 to N=OUT_PAD for lane-dense stores.
    Wout = np.asarray(jax.device_get(params["out"]["w"]), np.float32).T     # (256,1)
    bout = np.asarray(jax.device_get(params["out"]["b"]), np.float32)       # (1,)
    Wout_pad = np.zeros((Wout.shape[0], OUT_PAD), np.float32)
    Wout_pad[:, :1] = Wout
    bout_pad = np.zeros((OUT_PAD,), np.float32)
    bout_pad[0] = bout[0]

    # Matmul operands go to bf16 (native MXU dtype); biases stay f32 for the
    # f32 epilogue (bias add / ReLU / sigmoid).
    wmat = lambda a: jnp.asarray(a, jnp.bfloat16)
    brow = lambda b: jnp.asarray(b.reshape(1, -1), jnp.float32)
    return (wmat(Wc1), brow(bc1), wmat(Wc2), brow(bc2), wmat(Wc3), brow(bc3),
            wmat(Wf1), brow(bf1), wmat(Wf2), brow(bf2),
            wmat(Wfc1_img), wmat(Wfc1_info), brow(bfc1),
            wmat(Wout_pad), brow(bout_pad))


# ----------------------------------------------------------------------------
# Pure-JAX reference (lax.conv, unfolded BN, f32) for the correctness check.
# ----------------------------------------------------------------------------
def ref_forward(params, data):
    B = data.shape[0]
    img = data[:, :IMG_FLAT].reshape(B, 1, DATA_SIZE_X, DATA_SIZE_X)
    info = data[:, IMG_FLAT:]

    def cbr(x, cp, bp):
        y = lax.conv_general_dilated(
            x, cp["w"], window_strides=(2, 2), padding=((1, 1), (1, 1)),
            dimension_numbers=("NCHW", "OIHW", "NCHW"))
        y = y + cp["b"][None, :, None, None]
        scale = bp["gamma"] / jnp.sqrt(bp["var"] + BN_EPS)
        y = (y - bp["mean"][None, :, None, None]) * scale[None, :, None, None] \
            + bp["beta"][None, :, None, None]
        return jnp.maximum(y, 0.0)

    x = cbr(img, params["conv1"], params["bn1"])
    x = cbr(x, params["conv2"], params["bn2"])
    x = cbr(x, params["conv3"], params["bn3"])
    img_feat = x.reshape(B, -1)

    def lbr(h, lp, bp):
        h = h @ lp["w"].T + lp["b"]
        scale = bp["gamma"] / jnp.sqrt(bp["var"] + BN_EPS)
        h = (h - bp["mean"]) * scale + bp["beta"]
        return jnp.maximum(h, 0.0)

    h = lbr(info, params["fcn1"], params["fcn_bn1"])
    h = lbr(h, params["fcn2"], params["fcn_bn2"])
    concat = jnp.concatenate([img_feat, h], axis=-1)
    y = jnp.maximum(concat @ params["fc1"]["w"].T + params["fc1"]["b"], 0.0)
    out = 1.0 / (1.0 + jnp.exp(-(y @ params["out"]["w"].T + params["out"]["b"])))
    return jnp.squeeze(out)


# ----------------------------------------------------------------------------
# Deterministic parameter init (synthetic; matches __init__ shapes).
# ----------------------------------------------------------------------------
def init_params(key):
    dx1 = (DATA_SIZE_X - 3 + 2) // 2 + 1
    dx2 = (dx1 - 3 + 2) // 2 + 1
    dx3 = (dx2 - 3 + 2) // 2 + 1
    flatten_size = 64 * dx3 * dx3

    keys = iter(jax.random.split(key, 64))

    def lin(n_out, n_in):
        s = 1.0 / jnp.sqrt(n_in)
        return dict(w=s * jax.random.normal(next(keys), (n_out, n_in), jnp.float32),
                    b=s * jax.random.normal(next(keys), (n_out,), jnp.float32))

    def conv(c_out, c_in):
        s = 1.0 / jnp.sqrt(c_in * 9)
        return dict(w=s * jax.random.normal(next(keys), (c_out, c_in, 3, 3), jnp.float32),
                    b=s * jax.random.normal(next(keys), (c_out,), jnp.float32))

    def bn(n):
        return dict(gamma=1.0 + 0.1 * jax.random.normal(next(keys), (n,), jnp.float32),
                    beta=0.1 * jax.random.normal(next(keys), (n,), jnp.float32),
                    mean=0.1 * jax.random.normal(next(keys), (n,), jnp.float32),
                    var=0.5 + jax.random.uniform(next(keys), (n,), jnp.float32))

    return dict(
        conv1=conv(16, 1), bn1=bn(16),
        conv2=conv(32, 16), bn2=bn(32),
        conv3=conv(64, 32), bn3=bn(64),
        fcn1=lin(128, PATHLINE_STEP), fcn_bn1=bn(128),
        fcn2=lin(256, 128), fcn_bn2=bn(256),
        fc1=lin(256, flatten_size + 256),
        out=lin(1, 256),
    )


if __name__ == "__main__":
    key = jax.random.PRNGKey(0)
    k_param, k_data = jax.random.split(key)
    params = init_params(k_param)

    # One-time weight prep: BN folding, dense conv matrices, fc1 split,
    # lane-padded output layer, bf16 cast.  NOT part of the per-call graph.
    weights = prepare_weights(params)

    B = 2
    data = jax.random.normal(k_data, (B, TOTAL_IN), jnp.float32)

    fwd = jax.jit(vortexviz_forward)
    out = jax.block_until_ready(fwd(data, weights))

    ref = ref_forward(params, data)
    assert out.shape == (B,), out.shape
    # bf16 matmuls + approx-reciprocal sigmoid -> relaxed tolerance vs f32 ref.
    err = float(jnp.max(jnp.abs(out - ref)))
    assert err < 2e-2, (err, out, ref)

    print("KERNEL_OK")
</pallas_src>

<mosaic_0001>
module attributes {stable_mosaic.version = 11 : i64} {
  func.func @_vortexviz_kernel(%arg0: i32, %arg1: memref<8x1280xf32, #tpu.memory_space<vmem>>, %arg2: memref<256x1024xbf16, #tpu.memory_space<vmem>>, %arg3: memref<1x1024xf32, #tpu.memory_space<vmem>>, %arg4: memref<1024x512xbf16, #tpu.memory_space<vmem>>, %arg5: memref<1x512xf32, #tpu.memory_space<vmem>>, %arg6: memref<512x256xbf16, #tpu.memory_space<vmem>>, %arg7: memref<1x256xf32, #tpu.memory_space<vmem>>, %arg8: memref<1024x128xbf16, #tpu.memory_space<vmem>>, %arg9: memref<1x128xf32, #tpu.memory_space<vmem>>, %arg10: memref<128x256xbf16, #tpu.memory_space<vmem>>, %arg11: memref<1x256xf32, #tpu.memory_space<vmem>>, %arg12: memref<256x256xbf16, #tpu.memory_space<vmem>>, %arg13: memref<256x256xbf16, #tpu.memory_space<vmem>>, %arg14: memref<1x256xf32, #tpu.memory_space<vmem>>, %arg15: memref<256x128xbf16, #tpu.memory_space<vmem>>, %arg16: memref<1x128xf32, #tpu.memory_space<vmem>>, %arg17: memref<8x128xf32, #tpu.memory_space<vmem>>) attributes {dimension_semantics = [#tpu.dimension_semantics<parallel>], iteration_bounds = array<i64: 1>, scalar_prefetch = 0 : i64, scratch_operands = 0 : i64, tpu.core_type = #tpu.core_type<tc>, window_params = [{transform_indices = @transform_0, window_bounds = array<i64: 8, 1280>}, {pipeline_mode = #tpu.pipeline_mode<synchronous>, transform_indices = @transform_1, window_bounds = array<i64: 256, 1024>}, {pipeline_mode = #tpu.pipeline_mode<synchronous>, transform_indices = @transform_2, window_bounds = array<i64: 1, 1024>}, {pipeline_mode = #tpu.pipeline_mode<synchronous>, transform_indices = @transform_3, window_bounds = array<i64: 1024, 512>}, {pipeline_mode = #tpu.pipeline_mode<synchronous>, transform_indices = @transform_4, window_bounds = array<i64: 1, 512>}, {pipeline_mode = #tpu.pipeline_mode<synchronous>, transform_indices = @transform_5, window_bounds = array<i64: 512, 256>}, {pipeline_mode = #tpu.pipeline_mode<synchronous>, transform_indices = @transform_6, window_bounds = array<i64: 1, 256>}, {pipeline_mode = #tpu.pipeline_mode<synchronous>, transform_indices = @transform_7, window_bounds = array<i64: 1024, 128>}, {pipeline_mode = #tpu.pipeline_mode<synchronous>, transform_indices = @transform_8, window_bounds = array<i64: 1, 128>}, {pipeline_mode = #tpu.pipeline_mode<synchronous>, transform_indices = @transform_9, window_bounds = array<i64: 128, 256>}, {pipeline_mode = #tpu.pipeline_mode<synchronous>, transform_indices = @transform_10, window_bounds = array<i64: 1, 256>}, {pipeline_mode = #tpu.pipeline_mode<synchronous>, transform_indices = @transform_11, window_bounds = array<i64: 256, 256>}, {pipeline_mode = #tpu.pipeline_mode<synchronous>, transform_indices = @transform_12, window_bounds = array<i64: 256, 256>}, {pipeline_mode = #tpu.pipeline_mode<synchronous>, transform_indices = @transform_13, window_bounds = array<i64: 1, 256>}, {pipeline_mode = #tpu.pipeline_mode<synchronous>, transform_indices = @transform_14, window_bounds = array<i64: 256, 128>}, {pipeline_mode = #tpu.pipeline_mode<synchronous>, transform_indices = @transform_15, window_bounds = array<i64: 1, 128>}, {transform_indices = @transform_16, window_bounds = array<i64: 8, 128>}]} {
    %c0 = arith.constant 0 : index
    %c0_0 = arith.constant 0 : index
    %0 = vector.load %arg1[%c0, %c0_0] : memref<8x1280xf32, #tpu.memory_space<vmem>>, vector<8x256xf32>
    %c0_1 = arith.constant 0 : index
    %c256 = arith.constant 256 : index
    %1 = vector.load %arg1[%c0_1, %c256] : memref<8x1280xf32, #tpu.memory_space<vmem>>, vector<8x1024xf32>
    %2 = arith.truncf %0 : vector<8x256xf32> to vector<8x256xbf16>
    %c0_2 = arith.constant 0 : index
    %c0_3 = arith.constant 0 : index
    %3 = vector.load %arg2[%c0_2, %c0_3] : memref<256x1024xbf16, #tpu.memory_space<vmem>>, vector<256x1024xbf16>
    %cst = arith.constant dense<0.000000e+00> : vector<8x1024xf32>
    %4 = tpu.matmul %2, %3, %cst {dimension_numbers = #tpu.dot_dimension_numbers<[1], [0], [0], [1], [0, 0, 1, 1], [], []>} : vector<8x256xbf16>, vector<256x1024xbf16>, vector<8x1024xf32> -> vector<8x1024xf32>
    %c0_4 = arith.constant 0 : index
    %c0_5 = arith.constant 0 : index
    %5 = vector.load %arg3[%c0_4, %c0_5] : memref<1x1024xf32, #tpu.memory_space<vmem>>, vector<1x1024xf32>
    %6 = vector.broadcast %5 : vector<1x1024xf32> to vector<8x1024xf32>
    %7 = arith.addf %4, %6 : vector<8x1024xf32>
    %cst_6 = arith.constant 0.000000e+00 : f32
    %8 = vector.broadcast %cst_6 : f32 to vector<8x1024xf32>
    %9 = arith.maximumf %7, %8 : vector<8x1024xf32>
    %10 = arith.truncf %9 : vector<8x1024xf32> to vector<8x1024xbf16>
    %c0_7 = arith.constant 0 : index
    %c0_8 = arith.constant 0 : index
    %11 = vector.load %arg4[%c0_7, %c0_8] : memref<1024x512xbf16, #tpu.memory_space<vmem>>, vector<1024x512xbf16>
    %cst_9 = arith.constant dense<0.000000e+00> : vector<8x512xf32>
    %12 = tpu.matmul %10, %11, %cst_9 {dimension_numbers = #tpu.dot_dimension_numbers<[1], [0], [0], [1], [0, 0, 1, 1], [], []>} : vector<8x1024xbf16>, vector<1024x512xbf16>, vector<8x512xf32> -> vector<8x512xf32>
    %c0_10 = arith.constant 0 : index
    %c0_11 = arith.constant 0 : index
    %13 = vector.load %arg5[%c0_10, %c0_11] : memref<1x512xf32, #tpu.memory_space<vmem>>, vector<1x512xf32>
    %14 = vector.broadcast %13 : vector<1x512xf32> to vector<8x512xf32>
    %15 = arith.addf %12, %14 : vector<8x512xf32>
    %cst_12 = arith.constant 0.000000e+00 : f32
    %16 = vector.broadcast %cst_12 : f32 to vector<8x512xf32>
    %17 = arith.maximumf %15, %16 : vector<8x512xf32>
    %18 = arith.truncf %17 : vector<8x512xf32> to vector<8x512xbf16>
    %c0_13 = arith.constant 0 : index
    %c0_14 = arith.constant 0 : index
    %19 = vector.load %arg6[%c0_13, %c0_14] : memref<512x256xbf16, #tpu.memory_space<vmem>>, vector<512x256xbf16>
    %cst_15 = arith.constant dense<0.000000e+00> : vector<8x256xf32>
    %20 = tpu.matmul %18, %19, %cst_15 {dimension_numbers = #tpu.dot_dimension_numbers<[1], [0], [0], [1], [0, 0, 1, 1], [], []>} : vector<8x512xbf16>, vector<512x256xbf16>, vector<8x256xf32> -> vector<8x256xf32>
    %c0_16 = arith.constant 0 : index
    %c0_17 = arith.constant 0 : index
    %21 = vector.load %arg7[%c0_16, %c0_17] : memref<1x256xf32, #tpu.memory_space<vmem>>, vector<1x256xf32>
    %22 = vector.broadcast %21 : vector<1x256xf32> to vector<8x256xf32>
    %23 = arith.addf %20, %22 : vector<8x256xf32>
    %cst_18 = arith.constant 0.000000e+00 : f32
    %24 = vector.broadcast %cst_18 : f32 to vector<8x256xf32>
    %25 = arith.maximumf %23, %24 : vector<8x256xf32>
    %26 = arith.truncf %1 : vector<8x1024xf32> to vector<8x1024xbf16>
    %c0_19 = arith.constant 0 : index
    %c0_20 = arith.constant 0 : index
    %27 = vector.load %arg8[%c0_19, %c0_20] : memref<1024x128xbf16, #tpu.memory_space<vmem>>, vector<1024x128xbf16>
    %cst_21 = arith.constant dense<0.000000e+00> : vector<8x128xf32>
    %28 = tpu.matmul %26, %27, %cst_21 {dimension_numbers = #tpu.dot_dimension_numbers<[1], [0], [0], [1], [0, 0, 1, 1], [], []>} : vector<8x1024xbf16>, vector<1024x128xbf16>, vector<8x128xf32> -> vector<8x128xf32>
    %c0_22 = arith.constant 0 : index
    %c0_23 = arith.constant 0 : index
    %29 = vector.load %arg9[%c0_22, %c0_23] : memref<1x128xf32, #tpu.memory_space<vmem>>, vector<1x128xf32>
    %30 = vector.broadcast %29 : vector<1x128xf32> to vector<8x128xf32>
    %31 = arith.addf %28, %30 : vector<8x128xf32>
    %cst_24 = arith.constant 0.000000e+00 : f32
    %32 = vector.broadcast %cst_24 : f32 to vector<8x128xf32>
    %33 = arith.maximumf %31, %32 : vector<8x128xf32>
    %34 = arith.truncf %33 : vector<8x128xf32> to vector<8x128xbf16>
    %c0_25 = arith.constant 0 : index
    %c0_26 = arith.constant 0 : index
    %35 = vector.load %arg10[%c0_25, %c0_26] : memref<128x256xbf16, #tpu.memory_space<vmem>>, vector<128x256xbf16>
    %cst_27 = arith.constant dense<0.000000e+00> : vector<8x256xf32>
    %36 = tpu.matmul %34, %35, %cst_27 {dimension_numbers = #tpu.dot_dimension_numbers<[1], [0], [0], [1], [0, 0, 1, 1], [], []>} : vector<8x128xbf16>, vector<128x256xbf16>, vector<8x256xf32> -> vector<8x256xf32>
    %c0_28 = arith.constant 0 : index
    %c0_29 = arith.constant 0 : index
    %37 = vector.load %arg11[%c0_28, %c0_29] : memref<1x256xf32, #tpu.memory_space<vmem>>, vector<1x256xf32>
    %38 = vector.broadcast %37 : vector<1x256xf32> to vector<8x256xf32>
    %39 = arith.addf %36, %38 : vector<8x256xf32>
    %cst_30 = arith.constant 0.000000e+00 : f32
    %40 = vector.broadcast %cst_30 : f32 to vector<8x256xf32>
    %41 = arith.maximumf %39, %40 : vector<8x256xf32>
    %42 = arith.truncf %25 : vector<8x256xf32> to vector<8x256xbf16>
    %c0_31 = arith.constant 0 : index
    %c0_32 = arith.constant 0 : index
    %43 = vector.load %arg12[%c0_31, %c0_32] : memref<256x256xbf16, #tpu.memory_space<vmem>>, vector<256x256xbf16>
    %cst_33 = arith.constant dense<0.000000e+00> : vector<8x256xf32>
    %44 = tpu.matmul %42, %43, %cst_33 {dimension_numbers = #tpu.dot_dimension_numbers<[1], [0], [0], [1], [0, 0, 1, 1], [], []>} : vector<8x256xbf16>, vector<256x256xbf16>, vector<8x256xf32> -> vector<8x256xf32>
    %45 = arith.truncf %41 : vector<8x256xf32> to vector<8x256xbf16>
    %c0_34 = arith.constant 0 : index
    %c0_35 = arith.constant 0 : index
    %46 = vector.load %arg13[%c0_34, %c0_35] : memref<256x256xbf16, #tpu.memory_space<vmem>>, vector<256x256xbf16>
    %cst_36 = arith.constant dense<0.000000e+00> : vector<8x256xf32>
    %47 = tpu.matmul %45, %46, %cst_36 {dimension_numbers = #tpu.dot_dimension_numbers<[1], [0], [0], [1], [0, 0, 1, 1], [], []>} : vector<8x256xbf16>, vector<256x256xbf16>, vector<8x256xf32> -> vector<8x256xf32>
    %48 = arith.addf %44, %47 : vector<8x256xf32>
    %c0_37 = arith.constant 0 : index
    %c0_38 = arith.constant 0 : index
    %49 = vector.load %arg14[%c0_37, %c0_38] : memref<1x256xf32, #tpu.memory_space<vmem>>, vector<1x256xf32>
    %50 = vector.broadcast %49 : vector<1x256xf32> to vector<8x256xf32>
    %51 = arith.addf %48, %50 : vector<8x256xf32>
    %cst_39 = arith.constant 0.000000e+00 : f32
    %52 = vector.broadcast %cst_39 : f32 to vector<8x256xf32>
    %53 = arith.maximumf %51, %52 : vector<8x256xf32>
    %54 = arith.truncf %53 : vector<8x256xf32> to vector<8x256xbf16>
    %c0_40 = arith.constant 0 : index
    %c0_41 = arith.constant 0 : index
    %55 = vector.load %arg15[%c0_40, %c0_41] : memref<256x128xbf16, #tpu.memory_space<vmem>>, vector<256x128xbf16>
    %cst_42 = arith.constant dense<0.000000e+00> : vector<8x128xf32>
    %56 = tpu.matmul %54, %55, %cst_42 {dimension_numbers = #tpu.dot_dimension_numbers<[1], [0], [0], [1], [0, 0, 1, 1], [], []>} : vector<8x256xbf16>, vector<256x128xbf16>, vector<8x128xf32> -> vector<8x128xf32>
    %c0_43 = arith.constant 0 : index
    %c0_44 = arith.constant 0 : index
    %57 = vector.load %arg16[%c0_43, %c0_44] : memref<1x128xf32, #tpu.memory_space<vmem>>, vector<1x128xf32>
    %58 = vector.broadcast %57 : vector<1x128xf32> to vector<8x128xf32>
    %59 = arith.addf %56, %58 : vector<8x128xf32>
    %cst_45 = arith.constant 0.000000e+00 : f32
    %60 = vector.broadcast %cst_45 : f32 to vector<8x128xf32>
    %61 = arith.subf %60, %59 : vector<8x128xf32>
    %62 = math.exp %61 : vector<8x128xf32>
    %cst_46 = arith.constant 1.000000e+00 : f32
    %63 = vector.broadcast %cst_46 : f32 to vector<8x128xf32>
    %64 = arith.addf %63, %62 : vector<8x128xf32>
    %65 = tpu.reciprocal %64 {approx = true} : vector<8x128xf32> -> vector<8x128xf32>
    %c0_47 = arith.constant 0 : index
    %c0_48 = arith.constant 0 : index
    %66 = vector.load %arg17[%c0_47, %c0_48] : memref<8x128xf32, #tpu.memory_space<vmem>>, vector<8x128xf32>
    tpu.vector_store %arg17[%c0_47, %c0_48], %65 {strides = array<i32>} : memref<8x128xf32, #tpu.memory_space<vmem>>, vector<8x128xf32>,
    return
  }
  func.func @transform_0(%arg0: i32) -> (i32, i32) {
    %c0_i32 = arith.constant 0 : i32
    %c0_i32_0 = arith.constant 0 : i32
    return %arg0, %c0_i32 : i32, i32
  }
  func.func @transform_1(%arg0: i32) -> (i32, i32) {
    %c0_i32 = arith.constant 0 : i32
    %c0_i32_0 = arith.constant 0 : i32
    %c0_i32_1 = arith.constant 0 : i32
    return %c0_i32, %c0_i32_0 : i32, i32
  }
  func.func @transform_2(%arg0: i32) -> (i32, i32) {
    %c0_i32 = arith.constant 0 : i32
    %c0_i32_0 = arith.constant 0 : i32
    %c0_i32_1 = arith.constant 0 : i32
    return %c0_i32, %c0_i32_0 : i32, i32
  }
  func.func @transform_3(%arg0: i32) -> (i32, i32) {
    %c0_i32 = arith.constant 0 : i32
    %c0_i32_0 = arith.constant 0 : i32
    %c0_i32_1 = arith.constant 0 : i32
    return %c0_i32, %c0_i32_0 : i32, i32
  }
  func.func @transform_4(%arg0: i32) -> (i32, i32) {
    %c0_i32 = arith.constant 0 : i32
    %c0_i32_0 = arith.constant 0 : i32
    %c0_i32_1 = arith.constant 0 : i32
    return %c0_i32, %c0_i32_0 : i32, i32
  }
  func.func @transform_5(%arg0: i32) -> (i32, i32) {
    %c0_i32 = arith.constant 0 : i32
    %c0_i32_0 = arith.constant 0 : i32
    %c0_i32_1 = arith.constant 0 : i32
    return %c0_i32, %c0_i32_0 : i32, i32
  }
  func.func @transform_6(%arg0: i32) -> (i32, i32) {
    %c0_i32 = arith.constant 0 : i32
    %c0_i32_0 = arith.constant 0 : i32
    %c0_i32_1 = arith.constant 0 : i32
    return %c0_i32, %c0_i32_0 : i32, i32
  }
  func.func @transform_7(%arg0: i32) -> (i32, i32) {
    %c0_i32 = arith.constant 0 : i32
    %c0_i32_0 = arith.constant 0 : i32
    %c0_i32_1 = arith.constant 0 : i32
    return %c0_i32, %c0_i32_0 : i32, i32
  }
  func.func @transform_8(%arg0: i32) -> (i32, i32) {
    %c0_i32 = arith.constant 0 : i32
    %c0_i32_0 = arith.constant 0 : i32
    %c0_i32_1 = arith.constant 0 : i32
    return %c0_i32, %c0_i32_0 : i32, i32
  }
  func.func @transform_9(%arg0: i32) -> (i32, i32) {
    %c0_i32 = arith.constant 0 : i32
    %c0_i32_0 = arith.constant 0 : i32
    %c0_i32_1 = arith.constant 0 : i32
    return %c0_i32, %c0_i32_0 : i32, i32
  }
  func.func @transform_10(%arg0: i32) -> (i32, i32) {
    %c0_i32 = arith.constant 0 : i32
    %c0_i32_0 = arith.constant 0 : i32
    %c0_i32_1 = arith.constant 0 : i32
    return %c0_i32, %c0_i32_0 : i32, i32
  }
  func.func @transform_11(%arg0: i32) -> (i32, i32) {
    %c0_i32 = arith.constant 0 : i32
    %c0_i32_0 = arith.constant 0 : i32
    %c0_i32_1 = arith.constant 0 : i32
    return %c0_i32, %c0_i32_0 : i32, i32
  }
  func.func @transform_12(%arg0: i32) -> (i32, i32) {
    %c0_i32 = arith.constant 0 : i32
    %c0_i32_0 = arith.constant 0 : i32
    %c0_i32_1 = arith.constant 0 : i32
    return %c0_i32, %c0_i32_0 : i32, i32
  }
  func.func @transform_13(%arg0: i32) -> (i32, i32) {
    %c0_i32 = arith.constant 0 : i32
    %c0_i32_0 = arith.constant 0 : i32
    %c0_i32_1 = arith.constant 0 : i32
    return %c0_i32, %c0_i32_0 : i32, i32
  }
  func.func @transform_14(%arg0: i32) -> (i32, i32) {
    %c0_i32 = arith.constant 0 : i32
    %c0_i32_0 = arith.constant 0 : i32
    %c0_i32_1 = arith.constant 0 : i32
    return %c0_i32, %c0_i32_0 : i32, i32
  }
  func.func @transform_15(%arg0: i32) -> (i32, i32) {
    %c0_i32 = arith.constant 0 : i32
    %c0_i32_0 = arith.constant 0 : i32
    %c0_i32_1 = arith.constant 0 : i32
    return %c0_i32, %c0_i32_0 : i32, i32
  }
  func.func @transform_16(%arg0: i32) -> (i32, i32) {
    %c0_i32 = arith.constant 0 : i32
    %c0_i32_0 = arith.constant 0 : i32
    return %arg0, %c0_i32 : i32, i32
  }
}

</mosaic_0001>

<llo_original>
// kernel: vortexviz_forward.1
$region0: #{vortexviz_forward.1}
  #allocation0 [shape = 'u32[]', space=smem, size = 0x4, offset = 0x4, fixed_abs, tag = 'smem constant byte address 0x4 - core index']
  #allocation1 [shape = 'u32[144,128]{1,0:T(1,128)}', space=vmem, size = 0x12000, scoped, tag = 'internal scratch']
  %s0 = inlined_call_operand.vmem [shape: f32[8,1280], index: 0, kind: input, shape index: {}]
  %s1 = inlined_call_operand.hbm [shape: bf16[256,1024], index: 1, kind: input, shape index: {}]
  %s2 = inlined_call_operand.hbm [shape: f32[1,1024], index: 2, kind: input, shape index: {}]
  %s3 = inlined_call_operand.hbm [shape: bf16[1024,512], index: 3, kind: input, shape index: {}]
  %s4 = inlined_call_operand.vmem [shape: f32[1,512], index: 4, kind: input, shape index: {}]
  %s5 = inlined_call_operand.hbm [shape: bf16[512,256], index: 5, kind: input, shape index: {}]
  %s6 = inlined_call_operand.vmem [shape: f32[1,256], index: 6, kind: input, shape index: {}]
  %s7 = inlined_call_operand.hbm [shape: bf16[1024,128], index: 7, kind: input, shape index: {}]
  %s8 = inlined_call_operand.hbm [shape: f32[1,128], index: 8, kind: input, shape index: {}]
  %s9 = inlined_call_operand.vmem [shape: bf16[128,256], index: 9, kind: input, shape index: {}]
  %s10 = inlined_call_operand.vmem [shape: f32[1,256], index: 10, kind: input, shape index: {}]
  %s11 = inlined_call_operand.hbm [shape: bf16[256,256], index: 11, kind: input, shape index: {}]
  %s12 = inlined_call_operand.hbm [shape: bf16[256,256], index: 12, kind: input, shape index: {}]
  %s13 = inlined_call_operand.vmem [shape: f32[1,256], index: 13, kind: input, shape index: {}]
  %s14 = inlined_call_operand.hbm [shape: bf16[256,128], index: 14, kind: input, shape index: {}]
  %s15 = inlined_call_operand.vmem [shape: f32[1,128], index: 15, kind: input, shape index: {}]
  %s16 = inlined_call_operand.vmem [shape: f32[8,128], index: 16, kind: output, shape index: {}]
  %s17 = sld [smem:[#allocation0]]
  $region110: #{vortexviz_forward.1} parent=0
    _
  %s19 = ssub.s32 1, %s17
  %s20 = scalar_select 0, %s19, %s17
  $region1: #{vortexviz_forward.1} parent=0
    #allocation2 [shape = 'u8[524288]{0}', space=vmem, size = 0x80000, scoped, tag = 'input window, operand 1, single buffered']
    #allocation3 [shape = 's32[1]{0}', space=sflag, size = 0x4, scoped, tag = 'scoped memory for vortexviz_forward.1']
    #allocation4 [shape = 'u8[4096]{0}', space=vmem, size = 0x1000, scoped, tag = 'input window, operand 2, single buffered']
    #allocation5 [shape = 's32[1]{0}', space=sflag, size = 0x4, scoped, tag = 'scoped memory for vortexviz_forward.1']
    #allocation6 [shape = 'u8[1048576]{0}', space=vmem, size = 0x100000, scoped, tag = 'input window, operand 3, single buffered']
    #allocation7 [shape = 'u8[262144]{0}', space=vmem, size = 0x40000, scoped, tag = 'input window, operand 5, single buffered']
    #allocation8 [shape = 's32[1]{0}', space=sflag, size = 0x4, scoped, tag = 'scoped memory for vortexviz_forward.1']
    #allocation9 [shape = 'u8[262144]{0}', space=vmem, size = 0x40000, scoped, tag = 'input window, operand 7, single buffered']
    #allocation10 [shape = 'u8[512]{0}', space=vmem, size = 0x400, scoped, tag = 'input window, operand 8, single buffered']
    #allocation11 [shape = 's32[1]{0}', space=sflag, size = 0x4, scoped, tag = 'scoped memory for vortexviz_forward.1']
    #allocation12 [shape = 'u8[131072]{0}', space=vmem, size = 0x20000, scoped, tag = 'input window, operand 11, single buffered']
    #allocation13 [shape = 'u8[131072]{0}', space=vmem, size = 0x20000, scoped, tag = 'input window, operand 12, single buffered']
    #allocation14 [shape = 's32[1]{0}', space=sflag, size = 0x4, scoped, tag = 'scoped memory for vortexviz_forward.1']
    #allocation15 [shape = 'u8[65536]{0}', space=vmem, size = 0x10000, scoped, tag = 'input window, operand 14, single buffered']
    %21 = vsyncpa [#allocation3], 0
    %22 = vsyncpa [#allocation5], 0
    %23 = vsyncpa [#allocation8], 0
    %24 = vsyncpa [#allocation11], 0
    %25 = vsyncpa [#allocation14], 0
    // Predicated region
    $region2: #{vortexviz_forward.1} parent=1 // pred_check
      _
    $region3: #{vortexviz_forward.1} parent=1 // pred_check_branch
      %27 = sbr.rel (0) target = $region5
    $region4: #{vortexviz_forward.1} parent=1 // pred_region
      _
    $region5: #{vortexviz_forward.1} parent=1 // pred_fallthru
      _
    // Predicated region
    $region6: #{vortexviz_forward.1} parent=1 // pred_check
      _
    $region7: #{vortexviz_forward.1} parent=1 // pred_check_branch
      %29 = sbr.rel (0) target = $region9
    $region8: #{vortexviz_forward.1} parent=1 // pred_region
      %s31 = ssub.s32 16384, 16384
      %32 = vsyncadd [#allocation3], %s31
      %s33 = sshll.u32 [#allocation2], 4
      %s34 = int_to_ptr.vmem [resolvable:$true] %s33
      %39 = dma.hbm_to_vmem [thread:$0]  %s1, 16384, %s34, [#allocation3], 512, 512, 32
    $region9: #{vortexviz_forward.1} parent=1 // pred_fallthru
      _
    // Predicated region
    $region10: #{vortexviz_forward.1} parent=1 // pred_check
      _
    $region11: #{vortexviz_forward.1} parent=1 // pred_check_branch
      %41 = sbr.rel (0) target = $region13
    $region12: #{vortexviz_forward.1} parent=1 // pred_region
      %s43 = ssub.s32 128, 128
      %44 = vsyncadd [#allocation5], %s43
      %s46 = sshll.u32 [#allocation4], 4
      %s47 = int_to_ptr.vmem [resolvable:$true] %s46
      %49 = dma.hbm_to_vmem [thread:$0]  %s2, 128, %s47, [#allocation5]
    $region13: #{vortexviz_forward.1} parent=1 // pred_fallthru
      _
    // Predicated region
    $region14: #{vortexviz_forward.1} parent=1 // pred_check
      _
    $region15: #{vortexviz_forward.1} parent=1 // pred_check_branch
      %51 = sbr.rel (0) target = $region17
    $region16: #{vortexviz_forward.1} parent=1 // pred_region
      %s53 = ssub.s32 32768, 32768
      %54 = vsyncadd [#allocation5], %s53
      %s55 = sshll.u32 [#allocation6], 4
      %s56 = int_to_ptr.vmem [resolvable:$true] %s55
      %61 = dma.hbm_to_vmem [thread:$0]  %s3, 32768, %s56, [#allocation5], 256, 256, 16
    $region17: #{vortexviz_forward.1} parent=1 // pred_fallthru
      _
    // Predicated region
    $region18: #{vortexviz_forward.1} parent=1 // pred_check
      _
    $region19: #{vortexviz_forward.1} parent=1 // pred_check_branch
      %63 = sbr.rel (0) target = $region21
    $region20: #{vortexviz_forward.1} parent=1 // pred_region
      _
    $region21: #{vortexviz_forward.1} parent=1 // pred_fallthru
      _
    // Predicated region
    $region22: #{vortexviz_forward.1} parent=1 // pred_check
      _
    $region23: #{vortexviz_forward.1} parent=1 // pred_check_branch
      %65 = sbr.rel (0) target = $region25
    $region24: #{vortexviz_forward.1} parent=1 // pred_region
      %s67 = ssub.s32 8192, 8192
      %68 = vsyncadd [#allocation8], %s67
      %s69 = sshll.u32 [#allocation7], 4
      %s70 = int_to_ptr.vmem [resolvable:$true] %s69
      %75 = dma.hbm_to_vmem [thread:$0]  %s5, 8192, %s70, [#allocation8], 128, 128, 8
    $region25: #{vortexviz_forward.1} parent=1 // pred_fallthru
      _
    // Predicated region
    $region26: #{vortexviz_forward.1} parent=1 // pred_check
      _
    $region27: #{vortexviz_forward.1} parent=1 // pred_check_branch
      %77 = sbr.rel (0) target = $region29
    $region28: #{vortexviz_forward.1} parent=1 // pred_region
      _
    $region29: #{vortexviz_forward.1} parent=1 // pred_fallthru
      _
    // Predicated region
    $region30: #{vortexviz_forward.1} parent=1 // pred_check
      _
    $region31: #{vortexviz_forward.1} parent=1 // pred_check_branch
      %79 = sbr.rel (0) target = $region33
    $region32: #{vortexviz_forward.1} parent=1 // pred_region
      %s81 = ssub.s32 8192, 8192
      %82 = vsyncadd [#allocation8], %s81
      %s83 = sshll.u32 [#allocation9], 4
      %s84 = int_to_ptr.vmem [resolvable:$true] %s83
      %89 = dma.hbm_to_vmem [thread:$0]  %s7, 8192, %s84, [#allocation8], 64, 64, 4
    $region33: #{vortexviz_forward.1} parent=1 // pred_fallthru
      _
    // Predicated region
    $region34: #{vortexviz_forward.1} parent=1 // pred_check
      _
    $region35: #{vortexviz_forward.1} parent=1 // pred_check_branch
      %91 = sbr.rel (0) target = $region37
    $region36: #{vortexviz_forward.1} parent=1 // pred_region
      %s93 = ssub.s32 16, 16
      %94 = vsyncadd [#allocation11], %s93
      %s96 = sshll.u32 [#allocation10], 4
      %s97 = int_to_ptr.vmem [resolvable:$true] %s96
      %99 = dma.hbm_to_vmem [thread:$0]  %s8, 16, %s97, [#allocation11]
    $region37: #{vortexviz_forward.1} parent=1 // pred_fallthru
      _
    // Predicated region
    $region38: #{vortexviz_forward.1} parent=1 // pred_check
      _
    $region39: #{vortexviz_forward.1} parent=1 // pred_check_branch
      %101 = sbr.rel (0) target = $region41
    $region40: #{vortexviz_forward.1} parent=1 // pred_region
      _
    $region41: #{vortexviz_forward.1} parent=1 // pred_fallthru
      _
    // Predicated region
    $region42: #{vortexviz_forward.1} parent=1 // pred_check
      _
    $region43: #{vortexviz_forward.1} parent=1 // pred_check_branch
      %103 = sbr.rel (0) target = $region45
    $region44: #{vortexviz_forward.1} parent=1 // pred_region
      _
    $region45: #{vortexviz_forward.1} parent=1 // pred_fallthru
      _
    // Predicated region
    $region46: #{vortexviz_forward.1} parent=1 // pred_check
      _
    $region47: #{vortexviz_forward.1} parent=1 // pred_check_branch
      %105 = sbr.rel (0) target = $region49
    $region48: #{vortexviz_forward.1} parent=1 // pred_region
      %s107 = ssub.s32 4096, 4096
      %108 = vsyncadd [#allocation11], %s107
      %s109 = sshll.u32 [#allocation12], 4
      %s110 = int_to_ptr.vmem [resolvable:$true] %s109
      %115 = dma.hbm_to_vmem [thread:$0]  %s11, 4096, %s110, [#allocation11], 128, 128, 8
    $region49: #{vortexviz_forward.1} parent=1 // pred_fallthru
      _
    // Predicated region
    $region50: #{vortexviz_forward.1} parent=1 // pred_check
      _
    $region51: #{vortexviz_forward.1} parent=1 // pred_check_branch
      %117 = sbr.rel (0) target = $region53
    $region52: #{vortexviz_forward.1} parent=1 // pred_region
      %s119 = ssub.s32 4096, 4096
      %120 = vsyncadd [#allocation14], %s119
      %s121 = sshll.u32 [#allocation13], 4
      %s122 = int_to_ptr.vmem [resolvable:$true] %s121
      %127 = dma.hbm_to_vmem [thread:$0]  %s12, 4096, %s122, [#allocation14], 128, 128, 8
    $region53: #{vortexviz_forward.1} parent=1 // pred_fallthru
      _
    // Predicated region
    $region54: #{vortexviz_forward.1} parent=1 // pred_check
      _
    $region55: #{vortexviz_forward.1} parent=1 // pred_check_branch
      %129 = sbr.rel (0) target = $region57
    $region56: #{vortexviz_forward.1} parent=1 // pred_region
      _
    $region57: #{vortexviz_forward.1} parent=1 // pred_fallthru
      _
    // Predicated region
    $region58: #{vortexviz_forward.1} parent=1 // pred_check
      _
    $region59: #{vortexviz_forward.1} parent=1 // pred_check_branch
      %131 = sbr.rel (0) target = $region61
    $region60: #{vortexviz_forward.1} parent=1 // pred_region
      %s133 = ssub.s32 2048, 2048
      %134 = vsyncadd [#allocation14], %s133
      %s135 = sshll.u32 [#allocation15], 4
      %s136 = int_to_ptr.vmem [resolvable:$true] %s135
      %141 = dma.hbm_to_vmem [thread:$0]  %s14, 2048, %s136, [#allocation14], 64, 64, 4
    $region61: #{vortexviz_forward.1} parent=1 // pred_fallthru
      _
    // Predicated region
    $region62: #{vortexviz_forward.1} parent=1 // pred_check
      _
    $region63: #{vortexviz_forward.1} parent=1 // pred_check_branch
      %143 = sbr.rel (0) target = $region65
    $region64: #{vortexviz_forward.1} parent=1 // pred_region
      _
    $region65: #{vortexviz_forward.1} parent=1 // pred_fallthru
      _
    // Predicated region
    $region66: #{vortexviz_forward.1} parent=1 // pred_check
      _
    $region67: #{vortexviz_forward.1} parent=1 // pred_check_branch
      %145 = sbr.rel (0) target = $region69
    $region68: #{vortexviz_forward.1} parent=1 // pred_region
      %146 = dma.done [#allocation3], 16384
    $region69: #{vortexviz_forward.1} parent=1 // pred_fallthru
      _
    // Predicated region
    $region70: #{vortexviz_forward.1} parent=1 // pred_check
      _
    $region71: #{vortexviz_forward.1} parent=1 // pred_check_branch
      %148 = sbr.rel (0) target = $region73
    $region72: #{vortexviz_forward.1} parent=1 // pred_region
      %149 = dma.done [#allocation5], 128
    $region73: #{vortexviz_forward.1} parent=1 // pred_fallthru
      _
    // Predicated region
    $region74: #{vortexviz_forward.1} parent=1 // pred_check
      _
    $region75: #{vortexviz_forward.1} parent=1 // pred_check_branch
      %151 = sbr.rel (0) target = $region77
    $region76: #{vortexviz_forward.1} parent=1 // pred_region
      %152 = dma.done [#allocation5], 32768
    $region77: #{vortexviz_forward.1} parent=1 // pred_fallthru
      _
    // Predicated region
    $region78: #{vortexviz_forward.1} parent=1 // pred_check
      _
    $region79: #{vortexviz_forward.1} parent=1 // pred_check_branch
      %154 = sbr.rel (0) target = $region81
    $region80: #{vortexviz_forward.1} parent=1 // pred_region
      %155 = dma.done [#allocation8], 8192
    $region81: #{vortexviz_forward.1} parent=1 // pred_fallthru
      _
    // Predicated region
    $region82: #{vortexviz_forward.1} parent=1 // pred_check
      _
    $region83: #{vortexviz_forward.1} parent=1 // pred_check_branch
      %157 = sbr.rel (0) target = $region85
    $region84: #{vortexviz_forward.1} parent=1 // pred_region
      %158 = dma.done [#allocation8], 8192
    $region85: #{vortexviz_forward.1} parent=1 // pred_fallthru
      _
    // Predicated region
    $region86: #{vortexviz_forward.1} parent=1 // pred_check
      _
    $region87: #{vortexviz_forward.1} parent=1 // pred_check_branch
      %160 = sbr.rel (0) target = $region89
    $region88: #{vortexviz_forward.1} parent=1 // pred_region
      %161 = dma.done [#allocation11], 16
    $region89: #{vortexviz_forward.1} parent=1 // pred_fallthru
      _
    // Predicated region
    $region90: #{vortexviz_forward.1} parent=1 // pred_check
      _
    $region91: #{vortexviz_forward.1} parent=1 // pred_check_branch
      %163 = sbr.rel (0) target = $region93
    $region92: #{vortexviz_forward.1} parent=1 // pred_region
      %164 = dma.done [#allocation11], 4096
    $region93: #{vortexviz_forward.1} parent=1 // pred_fallthru
      _
    // Predicated region
    $region94: #{vortexviz_forward.1} parent=1 // pred_check
      _
    $region95: #{vortexviz_forward.1} parent=1 // pred_check_branch
      %166 = sbr.rel (0) target = $region97
    $region96: #{vortexviz_forward.1} parent=1 // pred_region
      %167 = dma.done [#allocation14], 4096
    $region97: #{vortexviz_forward.1} parent=1 // pred_fallthru
      _
    // Predicated region
    $region98: #{vortexviz_forward.1} parent=1 // pred_check
      _
    $region99: #{vortexviz_forward.1} parent=1 // pred_check_branch
      %169 = sbr.rel (0) target = $region101
    $region100: #{vortexviz_forward.1} parent=1 // pred_region
      %170 = dma.done [#allocation14], 2048
    $region101: #{vortexviz_forward.1} parent=1 // pred_fallthru
      _
    %v172 = vld [vmem:[%s0] sm:$0xff]
    %v173 = vld [vmem:[%s0 + $0x8] sm:$0xff]
    %v174 = vld [vmem:[%s0 + $0x10] sm:$0xff]
    %v175 = vld [vmem:[%s0 + $0x18] sm:$0xff]
    %v176 = vld [vmem:[%s0 + $0x20] sm:$0xff]
    %v177 = vld [vmem:[%s0 + $0x28] sm:$0xff]
    %v178 = vld [vmem:[%s0 + $0x30] sm:$0xff]
    %v179 = vld [vmem:[%s0 + $0x38] sm:$0xff]
    %v180 = vld [vmem:[%s0 + $0x40] sm:$0xff]
    %v181 = vld [vmem:[%s0 + $0x48] sm:$0xff]
    %v182 = vpack.c.bf16 %v172, %v172
    %v183 = vpack.c.bf16 %v173, %v173
    %v184 = vld [vmem:[#allocation2] sm:$0xff]
    %v185 = vld [vmem:[#allocation2 + $0x8] sm:$0xff]
    %v186 = vld [vmem:[#allocation2 + $0x10] sm:$0xff]
    %v187 = vld [vmem:[#allocation2 + $0x18] sm:$0xff]
    %v188 = vld [vmem:[#allocation2 + $0x20] sm:$0xff]
    %v189 = vld [vmem:[#allocation2 + $0x28] sm:$0xff]
    %v190 = vld [vmem:[#allocation2 + $0x30] sm:$0xff]
    %v191 = vld [vmem:[#allocation2 + $0x38] sm:$0xff]
    %v192 = vld [vmem:[#allocation2 + $0x40] sm:$0xff]
    %v193 = vld [vmem:[#allocation2 + $0x48] sm:$0xff]
    %v194 = vld [vmem:[#allocation2 + $0x50] sm:$0xff]
    %v195 = vld [vmem:[#allocation2 + $0x58] sm:$0xff]
    %v196 = vld [vmem:[#allocation2 + $0x60] sm:$0xff]
    %v197 = vld [vmem:[#allocation2 + $0x68] sm:$0xff]
    %v198 = vld [vmem:[#allocation2 + $0x70] sm:$0xff]
    %v199 = vld [vmem:[#allocation2 + $0x78] sm:$0xff]
    %v200 = vld [vmem:[#allocation2 + $0x80] sm:$0xff]
    %v201 = vld [vmem:[#allocation2 + $0x88] sm:$0xff]
    %v202 = vld [vmem:[#allocation2 + $0x90] sm:$0xff]
    %v203 = vld [vmem:[#allocation2 + $0x98] sm:$0xff]
    %v204 = vld [vmem:[#allocation2 + $0xa0] sm:$0xff]
    %v205 = vld [vmem:[#allocation2 + $0xa8] sm:$0xff]
    %v206 = vld [vmem:[#allocation2 + $0xb0] sm:$0xff]
    %v207 = vld [vmem:[#allocation2 + $0xb8] sm:$0xff]
    %v208 = vld [vmem:[#allocation2 + $0xc0] sm:$0xff]
    %v209 = vld [vmem:[#allocation2 + $0xc8] sm:$0xff]
    %v210 = vld [vmem:[#allocation2 + $0xd0] sm:$0xff]
    %v211 = vld [vmem:[#allocation2 + $0xd8] sm:$0xff]
    %v212 = vld [vmem:[#allocation2 + $0xe0] sm:$0xff]
    %v213 = vld [vmem:[#allocation2 + $0xe8] sm:$0xff]
    %v214 = vld [vmem:[#allocation2 + $0xf0] sm:$0xff]
    %v215 = vld [vmem:[#allocation2 + $0xf8] sm:$0xff]
    %v216 = vld [vmem:[#allocation2 + $0x100] sm:$0xff]
    %v217 = vld [vmem:[#allocation2 + $0x108] sm:$0xff]
    %v218 = vld [vmem:[#allocation2 + $0x110] sm:$0xff]
    %v219 = vld [vmem:[#allocation2 + $0x118] sm:$0xff]
    %v220 = vld [vmem:[#allocation2 + $0x120] sm:$0xff]
    %v221 = vld [vmem:[#allocation2 + $0x128] sm:$0xff]
    %v222 = vld [vmem:[#allocation2 + $0x130] sm:$0xff]
    %v223 = vld [vmem:[#allocation2 + $0x138] sm:$0xff]
    %v224 = vld [vmem:[#allocation2 + $0x140] sm:$0xff]
    %v225 = vld [vmem:[#allocation2 + $0x148] sm:$0xff]
    %v226 = vld [vmem:[#allocation2 + $0x150] sm:$0xff]
    %v227 = vld [vmem:[#allocation2 + $0x158] sm:$0xff]
    %v228 = vld [vmem:[#allocation2 + $0x160] sm:$0xff]
    %v229 = vld [vmem:[#allocation2 + $0x168] sm:$0xff]
    %v230 = vld [vmem:[#allocation2 + $0x170] sm:$0xff]
    %v231 = vld [vmem:[#allocation2 + $0x178] sm:$0xff]
    %v232 = vld [vmem:[#allocation2 + $0x180] sm:$0xff]
    %v233 = vld [vmem:[#allocation2 + $0x188] sm:$0xff]
    %v234 = vld [vmem:[#allocation2 + $0x190] sm:$0xff]
    %v235 = vld [vmem:[#allocation2 + $0x198] sm:$0xff]
    %v236 = vld [vmem:[#allocation2 + $0x1a0] sm:$0xff]
    %v237 = vld [vmem:[#allocation2 + $0x1a8] sm:$0xff]
    %v238 = vld [vmem:[#allocation2 + $0x1b0] sm:$0xff]
    %v239 = vld [vmem:[#allocation2 + $0x1b8] sm:$0xff]
    %v240 = vld [vmem:[#allocation2 + $0x1c0] sm:$0xff]
    %v241 = vld [vmem:[#allocation2 + $0x1c8] sm:$0xff]
    %v242 = vld [vmem:[#allocation2 + $0x1d0] sm:$0xff]
    %v243 = vld [vmem:[#allocation2 + $0x1d8] sm:$0xff]
    %v244 = vld [vmem:[#allocation2 + $0x1e0] sm:$0xff]
    %v245 = vld [vmem:[#allocation2 + $0x1e8] sm:$0xff]
    %v246 = vld [vmem:[#allocation2 + $0x1f0] sm:$0xff]
    %v247 = vld [vmem:[#allocation2 + $0x1f8] sm:$0xff]
    %v248 = vld [vmem:[#allocation2 + $0x200] sm:$0xff]
    %v249 = vld [vmem:[#allocation2 + $0x208] sm:$0xff]
    %v250 = vld [vmem:[#allocation2 + $0x210] sm:$0xff]
    %v251 = vld [vmem:[#allocation2 + $0x218] sm:$0xff]
    %v252 = vld [vmem:[#allocation2 + $0x220] sm:$0xff]
    %v253 = vld [vmem:[#allocation2 + $0x228] sm:$0xff]
    %v254 = vld [vmem:[#allocation2 + $0x230] sm:$0xff]
    %v255 = vld [vmem:[#allocation2 + $0x238] sm:$0xff]
    %v256 = vld [vmem:[#allocation2 + $0x240] sm:$0xff]
    %v257 = vld [vmem:[#allocation2 + $0x248] sm:$0xff]
    %v258 = vld [vmem:[#allocation2 + $0x250] sm:$0xff]
    %v259 = vld [vmem:[#allocation2 + $0x258] sm:$0xff]
    %v260 = vld [vmem:[#allocation2 + $0x260] sm:$0xff]
    %v261 = vld [vmem:[#allocation2 + $0x268] sm:$0xff]
    %v262 = vld [vmem:[#allocation2 + $0x270] sm:$0xff]
    %v263 = vld [vmem:[#allocation2 + $0x278] sm:$0xff]
    %v264 = vld [vmem:[#allocation2 + $0x280] sm:$0xff]
    %v265 = vld [vmem:[#allocation2 + $0x288] sm:$0xff]
    %v266 = vld [vmem:[#allocation2 + $0x290] sm:$0xff]
    %v267 = vld [vmem:[#allocation2 + $0x298] sm:$0xff]
    %v268 = vld [vmem:[#allocation2 + $0x2a0] sm:$0xff]
    %v269 = vld [vmem:[#allocation2 + $0x2a8] sm:$0xff]
    %v270 = vld [vmem:[#allocation2 + $0x2b0] sm:$0xff]
    %v271 = vld [vmem:[#allocation2 + $0x2b8] sm:$0xff]
    %v272 = vld [vmem:[#allocation2 + $0x2c0] sm:$0xff]
    %v273 = vld [vmem:[#allocation2 + $0x2c8] sm:$0xff]
    %v274 = vld [vmem:[#allocation2 + $0x2d0] sm:$0xff]
    %v275 = vld [vmem:[#allocation2 + $0x2d8] sm:$0xff]
    %v276 = vld [vmem:[#allocation2 + $0x2e0] sm:$0xff]
    %v277 = vld [vmem:[#allocation2 + $0x2e8] sm:$0xff]
    %v278 = vld [vmem:[#allocation2 + $0x2f0] sm:$0xff]
    %v279 = vld [vmem:[#allocation2 + $0x2f8] sm:$0xff]
    %v280 = vld [vmem:[#allocation2 + $0x300] sm:$0xff]
    %v281 = vld [vmem:[#allocation2 + $0x308] sm:$0xff]
    %v282 = vld [vmem:[#allocation2 + $0x310] sm:$0xff]
    %v283 = vld [vmem:[#allocation2 + $0x318] sm:$0xff]
    %v284 = vld [vmem:[#allocation2 + $0x320] sm:$0xff]
    %v285 = vld [vmem:[#allocation2 + $0x328] sm:$0xff]
    %v286 = vld [vmem:[#allocation2 + $0x330] sm:$0xff]
    %v287 = vld [vmem:[#allocation2 + $0x338] sm:$0xff]
    %v288 = vld [vmem:[#allocation2 + $0x340] sm:$0xff]
    %v289 = vld [vmem:[#allocation2 + $0x348] sm:$0xff]
    %v290 = vld [vmem:[#allocation2 + $0x350] sm:$0xff]
    %v291 = vld [vmem:[#allocation2 + $0x358] sm:$0xff]
    %v292 = vld [vmem:[#allocation2 + $0x360] sm:$0xff]
    %v293 = vld [vmem:[#allocation2 + $0x368] sm:$0xff]
    %v294 = vld [vmem:[#allocation2 + $0x370] sm:$0xff]
    %v295 = vld [vmem:[#allocation2 + $0x378] sm:$0xff]
    %v296 = vld [vmem:[#allocation2 + $0x380] sm:$0xff]
    %v297 = vld [vmem:[#allocation2 + $0x388] sm:$0xff]
    %v298 = vld [vmem:[#allocation2 + $0x390] sm:$0xff]
    %v299 = vld [vmem:[#allocation2 + $0x398] sm:$0xff]
    %v300 = vld [vmem:[#allocation2 + $0x3a0] sm:$0xff]
    %v301 = vld [vmem:[#allocation2 + $0x3a8] sm:$0xff]
    %v302 = vld [vmem:[#allocation2 + $0x3b0] sm:$0xff]
    %v303 = vld [vmem:[#allocation2 + $0x3b8] sm:$0xff]
    %v304 = vld [vmem:[#allocation2 + $0x3c0] sm:$0xff]
    %v305 = vld [vmem:[#allocation2 + $0x3c8] sm:$0xff]
    %v306 = vld [vmem:[#allocation2 + $0x3d0] sm:$0xff]
    %v307 = vld [vmem:[#allocation2 + $0x3d8] sm:$0xff]
    %v308 = vld [vmem:[#allocation2 + $0x3e0] sm:$0xff]
    %v309 = vld [vmem:[#allocation2 + $0x3e8] sm:$0xff]
    %v310 = vld [vmem:[#allocation2 + $0x3f0] sm:$0xff]
    %v311 = vld [vmem:[#allocation2 + $0x3f8] sm:$0xff]
    %v312 = vld [vmem:[#allocation4] sm:$0xff]
    %v314 = vlaneseq
    %v315 = vshrl.u32 %v314, 7
    %v316 = vsub.s32 0, %v315
    %v317 = vrot.slane %v312, %v316
    %v318 = vlaneseq
    %v319 = vshrl.u32 %v318, 7
    %v320 = vsub.s32 1, %v319
    %v321 = vrot.slane %v312, %v320
    %v322 = vlaneseq
    %v323 = vshrl.u32 %v322, 7
    %v324 = vsub.s32 2, %v323
    %v325 = vrot.slane %v312, %v324
    %v326 = vlaneseq
    %v327 = vshrl.u32 %v326, 7
    %v328 = vsub.s32 3, %v327
    %v329 = vrot.slane %v312, %v328
    %v330 = vlaneseq
    %v331 = vshrl.u32 %v330, 7
    %v332 = vsub.s32 4, %v331
    %v333 = vrot.slane %v312, %v332
    %v334 = vlaneseq
    %v335 = vshrl.u32 %v334, 7
    %v336 = vsub.s32 5, %v335
    %v337 = vrot.slane %v312, %v336
    %v338 = vlaneseq
    %v339 = vshrl.u32 %v338, 7
    %v340 = vsub.s32 6, %v339
    %v341 = vrot.slane %v312, %v340
    %v342 = vlaneseq
    %v343 = vshrl.u32 %v342, 7
    %v344 = vsub.s32 7, %v343
    %v345 = vrot.slane %v312, %v344
    %v482 = vunpack.c.l.b16 %v184
    %v483 = vunpack.c.h.b16 %v184
    %v484 = vunpack.c.l.b16 %v185
    %v485 = vunpack.c.h.b16 %v185
    %v486 = vunpack.c.l.b16 %v186
    %v487 = vunpack.c.h.b16 %v186
    %v488 = vunpack.c.l.b16 %v187
    %v489 = vunpack.c.h.b16 %v187
    %v490 = vunpack.c.l.b16 %v188
    %v491 = vunpack.c.h.b16 %v188
    %v492 = vunpack.c.l.b16 %v189
    %v493 = vunpack.c.h.b16 %v189
    %v494 = vunpack.c.l.b16 %v190
    %v495 = vunpack.c.h.b16 %v190
    %v496 = vunpack.c.l.b16 %v191
    %v497 = vunpack.c.h.b16 %v191
    %v498 = vunpack.c.l.b16 %v192
    %v499 = vunpack.c.h.b16 %v192
    %v500 = vunpack.c.l.b16 %v193
    %v501 = vunpack.c.h.b16 %v193
    %v502 = vunpack.c.l.b16 %v194
    %v503 = vunpack.c.h.b16 %v194
    %v504 = vunpack.c.l.b16 %v195
    %v505 = vunpack.c.h.b16 %v195
    %v506 = vunpack.c.l.b16 %v196
    %v507 = vunpack.c.h.b16 %v196
    %v508 = vunpack.c.l.b16 %v197
    %v509 = vunpack.c.h.b16 %v197
    %v510 = vunpack.c.l.b16 %v198
    %v511 = vunpack.c.h.b16 %v198
    %v512 = vunpack.c.l.b16 %v199
    %v513 = vunpack.c.h.b16 %v199
    %v514 = vunpack.c.l.b16 %v200
    %v515 = vunpack.c.h.b16 %v200
    %v516 = vunpack.c.l.b16 %v201
    %v517 = vunpack.c.h.b16 %v201
    %v518 = vunpack.c.l.b16 %v202
    %v519 = vunpack.c.h.b16 %v202
    %v520 = vunpack.c.l.b16 %v203
    %v521 = vunpack.c.h.b16 %v203
    %v522 = vunpack.c.l.b16 %v204
    %v523 = vunpack.c.h.b16 %v204
    %v524 = vunpack.c.l.b16 %v205
    %v525 = vunpack.c.h.b16 %v205
    %v526 = vunpack.c.l.b16 %v206
    %v527 = vunpack.c.h.b16 %v206
    %v528 = vunpack.c.l.b16 %v207
    %v529 = vunpack.c.h.b16 %v207
    %v530 = vunpack.c.l.b16 %v208
    %v531 = vunpack.c.h.b16 %v208
    %v532 = vunpack.c.l.b16 %v209
    %v533 = vunpack.c.h.b16 %v209
    %v534 = vunpack.c.l.b16 %v210
    %v535 = vunpack.c.h.b16 %v210
    %v536 = vunpack.c.l.b16 %v211
    %v537 = vunpack.c.h.b16 %v211
    %v538 = vunpack.c.l.b16 %v212
    %v539 = vunpack.c.h.b16 %v212
    %v540 = vunpack.c.l.b16 %v213
    %v541 = vunpack.c.h.b16 %v213
    %v542 = vunpack.c.l.b16 %v214
    %v543 = vunpack.c.h.b16 %v214
    %v544 = vunpack.c.l.b16 %v215
    %v545 = vunpack.c.h.b16 %v215
    %v546 = vunpack.c.l.b16 %v216
    %v547 = vunpack.c.h.b16 %v216
    %v548 = vunpack.c.l.b16 %v217
    %v549 = vunpack.c.h.b16 %v217
    %v550 = vunpack.c.l.b16 %v218
    %v551 = vunpack.c.h.b16 %v218
    %v552 = vunpack.c.l.b16 %v219
    %v553 = vunpack.c.h.b16 %v219
    %v554 = vunpack.c.l.b16 %v220
    %v555 = vunpack.c.h.b16 %v220
    %v556 = vunpack.c.l.b16 %v221
    %v557 = vunpack.c.h.b16 %v221
    %v558 = vunpack.c.l.b16 %v222
    %v559 = vunpack.c.h.b16 %v222
    %v560 = vunpack.c.l.b16 %v223
    %v561 = vunpack.c.h.b16 %v223
    %v562 = vunpack.c.l.b16 %v224
    %v563 = vunpack.c.h.b16 %v224
    %v564 = vunpack.c.l.b16 %v225
    %v565 = vunpack.c.h.b16 %v225
    %v566 = vunpack.c.l.b16 %v226
    %v567 = vunpack.c.h.b16 %v226
    %v568 = vunpack.c.l.b16 %v227
    %v569 = vunpack.c.h.b16 %v227
    %v570 = vunpack.c.l.b16 %v228
    %v571 = vunpack.c.h.b16 %v228
    %v572 = vunpack.c.l.b16 %v229
    %v573 = vunpack.c.h.b16 %v229
    %v574 = vunpack.c.l.b16 %v230
    %v575 = vunpack.c.h.b16 %v230
    %v576 = vunpack.c.l.b16 %v231
    %v577 = vunpack.c.h.b16 %v231
    %v578 = vunpack.c.l.b16 %v232
    %v579 = vunpack.c.h.b16 %v232
    %v580 = vunpack.c.l.b16 %v233
    %v581 = vunpack.c.h.b16 %v233
    %v582 = vunpack.c.l.b16 %v234
    %v583 = vunpack.c.h.b16 %v234
    %v584 = vunpack.c.l.b16 %v235
    %v585 = vunpack.c.h.b16 %v235
    %v586 = vunpack.c.l.b16 %v236
    %v587 = vunpack.c.h.b16 %v236
    %v588 = vunpack.c.l.b16 %v237
    %v589 = vunpack.c.h.b16 %v237
    %v590 = vunpack.c.l.b16 %v238
    %v591 = vunpack.c.h.b16 %v238
    %v592 = vunpack.c.l.b16 %v239
    %v593 = vunpack.c.h.b16 %v239
    %v594 = vunpack.c.l.b16 %v240
    %v595 = vunpack.c.h.b16 %v240
    %v596 = vunpack.c.l.b16 %v241
    %v597 = vunpack.c.h.b16 %v241
    %v598 = vunpack.c.l.b16 %v242
    %v599 = vunpack.c.h.b16 %v242
    %v600 = vunpack.c.l.b16 %v243
    %v601 = vunpack.c.h.b16 %v243
    %v602 = vunpack.c.l.b16 %v244
    %v603 = vunpack.c.h.b16 %v244
    %v604 = vunpack.c.l.b16 %v245
    %v605 = vunpack.c.h.b16 %v245
    %v606 = vunpack.c.l.b16 %v246
    %v607 = vunpack.c.h.b16 %v246
    %v608 = vunpack.c.l.b16 %v247
    %v609 = vunpack.c.h.b16 %v247
    %v610 = vunpack.c.l.b16 %v248
    %v611 = vunpack.c.h.b16 %v248
    %v612 = vunpack.c.l.b16 %v249
    %v613 = vunpack.c.h.b16 %v249
    %v614 = vunpack.c.l.b16 %v250
    %v615 = vunpack.c.h.b16 %v250
    %v616 = vunpack.c.l.b16 %v251
    %v617 = vunpack.c.h.b16 %v251
    %v618 = vunpack.c.l.b16 %v252
    %v619 = vunpack.c.h.b16 %v252
    %v620 = vunpack.c.l.b16 %v253
    %v621 = vunpack.c.h.b16 %v253
    %v622 = vunpack.c.l.b16 %v254
    %v623 = vunpack.c.h.b16 %v254
    %v624 = vunpack.c.l.b16 %v255
    %v625 = vunpack.c.h.b16 %v255
    %v626 = vunpack.c.l.b16 %v256
    %v627 = vunpack.c.h.b16 %v256
    %v628 = vunpack.c.l.b16 %v257
    %v629 = vunpack.c.h.b16 %v257
    %v630 = vunpack.c.l.b16 %v258
    %v631 = vunpack.c.h.b16 %v258
    %v632 = vunpack.c.l.b16 %v259
    %v633 = vunpack.c.h.b16 %v259
    %v634 = vunpack.c.l.b16 %v260
    %v635 = vunpack.c.h.b16 %v260
    %v636 = vunpack.c.l.b16 %v261
    %v637 = vunpack.c.h.b16 %v261
    %v638 = vunpack.c.l.b16 %v262
    %v639 = vunpack.c.h.b16 %v262
    %v640 = vunpack.c.l.b16 %v263
    %v641 = vunpack.c.h.b16 %v263
    %v642 = vunpack.c.l.b16 %v264
    %v643 = vunpack.c.h.b16 %v264
    %v644 = vunpack.c.l.b16 %v265
    %v645 = vunpack.c.h.b16 %v265
    %v646 = vunpack.c.l.b16 %v266
    %v647 = vunpack.c.h.b16 %v266
    %v648 = vunpack.c.l.b16 %v267
    %v649 = vunpack.c.h.b16 %v267
    %v650 = vunpack.c.l.b16 %v268
    %v651 = vunpack.c.h.b16 %v268
    %v652 = vunpack.c.l.b16 %v269
    %v653 = vunpack.c.h.b16 %v269
    %v654 = vunpack.c.l.b16 %v270
    %v655 = vunpack.c.h.b16 %v270
    %v656 = vunpack.c.l.b16 %v271
    %v657 = vunpack.c.h.b16 %v271
    %v658 = vunpack.c.l.b16 %v272
    %v659 = vunpack.c.h.b16 %v272
    %v660 = vunpack.c.l.b16 %v273
    %v661 = vunpack.c.h.b16 %v273
    %v662 = vunpack.c.l.b16 %v274
    %v663 = vunpack.c.h.b16 %v274
    %v664 = vunpack.c.l.b16 %v275
    %v665 = vunpack.c.h.b16 %v275
    %v666 = vunpack.c.l.b16 %v276
    %v667 = vunpack.c.h.b16 %v276
    %v668 = vunpack.c.l.b16 %v277
    %v669 = vunpack.c.h.b16 %v277
    %v670 = vunpack.c.l.b16 %v278
    %v671 = vunpack.c.h.b16 %v278
    %v672 = vunpack.c.l.b16 %v279
    %v673 = vunpack.c.h.b16 %v279
    %v674 = vunpack.c.l.b16 %v280
    %v675 = vunpack.c.h.b16 %v280
    %v676 = vunpack.c.l.b16 %v281
    %v677 = vunpack.c.h.b16 %v281
    %v678 = vunpack.c.l.b16 %v282
    %v679 = vunpack.c.h.b16 %v282
    %v680 = vunpack.c.l.b16 %v283
    %v681 = vunpack.c.h.b16 %v283
    %v682 = vunpack.c.l.b16 %v284
    %v683 = vunpack.c.h.b16 %v284
    %v684 = vunpack.c.l.b16 %v285
    %v685 = vunpack.c.h.b16 %v285
    %v686 = vunpack.c.l.b16 %v286
    %v687 = vunpack.c.h.b16 %v286
    %v688 = vunpack.c.l.b16 %v287
    %v689 = vunpack.c.h.b16 %v287
    %v690 = vunpack.c.l.b16 %v288
    %v691 = vunpack.c.h.b16 %v288
    %v692 = vunpack.c.l.b16 %v289
    %v693 = vunpack.c.h.b16 %v289
    %v694 = vunpack.c.l.b16 %v290
    %v695 = vunpack.c.h.b16 %v290
    %v696 = vunpack.c.l.b16 %v291
    %v697 = vunpack.c.h.b16 %v291
    %v698 = vunpack.c.l.b16 %v292
    %v699 = vunpack.c.h.b16 %v292
    %v700 = vunpack.c.l.b16 %v293
    %v701 = vunpack.c.h.b16 %v293
    %v702 = vunpack.c.l.b16 %v294
    %v703 = vunpack.c.h.b16 %v294
    %v704 = vunpack.c.l.b16 %v295
    %v705 = vunpack.c.h.b16 %v295
    %v706 = vunpack.c.l.b16 %v296
    %v707 = vunpack.c.h.b16 %v296
    %v708 = vunpack.c.l.b16 %v297
    %v709 = vunpack.c.h.b16 %v297
    %v710 = vunpack.c.l.b16 %v298
    %v711 = vunpack.c.h.b16 %v298
    %v712 = vunpack.c.l.b16 %v299
    %v713 = vunpack.c.h.b16 %v299
    %v714 = vunpack.c.l.b16 %v300
    %v715 = vunpack.c.h.b16 %v300
    %v716 = vunpack.c.l.b16 %v301
    %v717 = vunpack.c.h.b16 %v301
    %v718 = vunpack.c.l.b16 %v302
    %v719 = vunpack.c.h.b16 %v302
    %v720 = vunpack.c.l.b16 %v303
    %v721 = vunpack.c.h.b16 %v303
    %v722 = vunpack.c.l.b16 %v304
    %v723 = vunpack.c.h.b16 %v304
    %v724 = vunpack.c.l.b16 %v305
    %v725 = vunpack.c.h.b16 %v305
    %v726 = vunpack.c.l.b16 %v306
    %v727 = vunpack.c.h.b16 %v306
    %v728 = vunpack.c.l.b16 %v307
    %v729 = vunpack.c.h.b16 %v307
    %v730 = vunpack.c.l.b16 %v308
    %v731 = vunpack.c.h.b16 %v308
    %v732 = vunpack.c.l.b16 %v309
    %v733 = vunpack.c.h.b16 %v309
    %v734 = vunpack.c.l.b16 %v310
    %v735 = vunpack.c.h.b16 %v310
    %v736 = vunpack.c.l.b16 %v311
    %v737 = vunpack.c.h.b16 %v311
    %v738 = vpack.c.b16 %v490, %v482
    %v739 = vpack.c.b16 %v491, %v483
    %v740 = vpack.c.b16 %v492, %v484
    %v741 = vpack.c.b16 %v493, %v485
    %v742 = vpack.c.b16 %v494, %v486
    %v743 = vpack.c.b16 %v495, %v487
    %v744 = vpack.c.b16 %v496, %v488
    %v745 = vpack.c.b16 %v497, %v489
    %v746 = vpack.c.b16 %v506, %v498
    %v747 = vpack.c.b16 %v507, %v499
    %v748 = vpack.c.b16 %v508, %v500
    %v749 = vpack.c.b16 %v509, %v501
    %v750 = vpack.c.b16 %v510, %v502
    %v751 = vpack.c.b16 %v511, %v503
    %v752 = vpack.c.b16 %v512, %v504
    %v753 = vpack.c.b16 %v513, %v505
    %v754 = vpack.c.b16 %v522, %v514
    %v755 = vpack.c.b16 %v523, %v515
    %v756 = vpack.c.b16 %v524, %v516
    %v757 = vpack.c.b16 %v525, %v517
    %v758 = vpack.c.b16 %v526, %v518
    %v759 = vpack.c.b16 %v527, %v519
    %v760 = vpack.c.b16 %v528, %v520
    %v761 = vpack.c.b16 %v529, %v521
    %v762 = vpack.c.b16 %v538, %v530
    %v763 = vpack.c.b16 %v539, %v531
    %v764 = vpack.c.b16 %v540, %v532
    %v765 = vpack.c.b16 %v541, %v533
    %v766 = vpack.c.b16 %v542, %v534
    %v767 = vpack.c.b16 %v543, %v535
    %v768 = vpack.c.b16 %v544, %v536
    %v769 = vpack.c.b16 %v545, %v537
    %v770 = vpack.c.b16 %v554, %v546
    %v771 = vpack.c.b16 %v555, %v547
    %v772 = vpack.c.b16 %v556, %v548
    %v773 = vpack.c.b16 %v557, %v549
    %v774 = vpack.c.b16 %v558, %v550
    %v775 = vpack.c.b16 %v559, %v551
    %v776 = vpack.c.b16 %v560, %v552
    %v777 = vpack.c.b16 %v561, %v553
    %v778 = vpack.c.b16 %v570, %v562
    %v779 = vpack.c.b16 %v571, %v563
    %v780 = vpack.c.b16 %v572, %v564
    %v781 = vpack.c.b16 %v573, %v565
    %v782 = vpack.c.b16 %v574, %v566
    %v783 = vpack.c.b16 %v575, %v567
    %v784 = vpack.c.b16 %v576, %v568
    %v785 = vpack.c.b16 %v577, %v569
    %v786 = vpack.c.b16 %v586, %v578
    %v787 = vpack.c.b16 %v587, %v579
    %v788 = vpack.c.b16 %v588, %v580
    %v789 = vpack.c.b16 %v589, %v581
    %v790 = vpack.c.b16 %v590, %v582
    %v791 = vpack.c.b16 %v591, %v583
    %v792 = vpack.c.b16 %v592, %v584
    %v793 = vpack.c.b16 %v593, %v585
    %v794 = vpack.c.b16 %v602, %v594
    %v795 = vpack.c.b16 %v603, %v595
    %v796 = vpack.c.b16 %v604, %v596
    %v797 = vpack.c.b16 %v605, %v597
    %v798 = vpack.c.b16 %v606, %v598
    %v799 = vpack.c.b16 %v607, %v599
    %v800 = vpack.c.b16 %v608, %v600
    %v801 = vpack.c.b16 %v609, %v601
    %v802 = vpack.c.b16 %v618, %v610
    %v803 = vpack.c.b16 %v619, %v611
    %v804 = vpack.c.b16 %v620, %v612
    %v805 = vpack.c.b16 %v621, %v613
    %v806 = vpack.c.b16 %v622, %v614
    %v807 = vpack.c.b16 %v623, %v615
    %v808 = vpack.c.b16 %v624, %v616
    %v809 = vpack.c.b16 %v625, %v617
    %v810 = vpack.c.b16 %v634, %v626
    %v811 = vpack.c.b16 %v635, %v627
    %v812 = vpack.c.b16 %v636, %v628
    %v813 = vpack.c.b16 %v637, %v629
    %v814 = vpack.c.b16 %v638, %v630
    %v815 = vpack.c.b16 %v639, %v631
    %v816 = vpack.c.b16 %v640, %v632
    %v817 = vpack.c.b16 %v641, %v633
    %v818 = vpack.c.b16 %v650, %v642
    %v819 = vpack.c.b16 %v651, %v643
    %v820 = vpack.c.b16 %v652, %v644
    %v821 = vpack.c.b16 %v653, %v645
    %v822 = vpack.c.b16 %v654, %v646
    %v823 = vpack.c.b16 %v655, %v647
    %v824 = vpack.c.b16 %v656, %v648
    %v825 = vpack.c.b16 %v657, %v649
    %v826 = vpack.c.b16 %v666, %v658
    %v827 = vpack.c.b16 %v667, %v659
    %v828 = vpack.c.b16 %v668, %v660
    %v829 = vpack.c.b16 %v669, %v661
    %v830 = vpack.c.b16 %v670, %v662
    %v831 = vpack.c.b16 %v671, %v663
    %v832 = vpack.c.b16 %v672, %v664
    %v833 = vpack.c.b16 %v673, %v665
    %v834 = vpack.c.b16 %v682, %v674
    %v835 = vpack.c.b16 %v683, %v675
    %v836 = vpack.c.b16 %v684, %v676
    %v837 = vpack.c.b16 %v685, %v677
    %v838 = vpack.c.b16 %v686, %v678
    %v839 = vpack.c.b16 %v687, %v679
    %v840 = vpack.c.b16 %v688, %v680
    %v841 = vpack.c.b16 %v689, %v681
    %v842 = vpack.c.b16 %v698, %v690
    %v843 = vpack.c.b16 %v699, %v691
    %v844 = vpack.c.b16 %v700, %v692
    %v845 = vpack.c.b16 %v701, %v693
    %v846 = vpack.c.b16 %v702, %v694
    %v847 = vpack.c.b16 %v703, %v695
    %v848 = vpack.c.b16 %v704, %v696
    %v849 = vpack.c.b16 %v705, %v697
    %v850 = vpack.c.b16 %v714, %v706
    %v851 = vpack.c.b16 %v715, %v707
    %v852 = vpack.c.b16 %v716, %v708
    %v853 = vpack.c.b16 %v717, %v709
    %v854 = vpack.c.b16 %v718, %v710
    %v855 = vpack.c.b16 %v719, %v711
    %v856 = vpack.c.b16 %v720, %v712
    %v857 = vpack.c.b16 %v721, %v713
    %v858 = vpack.c.b16 %v730, %v722
    %v859 = vpack.c.b16 %v731, %v723
    %v860 = vpack.c.b16 %v732, %v724
    %v861 = vpack.c.b16 %v733, %v725
    %v862 = vpack.c.b16 %v734, %v726
    %v863 = vpack.c.b16 %v735, %v727
    %v864 = vpack.c.b16 %v736, %v728
    %v865 = vpack.c.b16 %v737, %v729
    %994 = vmatprep.subr.bf16.mxu0 %v739
    %995 = vmatpush1.bf16.msra.mxu0 %v738
    %996 = vmatprep.subr.bf16.mxu0 %v747
    %997 = vmatpush1.bf16.msra.mxu0 %v746
    %998 = vmatprep.subr.bf16.mxu0 %v755
    %999 = vmatpush1.bf16.msra.mxu0 %v754
    %1000 = vmatprep.subr.bf16.mxu0 %v763
    %1001 = vmatpush1.bf16.msra.mxu0 %v762
    %1002 = vmatprep.subr.bf16.mxu0 %v771
    %1003 = vmatpush1.bf16.msra.mxu0 %v770
    %1004 = vmatprep.subr.bf16.mxu0 %v779
    %1005 = vmatpush1.bf16.msra.mxu0 %v778
    %1006 = vmatprep.subr.bf16.mxu0 %v787
    %1007 = vmatpush1.bf16.msra.mxu0 %v786
    %1008 = vmatprep.subr.bf16.mxu0 %v795
    %1009 = vmatpush1.bf16.msra.mxu0 %v794
    %1010 = vmatprep.subr.bf16.mxu0 %v803
    %1011 = vmatpush1.bf16.msra.mxu0 %v802
    %1012 = vmatprep.subr.bf16.mxu0 %v811
    %1013 = vmatpush1.bf16.msra.mxu0 %v810
    %1014 = vmatprep.subr.bf16.mxu0 %v819
    %1015 = vmatpush1.bf16.msra.mxu0 %v818
    %1016 = vmatprep.subr.bf16.mxu0 %v827
    %1017 = vmatpush1.bf16.msra.mxu0 %v826
    %1018 = vmatprep.subr.bf16.mxu0 %v835
    %1019 = vmatpush1.bf16.msra.mxu0 %v834
    %1020 = vmatprep.subr.bf16.mxu0 %v843
    %1021 = vmatpush1.bf16.msra.mxu0 %v842
    %1022 = vmatprep.subr.bf16.mxu0 %v851
    %1023 = vmatpush1.bf16.msra.mxu0 %v850
    %1024 = vmatprep.subr.bf16.mxu0 %v859
    %1025 = vmatpush1.bf16.msra.mxu0 %v858
    %1026 = vmatprep.mubr.bf16.mxu0 %v183
    %1027 = vmatmul.mubr.bf16.gmra.mrb[0].mxu0 %v182
    %v1028 = vpop.f32.mrb[0].mxu0
    %v1029 = vadd.f32 %v317, %v1028
    %v1030 = vpop.f32.mrb[0].mxu0
    %v1031 = vadd.f32 %v321, %v1030
    %v1032 = vpop.f32.mrb[0].mxu0
    %v1033 = vpop.f32.mrb[0].mxu0
    %1034 = vdwg.mxu0
    %1035 = vmatprep.subr.bf16.mxu0 %v741
    %1036 = vmatpush1.bf16.msra.mxu0 %v740
    %1037 = vmatprep.subr.bf16.mxu0 %v749
    %1038 = vmatpush1.bf16.msra.mxu0 %v748
    %1039 = vmatprep.subr.bf16.mxu0 %v757
    %1040 = vmatpush1.bf16.msra.mxu0 %v756
    %1041 = vmatprep.subr.bf16.mxu0 %v765
    %1042 = vmatpush1.bf16.msra.mxu0 %v764
    %1043 = vmatprep.subr.bf16.mxu0 %v773
    %1044 = vmatpush1.bf16.msra.mxu0 %v772
    %1045 = vmatprep.subr.bf16.mxu0 %v781
    %1046 = vmatpush1.bf16.msra.mxu0 %v780
    %1047 = vmatprep.subr.bf16.mxu0 %v789
    %1048 = vmatpush1.bf16.msra.mxu0 %v788
    %1049 = vmatprep.subr.bf16.mxu0 %v797
    %1050 = vmatpush1.bf16.msra.mxu0 %v796
    %1051 = vmatprep.subr.bf16.mxu0 %v805
    %1052 = vmatpush1.bf16.msra.mxu0 %v804
    %1053 = vmatprep.subr.bf16.mxu0 %v813
    %1054 = vmatpush1.bf16.msra.mxu0 %v812
    %1055 = vmatprep.subr.bf16.mxu0 %v821
    %1056 = vmatpush1.bf16.msra.mxu0 %v820
    %1057 = vmatprep.subr.bf16.mxu0 %v829
    %1058 = vmatpush1.bf16.msra.mxu0 %v828
    %1059 = vmatprep.subr.bf16.mxu0 %v837
    %1060 = vmatpush1.bf16.msra.mxu0 %v836
    %1061 = vmatprep.subr.bf16.mxu0 %v845
    %1062 = vmatpush1.bf16.msra.mxu0 %v844
    %1063 = vmatprep.subr.bf16.mxu0 %v853
    %1064 = vmatpush1.bf16.msra.mxu0 %v852
    %1065 = vmatprep.subr.bf16.mxu0 %v861
    %1066 = vmatpush1.bf16.msra.mxu0 %v860
    %1067 = vmatprep.mubr.bf16.mxu0 %v183
    %1068 = vmatmul.mubr.bf16.gmra.mrb[0].mxu0 %v182
    %v1069 = vpop.f32.mrb[0].mxu0
    %v1070 = vadd.f32 %v325, %v1069
    %v1071 = vpop.f32.mrb[0].mxu0
    %v1072 = vadd.f32 %v329, %v1071
    %v1073 = vpop.f32.mrb[0].mxu0
    %v1074 = vpop.f32.mrb[0].mxu0
    %1075 = vdwg.mxu0
    %1076 = vmatprep.subr.bf16.mxu0 %v743
    %1077 = vmatpush1.bf16.msra.mxu0 %v742
    %1078 = vmatprep.subr.bf16.mxu0 %v751
    %1079 = vmatpush1.bf16.msra.mxu0 %v750
    %1080 = vmatprep.subr.bf16.mxu0 %v759
    %1081 = vmatpush1.bf16.msra.mxu0 %v758
    %1082 = vmatprep.subr.bf16.mxu0 %v767
    %1083 = vmatpush1.bf16.msra.mxu0 %v766
    %1084 = vmatprep.subr.bf16.mxu0 %v775
    %1085 = vmatpush1.bf16.msra.mxu0 %v774
    %1086 = vmatprep.subr.bf16.mxu0 %v783
    %1087 = vmatpush1.bf16.msra.mxu0 %v782
    %1088 = vmatprep.subr.bf16.mxu0 %v791
    %1089 = vmatpush1.bf16.msra.mxu0 %v790
    %1090 = vmatprep.subr.bf16.mxu0 %v799
    %1091 = vmatpush1.bf16.msra.mxu0 %v798
    %1092 = vmatprep.subr.bf16.mxu0 %v807
    %1093 = vmatpush1.bf16.msra.mxu0 %v806
    %1094 = vmatprep.subr.bf16.mxu0 %v815
    %1095 = vmatpush1.bf16.msra.mxu0 %v814
    %1096 = vmatprep.subr.bf16.mxu0 %v823
    %1097 = vmatpush1.bf16.msra.mxu0 %v822
    %1098 = vmatprep.subr.bf16.mxu0 %v831
    %1099 = vmatpush1.bf16.msra.mxu0 %v830
    %1100 = vmatprep.subr.bf16.mxu0 %v839
    %1101 = vmatpush1.bf16.msra.mxu0 %v838
    %1102 = vmatprep.subr.bf16.mxu0 %v847
    %1103 = vmatpush1.bf16.msra.mxu0 %v846
    %1104 = vmatprep.subr.bf16.mxu0 %v855
    %1105 = vmatpush1.bf16.msra.mxu0 %v854
    %1106 = vmatprep.subr.bf16.mxu0 %v863
    %1107 = vmatpush1.bf16.msra.mxu0 %v862
    %1108 = vmatprep.mubr.bf16.mxu0 %v183
    %1109 = vmatmul.mubr.bf16.gmra.mrb[0].mxu0 %v182
    %v1110 = vpop.f32.mrb[0].mxu0
    %v1111 = vadd.f32 %v333, %v1110
    %v1112 = vpop.f32.mrb[0].mxu0
    %v1113 = vadd.f32 %v337, %v1112
    %v1114 = vpop.f32.mrb[0].mxu0
    %v1115 = vpop.f32.mrb[0].mxu0
    %1116 = vdwg.mxu0
    %1117 = vmatprep.subr.bf16.mxu0 %v745
    %1118 = vmatpush1.bf16.msra.mxu0 %v744
    %1119 = vmatprep.subr.bf16.mxu0 %v753
    %1120 = vmatpush1.bf16.msra.mxu0 %v752
    %1121 = vmatprep.subr.bf16.mxu0 %v761
    %1122 = vmatpush1.bf16.msra.mxu0 %v760
    %1123 = vmatprep.subr.bf16.mxu0 %v769
    %1124 = vmatpush1.bf16.msra.mxu0 %v768
    %1125 = vmatprep.subr.bf16.mxu0 %v777
    %1126 = vmatpush1.bf16.msra.mxu0 %v776
    %1127 = vmatprep.subr.bf16.mxu0 %v785
    %1128 = vmatpush1.bf16.msra.mxu0 %v784
    %1129 = vmatprep.subr.bf16.mxu0 %v793
    %1130 = vmatpush1.bf16.msra.mxu0 %v792
    %1131 = vmatprep.subr.bf16.mxu0 %v801
    %1132 = vmatpush1.bf16.msra.mxu0 %v800
    %1133 = vmatprep.subr.bf16.mxu0 %v809
    %1134 = vmatpush1.bf16.msra.mxu0 %v808
    %1135 = vmatprep.subr.bf16.mxu0 %v817
    %1136 = vmatpush1.bf16.msra.mxu0 %v816
    %1137 = vmatprep.subr.bf16.mxu0 %v825
    %1138 = vmatpush1.bf16.msra.mxu0 %v824
    %1139 = vmatprep.subr.bf16.mxu0 %v833
    %1140 = vmatpush1.bf16.msra.mxu0 %v832
    %1141 = vmatprep.subr.bf16.mxu0 %v841
    %1142 = vmatpush1.bf16.msra.mxu0 %v840
    %1143 = vmatprep.subr.bf16.mxu0 %v849
    %1144 = vmatpush1.bf16.msra.mxu0 %v848
    %1145 = vmatprep.subr.bf16.mxu0 %v857
    %1146 = vmatpush1.bf16.msra.mxu0 %v856
    %1147 = vmatprep.subr.bf16.mxu0 %v865
    %1148 = vmatpush1.bf16.msra.mxu0 %v864
    %1149 = vmatprep.mubr.bf16.mxu0 %v183
    %1150 = vmatmul.mubr.bf16.gmra.mrb[0].mxu0 %v182
    %v1151 = vpop.f32.mrb[0].mxu0
    %v1152 = vadd.f32 %v341, %v1151
    %v1153 = vpop.f32.mrb[0].mxu0
    %v1154 = vadd.f32 %v345, %v1153
    %v1155 = vpop.f32.mrb[0].mxu0
    %v1156 = vpop.f32.mrb[0].mxu0
    %1157 = vdwg.mxu0
    %v1158 = vmax.f32 %v1029, 0.0
    %v1159 = vmax.f32 %v1031, 0.0
    %v1160 = vmax.f32 %v1070, 0.0
    %v1161 = vmax.f32 %v1072, 0.0
    %v1162 = vmax.f32 %v1111, 0.0
    %v1163 = vmax.f32 %v1113, 0.0
    %v1164 = vmax.f32 %v1152, 0.0
    %v1165 = vmax.f32 %v1154, 0.0
    %v1166 = vpack.c.bf16 %v1158, %v1158
    %v1167 = vpack.c.bf16 %v1159, %v1159
    %v1168 = vpack.c.bf16 %v1160, %v1160
    %v1169 = vpack.c.bf16 %v1161, %v1161
    %v1170 = vpack.c.bf16 %v1162, %v1162
    %v1171 = vpack.c.bf16 %v1163, %v1163
    %v1172 = vpack.c.bf16 %v1164, %v1164
    %v1173 = vpack.c.bf16 %v1165, %v1165
    %v1174 = vld [vmem:[#allocation6] sm:$0xff]
    %v1175 = vld [vmem:[#allocation6 + $0x8] sm:$0xff]
    %v1176 = vld [vmem:[#allocation6 + $0x10] sm:$0xff]
    %v1177 = vld [vmem:[#allocation6 + $0x18] sm:$0xff]
    %v1178 = vld [vmem:[#allocation6 + $0x20] sm:$0xff]
    %v1179 = vld [vmem:[#allocation6 + $0x28] sm:$0xff]
    %v1180 = vld [vmem:[#allocation6 + $0x30] sm:$0xff]
    %v1181 = vld [vmem:[#allocation6 + $0x38] sm:$0xff]
    %v1182 = vld [vmem:[#allocation6 + $0x40] sm:$0xff]
    %v1183 = vld [vmem:[#allocation6 + $0x48] sm:$0xff]
    %v1184 = vld [vmem:[#allocation6 + $0x50] sm:$0xff]
    %v1185 = vld [vmem:[#allocation6 + $0x58] sm:$0xff]
    %v1186 = vld [vmem:[#allocation6 + $0x60] sm:$0xff]
    %v1187 = vld [vmem:[#allocation6 + $0x68] sm:$0xff]
    %v1188 = vld [vmem:[#allocation6 + $0x70] sm:$0xff]
    %v1189 = vld [vmem:[#allocation6 + $0x78] sm:$0xff]
    %v1190 = vld [vmem:[#allocation6 + $0x80] sm:$0xff]
    %v1191 = vld [vmem:[#allocation6 + $0x88] sm:$0xff]
    %v1192 = vld [vmem:[#allocation6 + $0x90] sm:$0xff]
    %v1193 = vld [vmem:[#allocation6 + $0x98] sm:$0xff]
    %v1194 = vld [vmem:[#allocation6 + $0xa0] sm:$0xff]
    %v1195 = vld [vmem:[#allocation6 + $0xa8] sm:$0xff]
    %v1196 = vld [vmem:[#allocation6 + $0xb0] sm:$0xff]
    %v1197 = vld [vmem:[#allocation6 + $0xb8] sm:$0xff]
    %v1198 = vld [vmem:[#allocation6 + $0xc0] sm:$0xff]
    %v1199 = vld [vmem:[#allocation6 + $0xc8] sm:$0xff]
    %v1200 = vld [vmem:[#allocation6 + $0xd0] sm:$0xff]
    %v1201 = vld [vmem:[#allocation6 + $0xd8] sm:$0xff]
    %v1202 = vld [vmem:[#allocation6 + $0xe0] sm:$0xff]
    %v1203 = vld [vmem:[#allocation6 + $0xe8] sm:$0xff]
    %v1204 = vld [vmem:[#allocation6 + $0xf0] sm:$0xff]
    %v1205 = vld [vmem:[#allocation6 + $0xf8] sm:$0xff]
    %v1206 = vld [vmem:[#allocation6 + $0x100] sm:$0xff]
    %v1207 = vld [vmem:[#allocation6 + $0x108] sm:$0xff]
    %v1208 = vld [vmem:[#allocation6 + $0x110] sm:$0xff]
    %v1209 = vld [vmem:[#allocation6 + $0x118] sm:$0xff]
    %v1210 = vld [vmem:[#allocation6 + $0x120] sm:$0xff]
    %v1211 = vld [vmem:[#allocation6 + $0x128] sm:$0xff]
    %v1212 = vld [vmem:[#allocation6 + $0x130] sm:$0xff]
    %v1213 = vld [vmem:[#allocation6 + $0x138] sm:$0xff]
    %v1214 = vld [vmem:[#allocation6 + $0x140] sm:$0xff]
    %v1215 = vld [vmem:[#allocation6 + $0x148] sm:$0xff]
    %v1216 = vld [vmem:[#allocation6 + $0x150] sm:$0xff]
    %v1217 = vld [vmem:[#allocation6 + $0x158] sm:$0xff]
    %v1218 = vld [vmem:[#allocation6 + $0x160] sm:$0xff]
    %v1219 = vld [vmem:[#allocation6 + $0x168] sm:$0xff]
    %v1220 = vld [vmem:[#allocation6 + $0x170] sm:$0xff]
    %v1221 = vld [vmem:[#allocation6 + $0x178] sm:$0xff]
    %v1222 = vld [vmem:[#allocation6 + $0x180] sm:$0xff]
    %v1223 = vld [vmem:[#allocation6 + $0x188] sm:$0xff]
    %v1224 = vld [vmem:[#allocation6 + $0x190] sm:$0xff]
    %v1225 = vld [vmem:[#allocation6 + $0x198] sm:$0xff]
    %v1226 = vld [vmem:[#allocation6 + $0x1a0] sm:$0xff]
    %v1227 = vld [vmem:[#allocation6 + $0x1a8] sm:$0xff]
    %v1228 = vld [vmem:[#allocation6 + $0x1b0] sm:$0xff]
    %v1229 = vld [vmem:[#allocation6 + $0x1b8] sm:$0xff]
    %v1230 = vld [vmem:[#allocation6 + $0x1c0] sm:$0xff]
    %v1231 = vld [vmem:[#allocation6 + $0x1c8] sm:$0xff]
    %v1232 = vld [vmem:[#allocation6 + $0x1d0] sm:$0xff]
    %v1233 = vld [vmem:[#allocation6 + $0x1d8] sm:$0xff]
    %v1234 = vld [vmem:[#allocation6 + $0x1e0] sm:$0xff]
    %v1235 = vld [vmem:[#allocation6 + $0x1e8] sm:$0xff]
    %v1236 = vld [vmem:[#allocation6 + $0x1f0] sm:$0xff]
    %v1237 = vld [vmem:[#allocation6 + $0x1f8] sm:$0xff]
    %v1238 = vld [vmem:[#allocation6 + $0x200] sm:$0xff]
    %v1239 = vld [vmem:[#allocation6 + $0x208] sm:$0xff]
    %v1240 = vld [vmem:[#allocation6 + $0x210] sm:$0xff]
    %v1241 = vld [vmem:[#allocation6 + $0x218] sm:$0xff]
    %v1242 = vld [vmem:[#allocation6 + $0x220] sm:$0xff]
    %v1243 = vld [vmem:[#allocation6 + $0x228] sm:$0xff]
    %v1244 = vld [vmem:[#allocation6 + $0x230] sm:$0xff]
    %v1245 = vld [vmem:[#allocation6 + $0x238] sm:$0xff]
    %v1246 = vld [vmem:[#allocation6 + $0x240] sm:$0xff]
    %v1247 = vld [vmem:[#allocation6 + $0x248] sm:$0xff]
    %v1248 = vld [vmem:[#allocation6 + $0x250] sm:$0xff]
    %v1249 = vld [vmem:[#allocation6 + $0x258] sm:$0xff]
    %v1250 = vld [vmem:[#allocation6 + $0x260] sm:$0xff]
    %v1251 = vld [vmem:[#allocation6 + $0x268] sm:$0xff]
    %v1252 = vld [vmem:[#allocation6 + $0x270] sm:$0xff]
    %v1253 = vld [vmem:[#allocation6 + $0x278] sm:$0xff]
    %v1254 = vld [vmem:[#allocation6 + $0x280] sm:$0xff]
    %v1255 = vld [vmem:[#allocation6 + $0x288] sm:$0xff]
    %v1256 = vld [vmem:[#allocation6 + $0x290] sm:$0xff]
    %v1257 = vld [vmem:[#allocation6 + $0x298] sm:$0xff]
    %v1258 = vld [vmem:[#allocation6 + $0x2a0] sm:$0xff]
    %v1259 = vld [vmem:[#allocation6 + $0x2a8] sm:$0xff]
    %v1260 = vld [vmem:[#allocation6 + $0x2b0] sm:$0xff]
    %v1261 = vld [vmem:[#allocation6 + $0x2b8] sm:$0xff]
    %v1262 = vld [vmem:[#allocation6 + $0x2c0] sm:$0xff]
    %v1263 = vld [vmem:[#allocation6 + $0x2c8] sm:$0xff]
    %v1264 = vld [vmem:[#allocation6 + $0x2d0] sm:$0xff]
    %v1265 = vld [vmem:[#allocation6 + $0x2d8] sm:$0xff]
    %v1266 = vld [vmem:[#allocation6 + $0x2e0] sm:$0xff]
    %v1267 = vld [vmem:[#allocation6 + $0x2e8] sm:$0xff]
    %v1268 = vld [vmem:[#allocation6 + $0x2f0] sm:$0xff]
    %v1269 = vld [vmem:[#allocation6 + $0x2f8] sm:$0xff]
    %v1270 = vld [vmem:[#allocation6 + $0x300] sm:$0xff]
    %v1271 = vld [vmem:[#allocation6 + $0x308] sm:$0xff]
    %v1272 = vld [vmem:[#allocation6 + $0x310] sm:$0xff]
    %v1273 = vld [vmem:[#allocation6 + $0x318] sm:$0xff]
    %v1274 = vld [vmem:[#allocation6 + $0x320] sm:$0xff]
    %v1275 = vld [vmem:[#allocation6 + $0x328] sm:$0xff]
    %v1276 = vld [vmem:[#allocation6 + $0x330] sm:$0xff]
    %v1277 = vld [vmem:[#allocation6 + $0x338] sm:$0xff]
    %v1278 = vld [vmem:[#allocation6 + $0x340] sm:$0xff]
    %v1279 = vld [vmem:[#allocation6 + $0x348] sm:$0xff]
    %v1280 = vld [vmem:[#allocation6 + $0x350] sm:$0xff]
    %v1281 = vld [vmem:[#allocation6 + $0x358] sm:$0xff]
    %v1282 = vld [vmem:[#allocation6 + $0x360] sm:$0xff]
    %v1283 = vld [vmem:[#allocation6 + $0x368] sm:$0xff]
    %v1284 = vld [vmem:[#allocation6 + $0x370] sm:$0xff]
    %v1285 = vld [vmem:[#allocation6 + $0x378] sm:$0xff]
    %v1286 = vld [vmem:[#allocation6 + $0x380] sm:$0xff]
    %v1287 = vld [vmem:[#allocation6 + $0x388] sm:$0xff]
    %v1288 = vld [vmem:[#allocation6 + $0x390] sm:$0xff]
    %v1289 = vld [vmem:[#allocation6 + $0x398] sm:$0xff]
    %v1290 = vld [vmem:[#allocation6 + $0x3a0] sm:$0xff]
    %v1291 = vld [vmem:[#allocation6 + $0x3a8] sm:$0xff]
    %v1292 = vld [vmem:[#allocation6 + $0x3b0] sm:$0xff]
    %v1293 = vld [vmem:[#allocation6 + $0x3b8] sm:$0xff]
    %v1294 = vld [vmem:[#allocation6 + $0x3c0] sm:$0xff]
    %v1295 = vld [vmem:[#allocation6 + $0x3c8] sm:$0xff]
    %v1296 = vld [vmem:[#allocation6 + $0x3d0] sm:$0xff]
    %v1297 = vld [vmem:[#allocation6 + $0x3d8] sm:$0xff]
    %v1298 = vld [vmem:[#allocation6 + $0x3e0] sm:$0xff]
    %v1299 = vld [vmem:[#allocation6 + $0x3e8] sm:$0xff]
    %v1300 = vld [vmem:[#allocation6 + $0x3f0] sm:$0xff]
    %v1301 = vld [vmem:[#allocation6 + $0x3f8] sm:$0xff]
    %v1302 = vld [vmem:[#allocation6 + $0x400] sm:$0xff]
    %v1303 = vld [vmem:[#allocation6 + $0x408] sm:$0xff]
    %v1304 = vld [vmem:[#allocation6 + $0x410] sm:$0xff]
    %v1305 = vld [vmem:[#allocation6 + $0x418] sm:$0xff]
    %v1306 = vld [vmem:[#allocation6 + $0x420] sm:$0xff]
    %v1307 = vld [vmem:[#allocation6 + $0x428] sm:$0xff]
    %v1308 = vld [vmem:[#allocation6 + $0x430] sm:$0xff]
    %v1309 = vld [vmem:[#allocation6 + $0x438] sm:$0xff]
    %v1310 = vld [vmem:[#allocation6 + $0x440] sm:$0xff]
    %v1311 = vld [vmem:[#allocation6 + $0x448] sm:$0xff]
    %v1312 = vld [vmem:[#allocation6 + $0x450] sm:$0xff]
    %v1313 = vld [vmem:[#allocation6 + $0x458] sm:$0xff]
    %v1314 = vld [vmem:[#allocation6 + $0x460] sm:$0xff]
    %v1315 = vld [vmem:[#allocation6 + $0x468] sm:$0xff]
    %v1316 = vld [vmem:[#allocation6 + $0x470] sm:$0xff]
    %v1317 = vld [vmem:[#allocation6 + $0x478] sm:$0xff]
    %v1318 = vld [vmem:[#allocation6 + $0x480] sm:$0xff]
    %v1319 = vld [vmem:[#allocation6 + $0x488] sm:$0xff]
    %v1320 = vld [vmem:[#allocation6 + $0x490] sm:$0xff]
    %v1321 = vld [vmem:[#allocation6 + $0x498] sm:$0xff]
    %v1322 = vld [vmem:[#allocation6 + $0x4a0] sm:$0xff]
    %v1323 = vld [vmem:[#allocation6 + $0x4a8] sm:$0xff]
    %v1324 = vld [vmem:[#allocation6 + $0x4b0] sm:$0xff]
    %v1325 = vld [vmem:[#allocation6 + $0x4b8] sm:$0xff]
    %v1326 = vld [vmem:[#allocation6 + $0x4c0] sm:$0xff]
    %v1327 = vld [vmem:[#allocation6 + $0x4c8] sm:$0xff]
    %v1328 = vld [vmem:[#allocation6 + $0x4d0] sm:$0xff]
    %v1329 = vld [vmem:[#allocation6 + $0x4d8] sm:$0xff]
    %v1330 = vld [vmem:[#allocation6 + $0x4e0] sm:$0xff]
    %v1331 = vld [vmem:[#allocation6 + $0x4e8] sm:$0xff]
    %v1332 = vld [vmem:[#allocation6 + $0x4f0] sm:$0xff]
    %v1333 = vld [vmem:[#allocation6 + $0x4f8] sm:$0xff]
    %v1334 = vld [vmem:[#allocation6 + $0x500] sm:$0xff]
    %v1335 = vld [vmem:[#allocation6 + $0x508] sm:$0xff]
    %v1336 = vld [vmem:[#allocation6 + $0x510] sm:$0xff]
    %v1337 = vld [vmem:[#allocation6 + $0x518] sm:$0xff]
    %v1338 = vld [vmem:[#allocation6 + $0x520] sm:$0xff]
    %v1339 = vld [vmem:[#allocation6 + $0x528] sm:$0xff]
    %v1340 = vld [vmem:[#allocation6 + $0x530] sm:$0xff]
    %v1341 = vld [vmem:[#allocation6 + $0x538] sm:$0xff]
    %v1342 = vld [vmem:[#allocation6 + $0x540] sm:$0xff]
    %v1343 = vld [vmem:[#allocation6 + $0x548] sm:$0xff]
    %v1344 = vld [vmem:[#allocation6 + $0x550] sm:$0xff]
    %v1345 = vld [vmem:[#allocation6 + $0x558] sm:$0xff]
    %v1346 = vld [vmem:[#allocation6 + $0x560] sm:$0xff]
    %v1347 = vld [vmem:[#allocation6 + $0x568] sm:$0xff]
    %v1348 = vld [vmem:[#allocation6 + $0x570] sm:$0xff]
    %v1349 = vld [vmem:[#allocation6 + $0x578] sm:$0xff]
    %v1350 = vld [vmem:[#allocation6 + $0x580] sm:$0xff]
    %v1351 = vld [vmem:[#allocation6 + $0x588] sm:$0xff]
    %v1352 = vld [vmem:[#allocation6 + $0x590] sm:$0xff]
    %v1353 = vld [vmem:[#allocation6 + $0x598] sm:$0xff]
    %v1354 = vld [vmem:[#allocation6 + $0x5a0] sm:$0xff]
    %v1355 = vld [vmem:[#allocation6 + $0x5a8] sm:$0xff]
    %v1356 = vld [vmem:[#allocation6 + $0x5b0] sm:$0xff]
    %v1357 = vld [vmem:[#allocation6 + $0x5b8] sm:$0xff]
    %v1358 = vld [vmem:[#allocation6 + $0x5c0] sm:$0xff]
    %v1359 = vld [vmem:[#allocation6 + $0x5c8] sm:$0xff]
    %v1360 = vld [vmem:[#allocation6 + $0x5d0] sm:$0xff]
    %v1361 = vld [vmem:[#allocation6 + $0x5d8] sm:$0xff]
    %v1362 = vld [vmem:[#allocation6 + $0x5e0] sm:$0xff]
    %v1363 = vld [vmem:[#allocation6 + $0x5e8] sm:$0xff]
    %v1364 = vld [vmem:[#allocation6 + $0x5f0] sm:$0xff]
    %v1365 = vld [vmem:[#allocation6 + $0x5f8] sm:$0xff]
    %v1366 = vld [vmem:[#allocation6 + $0x600] sm:$0xff]
    %v1367 = vld [vmem:[#allocation6 + $0x608] sm:$0xff]
    %v1368 = vld [vmem:[#allocation6 + $0x610] sm:$0xff]
    %v1369 = vld [vmem:[#allocation6 + $0x618] sm:$0xff]
    %v1370 = vld [vmem:[#allocation6 + $0x620] sm:$0xff]
    %v1371 = vld [vmem:[#allocation6 + $0x628] sm:$0xff]
    %v1372 = vld [vmem:[#allocation6 + $0x630] sm:$0xff]
    %v1373 = vld [vmem:[#allocation6 + $0x638] sm:$0xff]
    %v1374 = vld [vmem:[#allocation6 + $0x640] sm:$0xff]
    %v1375 = vld [vmem:[#allocation6 + $0x648] sm:$0xff]
    %v1376 = vld [vmem:[#allocation6 + $0x650] sm:$0xff]
    %v1377 = vld [vmem:[#allocation6 + $0x658] sm:$0xff]
    %v1378 = vld [vmem:[#allocation6 + $0x660] sm:$0xff]
    %v1379 = vld [vmem:[#allocation6 + $0x668] sm:$0xff]
    %v1380 = vld [vmem:[#allocation6 + $0x670] sm:$0xff]
    %v1381 = vld [vmem:[#allocation6 + $0x678] sm:$0xff]
    %v1382 = vld [vmem:[#allocation6 + $0x680] sm:$0xff]
    %v1383 = vld [vmem:[#allocation6 + $0x688] sm:$0xff]
    %v1384 = vld [vmem:[#allocation6 + $0x690] sm:$0xff]
    %v1385 = vld [vmem:[#allocation6 + $0x698] sm:$0xff]
    %v1386 = vld [vmem:[#allocation6 + $0x6a0] sm:$0xff]
    %v1387 = vld [vmem:[#allocation6 + $0x6a8] sm:$0xff]
    %v1388 = vld [vmem:[#allocation6 + $0x6b0] sm:$0xff]
    %v1389 = vld [vmem:[#allocation6 + $0x6b8] sm:$0xff]
    %v1390 = vld [vmem:[#allocation6 + $0x6c0] sm:$0xff]
    %v1391 = vld [vmem:[#allocation6 + $0x6c8] sm:$0xff]
    %v1392 = vld [vmem:[#allocation6 + $0x6d0] sm:$0xff]
    %v1393 = vld [vmem:[#allocation6 + $0x6d8] sm:$0xff]
    %v1394 = vld [vmem:[#allocation6 + $0x6e0] sm:$0xff]
    %v1395 = vld [vmem:[#allocation6 + $0x6e8] sm:$0xff]
    %v1396 = vld [vmem:[#allocation6 + $0x6f0] sm:$0xff]
    %v1397 = vld [vmem:[#allocation6 + $0x6f8] sm:$0xff]
    %v1398 = vld [vmem:[#allocation6 + $0x700] sm:$0xff]
    %v1399 = vld [vmem:[#allocation6 + $0x708] sm:$0xff]
    %v1400 = vld [vmem:[#allocation6 + $0x710] sm:$0xff]
    %v1401 = vld [vmem:[#allocation6 + $0x718] sm:$0xff]
    %v1402 = vld [vmem:[#allocation6 + $0x720] sm:$0xff]
    %v1403 = vld [vmem:[#allocation6 + $0x728] sm:$0xff]
    %v1404 = vld [vmem:[#allocation6 + $0x730] sm:$0xff]
    %v1405 = vld [vmem:[#allocation6 + $0x738] sm:$0xff]
    %v1406 = vld [vmem:[#allocation6 + $0x740] sm:$0xff]
    %v1407 = vld [vmem:[#allocation6 + $0x748] sm:$0xff]
    %v1408 = vld [vmem:[#allocation6 + $0x750] sm:$0xff]
    %v1409 = vld [vmem:[#allocation6 + $0x758] sm:$0xff]
    %v1410 = vld [vmem:[#allocation6 + $0x760] sm:$0xff]
    %v1411 = vld [vmem:[#allocation6 + $0x768] sm:$0xff]
    %v1412 = vld [vmem:[#allocation6 + $0x770] sm:$0xff]
    %v1413 = vld [vmem:[#allocation6 + $0x778] sm:$0xff]
    %v1414 = vld [vmem:[#allocation6 + $0x780] sm:$0xff]
    %v1415 = vld [vmem:[#allocation6 + $0x788] sm:$0xff]
    %v1416 = vld [vmem:[#allocation6 + $0x790] sm:$0xff]
    %v1417 = vld [vmem:[#allocation6 + $0x798] sm:$0xff]
    %v1418 = vld [vmem:[#allocation6 + $0x7a0] sm:$0xff]
    %v1419 = vld [vmem:[#allocation6 + $0x7a8] sm:$0xff]
    %v1420 = vld [vmem:[#allocation6 + $0x7b0] sm:$0xff]
    %v1421 = vld [vmem:[#allocation6 + $0x7b8] sm:$0xff]
    %v1422 = vld [vmem:[#allocation6 + $0x7c0] sm:$0xff]
    %v1423 = vld [vmem:[#allocation6 + $0x7c8] sm:$0xff]
    %v1424 = vld [vmem:[#allocation6 + $0x7d0] sm:$0xff]
    %v1425 = vld [vmem:[#allocation6 + $0x7d8] sm:$0xff]
    %v1426 = vld [vmem:[#allocation6 + $0x7e0] sm:$0xff]
    %v1427 = vld [vmem:[#allocation6 + $0x7e8] sm:$0xff]
    %v1428 = vld [vmem:[#allocation6 + $0x7f0] sm:$0xff]
    %v1429 = vld [vmem:[#allocation6 + $0x7f8] sm:$0xff]
    %v1430 = vld [vmem:[%s4] sm:$0xf]
    %v1432 = vlaneseq
    %v1433 = vshrl.u32 %v1432, 7
    %v1434 = vsub.s32 0, %v1433
    %v1435 = vrot.slane %v1430, %v1434
    %v1436 = vlaneseq
    %v1437 = vshrl.u32 %v1436, 7
    %v1438 = vsub.s32 1, %v1437
    %v1439 = vrot.slane %v1430, %v1438
    %v1440 = vlaneseq
    %v1441 = vshrl.u32 %v1440, 7
    %v1442 = vsub.s32 2, %v1441
    %v1443 = vrot.slane %v1430, %v1442
    %v1444 = vlaneseq
    %v1445 = vshrl.u32 %v1444, 7
    %v1446 = vsub.s32 3, %v1445
    %v1447 = vrot.slane %v1430, %v1446
    %v1708 = vunpack.c.l.b16 %v1174
    %v1709 = vunpack.c.h.b16 %v1174
    %v1710 = vunpack.c.l.b16 %v1175
    %v1711 = vunpack.c.h.b16 %v1175
    %v1712 = vunpack.c.l.b16 %v1176
    %v1713 = vunpack.c.h.b16 %v1176
    %v1714 = vunpack.c.l.b16 %v1177
    %v1715 = vunpack.c.h.b16 %v1177
    %v1716 = vunpack.c.l.b16 %v1178
    %v1717 = vunpack.c.h.b16 %v1178
    %v1718 = vunpack.c.l.b16 %v1179
    %v1719 = vunpack.c.h.b16 %v1179
    %v1720 = vunpack.c.l.b16 %v1180
    %v1721 = vunpack.c.h.b16 %v1180
    %v1722 = vunpack.c.l.b16 %v1181
    %v1723 = vunpack.c.h.b16 %v1181
    %v1724 = vunpack.c.l.b16 %v1182
    %v1725 = vunpack.c.h.b16 %v1182
    %v1726 = vunpack.c.l.b16 %v1183
    %v1727 = vunpack.c.h.b16 %v1183
    %v1728 = vunpack.c.l.b16 %v1184
    %v1729 = vunpack.c.h.b16 %v1184
    %v1730 = vunpack.c.l.b16 %v1185
    %v1731 = vunpack.c.h.b16 %v1185
    %v1732 = vunpack.c.l.b16 %v1186
    %v1733 = vunpack.c.h.b16 %v1186
    %v1734 = vunpack.c.l.b16 %v1187
    %v1735 = vunpack.c.h.b16 %v1187
    %v1736 = vunpack.c.l.b16 %v1188
    %v1737 = vunpack.c.h.b16 %v1188
    %v1738 = vunpack.c.l.b16 %v1189
    %v1739 = vunpack.c.h.b16 %v1189
    %v1740 = vunpack.c.l.b16 %v1190
    %v1741 = vunpack.c.h.b16 %v1190
    %v1742 = vunpack.c.l.b16 %v1191
    %v1743 = vunpack.c.h.b16 %v1191
    %v1744 = vunpack.c.l.b16 %v1192
    %v1745 = vunpack.c.h.b16 %v1192
    %v1746 = vunpack.c.l.b16 %v1193
    %v1747 = vunpack.c.h.b16 %v1193
    %v1748 = vunpack.c.l.b16 %v1194
    %v1749 = vunpack.c.h.b16 %v1194
    %v1750 = vunpack.c.l.b16 %v1195
    %v1751 = vunpack.c.h.b16 %v1195
    %v1752 = vunpack.c.l.b16 %v1196
    %v1753 = vunpack.c.h.b16 %v1196
    %v1754 = vunpack.c.l.b16 %v1197
    %v1755 = vunpack.c.h.b16 %v1197
    %v1756 = vunpack.c.l.b16 %v1198
    %v1757 = vunpack.c.h.b16 %v1198
    %v1758 = vunpack.c.l.b16 %v1199
    %v1759 = vunpack.c.h.b16 %v1199
    %v1760 = vunpack.c.l.b16 %v1200
    %v1761 = vunpack.c.h.b16 %v1200
    %v1762 = vunpack.c.l.b16 %v1201
    %v1763 = vunpack.c.h.b16 %v1201
    %v1764 = vunpack.c.l.b16 %v1202
    %v1765 = vunpack.c.h.b16 %v1202
    %v1766 = vunpack.c.l.b16 %v1203
    %v1767 = vunpack.c.h.b16 %v1203
    %v1768 = vunpack.c.l.b16 %v1204
    %v1769 = vunpack.c.h.b16 %v1204
    %v1770 = vunpack.c.l.b16 %v1205
    %v1771 = vunpack.c.h.b16 %v1205
    %v1772 = vunpack.c.l.b16 %v1206
    %v1773 = vunpack.c.h.b16 %v1206
    %v1774 = vunpack.c.l.b16 %v1207
    %v1775 = vunpack.c.h.b16 %v1207
    %v1776 = vunpack.c.l.b16 %v1208
    %v1777 = vunpack.c.h.b16 %v1208
    %v1778 = vunpack.c.l.b16 %v1209
    %v1779 = vunpack.c.h.b16 %v1209
    %v1780 = vunpack.c.l.b16 %v1210
    %v1781 = vunpack.c.h.b16 %v1210
    %v1782 = vunpack.c.l.b16 %v1211
    %v1783 = vunpack.c.h.b16 %v1211
    %v1784 = vunpack.c.l.b16 %v1212
    %v1785 = vunpack.c.h.b16 %v1212
    %v1786 = vunpack.c.l.b16 %v1213
    %v1787 = vunpack.c.h.b16 %v1213
    %v1788 = vunpack.c.l.b16 %v1214
    %v1789 = vunpack.c.h.b16 %v1214
    %v1790 = vunpack.c.l.b16 %v1215
    %v1791 = vunpack.c.h.b16 %v1215
    %v1792 = vunpack.c.l.b16 %v1216
    %v1793 = vunpack.c.h.b16 %v1216
    %v1794 = vunpack.c.l.b16 %v1217
    %v1795 = vunpack.c.h.b16 %v1217
    %v1796 = vunpack.c.l.b16 %v1218
    %v1797 = vunpack.c.h.b16 %v1218
    %v1798 = vunpack.c.l.b16 %v1219
    %v1799 = vunpack.c.h.b16 %v1219
    %v1800 = vunpack.c.l.b16 %v1220
    %v1801 = vunpack.c.h.b16 %v1220
    %v1802 = vunpack.c.l.b16 %v1221
    %v1803 = vunpack.c.h.b16 %v1221
    %v1804 = vunpack.c.l.b16 %v1222
    %v1805 = vunpack.c.h.b16 %v1222
    %v1806 = vunpack.c.l.b16 %v1223
    %v1807 = vunpack.c.h.b16 %v1223
    %v1808 = vunpack.c.l.b16 %v1224
    %v1809 = vunpack.c.h.b16 %v1224
    %v1810 = vunpack.c.l.b16 %v1225
    %v1811 = vunpack.c.h.b16 %v1225
    %v1812 = vunpack.c.l.b16 %v1226
    %v1813 = vunpack.c.h.b16 %v1226
    %v1814 = vunpack.c.l.b16 %v1227
    %v1815 = vunpack.c.h.b16 %v1227
    %v1816 = vunpack.c.l.b16 %v1228
    %v1817 = vunpack.c.h.b16 %v1228
    %v1818 = vunpack.c.l.b16 %v1229
    %v1819 = vunpack.c.h.b16 %v1229
    %v1820 = vunpack.c.l.b16 %v1230
    %v1821 = vunpack.c.h.b16 %v1230
    %v1822 = vunpack.c.l.b16 %v1231
    %v1823 = vunpack.c.h.b16 %v1231
    %v1824 = vunpack.c.l.b16 %v1232
    %v1825 = vunpack.c.h.b16 %v1232
    %v1826 = vunpack.c.l.b16 %v1233
    %v1827 = vunpack.c.h.b16 %v1233
    %v1828 = vunpack.c.l.b16 %v1234
    %v1829 = vunpack.c.h.b16 %v1234
    %v1830 = vunpack.c.l.b16 %v1235
    %v1831 = vunpack.c.h.b16 %v1235
    %v1832 = vunpack.c.l.b16 %v1236
    %v1833 = vunpack.c.h.b16 %v1236
    %v1834 = vunpack.c.l.b16 %v1237
    %v1835 = vunpack.c.h.b16 %v1237
    %v1836 = vunpack.c.l.b16 %v1238
    %v1837 = vunpack.c.h.b16 %v1238
    %v1838 = vunpack.c.l.b16 %v1239
    %v1839 = vunpack.c.h.b16 %v1239
    %v1840 = vunpack.c.l.b16 %v1240
    %v1841 = vunpack.c.h.b16 %v1240
    %v1842 = vunpack.c.l.b16 %v1241
    %v1843 = vunpack.c.h.b16 %v1241
    %v1844 = vunpack.c.l.b16 %v1242
    %v1845 = vunpack.c.h.b16 %v1242
    %v1846 = vunpack.c.l.b16 %v1243
    %v1847 = vunpack.c.h.b16 %v1243
    %v1848 = vunpack.c.l.b16 %v1244
    %v1849 = vunpack.c.h.b16 %v1244
    %v1850 = vunpack.c.l.b16 %v1245
    %v1851 = vunpack.c.h.b16 %v1245
    %v1852 = vunpack.c.l.b16 %v1246
    %v1853 = vunpack.c.h.b16 %v1246
    %v1854 = vunpack.c.l.b16 %v1247
    %v1855 = vunpack.c.h.b16 %v1247
    %v1856 = vunpack.c.l.b16 %v1248
    %v1857 = vunpack.c.h.b16 %v1248
    %v1858 = vunpack.c.l.b16 %v1249
    %v1859 = vunpack.c.h.b16 %v1249
    %v1860 = vunpack.c.l.b16 %v1250
    %v1861 = vunpack.c.h.b16 %v1250
    %v1862 = vunpack.c.l.b16 %v1251
    %v1863 = vunpack.c.h.b16 %v1251
    %v1864 = vunpack.c.l.b16 %v1252
    %v1865 = vunpack.c.h.b16 %v1252
    %v1866 = vunpack.c.l.b16 %v1253
    %v1867 = vunpack.c.h.b16 %v1253
    %v1868 = vunpack.c.l.b16 %v1254
    %v1869 = vunpack.c.h.b16 %v1254
    %v1870 = vunpack.c.l.b16 %v1255
    %v1871 = vunpack.c.h.b16 %v1255
    %v1872 = vunpack.c.l.b16 %v1256
    %v1873 = vunpack.c.h.b16 %v1256
    %v1874 = vunpack.c.l.b16 %v1257
    %v1875 = vunpack.c.h.b16 %v1257
    %v1876 = vunpack.c.l.b16 %v1258
    %v1877 = vunpack.c.h.b16 %v1258
    %v1878 = vunpack.c.l.b16 %v1259
    %v1879 = vunpack.c.h.b16 %v1259
    %v1880 = vunpack.c.l.b16 %v1260
    %v1881 = vunpack.c.h.b16 %v1260
    %v1882 = vunpack.c.l.b16 %v1261
    %v1883 = vunpack.c.h.b16 %v1261
    %v1884 = vunpack.c.l.b16 %v1262
    %v1885 = vunpack.c.h.b16 %v1262
    %v1886 = vunpack.c.l.b16 %v1263
    %v1887 = vunpack.c.h.b16 %v1263
    %v1888 = vunpack.c.l.b16 %v1264
    %v1889 = vunpack.c.h.b16 %v1264
    %v1890 = vunpack.c.l.b16 %v1265
    %v1891 = vunpack.c.h.b16 %v1265
    %v1892 = vunpack.c.l.b16 %v1266
    %v1893 = vunpack.c.h.b16 %v1266
    %v1894 = vunpack.c.l.b16 %v1267
    %v1895 = vunpack.c.h.b16 %v1267
    %v1896 = vunpack.c.l.b16 %v1268
    %v1897 = vunpack.c.h.b16 %v1268
    %v1898 = vunpack.c.l.b16 %v1269
    %v1899 = vunpack.c.h.b16 %v1269
    %v1900 = vunpack.c.l.b16 %v1270
    %v1901 = vunpack.c.h.b16 %v1270
    %v1902 = vunpack.c.l.b16 %v1271
    %v1903 = vunpack.c.h.b16 %v1271
    %v1904 = vunpack.c.l.b16 %v1272
    %v1905 = vunpack.c.h.b16 %v1272
    %v1906 = vunpack.c.l.b16 %v1273
    %v1907 = vunpack.c.h.b16 %v1273
    %v1908 = vunpack.c.l.b16 %v1274
    %v1909 = vunpack.c.h.b16 %v1274
    %v1910 = vunpack.c.l.b16 %v1275
    %v1911 = vunpack.c.h.b16 %v1275
    %v1912 = vunpack.c.l.b16 %v1276
    %v1913 = vunpack.c.h.b16 %v1276
    %v1914 = vunpack.c.l.b16 %v1277
    %v1915 = vunpack.c.h.b16 %v1277
    %v1916 = vunpack.c.l.b16 %v1278
    %v1917 = vunpack.c.h.b16 %v1278
    %v1918 = vunpack.c.l.b16 %v1279
    %v1919 = vunpack.c.h.b16 %v1279
    %v1920 = vunpack.c.l.b16 %v1280
    %v1921 = vunpack.c.h.b16 %v1280
    %v1922 = vunpack.c.l.b16 %v1281
    %v1923 = vunpack.c.h.b16 %v1281
    %v1924 = vunpack.c.l.b16 %v1282
    %v1925 = vunpack.c.h.b16 %v1282
    %v1926 = vunpack.c.l.b16 %v1283
    %v1927 = vunpack.c.h.b16 %v1283
    %v1928 = vunpack.c.l.b16 %v1284
    %v1929 = vunpack.c.h.b16 %v1284
    %v1930 = vunpack.c.l.b16 %v1285
    %v1931 = vunpack.c.h.b16 %v1285
    %v1932 = vunpack.c.l.b16 %v1286
    %v1933 = vunpack.c.h.b16 %v1286
    %v1934 = vunpack.c.l.b16 %v1287
    %v1935 = vunpack.c.h.b16 %v1287
    %v1936 = vunpack.c.l.b16 %v1288
    %v1937 = vunpack.c.h.b16 %v1288
    %v1938 = vunpack.c.l.b16 %v1289
    %v1939 = vunpack.c.h.b16 %v1289
    %v1940 = vunpack.c.l.b16 %v1290
    %v1941 = vunpack.c.h.b16 %v1290
    %v1942 = vunpack.c.l.b16 %v1291
    %v1943 = vunpack.c.h.b16 %v1291
    %v1944 = vunpack.c.l.b16 %v1292
    %v1945 = vunpack.c.h.b16 %v1292
    %v1946 = vunpack.c.l.b16 %v1293
    %v1947 = vunpack.c.h.b16 %v1293
    %v1948 = vunpack.c.l.b16 %v1294
    %v1949 = vunpack.c.h.b16 %v1294
    %v1950 = vunpack.c.l.b16 %v1295
    %v1951 = vunpack.c.h.b16 %v1295
    %v1952 = vunpack.c.l.b16 %v1296
    %v1953 = vunpack.c.h.b16 %v1296
    %v1954 = vunpack.c.l.b16 %v1297
    %v1955 = vunpack.c.h.b16 %v1297
    %v1956 = vunpack.c.l.b16 %v1298
    %v1957 = vunpack.c.h.b16 %v1298
    %v1958 = vunpack.c.l.b16 %v1299
    %v1959 = vunpack.c.h.b16 %v1299
    %v1960 = vunpack.c.l.b16 %v1300
    %v1961 = vunpack.c.h.b16 %v1300
    %v1962 = vunpack.c.l.b16 %v1301
    %v1963 = vunpack.c.h.b16 %v1301
    %v1964 = vunpack.c.l.b16 %v1302
    %v1965 = vunpack.c.h.b16 %v1302
    %v1966 = vunpack.c.l.b16 %v1303
    %v1967 = vunpack.c.h.b16 %v1303
    %v1968 = vunpack.c.l.b16 %v1304
    %v1969 = vunpack.c.h.b16 %v1304
    %v1970 = vunpack.c.l.b16 %v1305
    %v1971 = vunpack.c.h.b16 %v1305
    %v1972 = vunpack.c.l.b16 %v1306
    %v1973 = vunpack.c.h.b16 %v1306
    %v1974 = vunpack.c.l.b16 %v1307
    %v1975 = vunpack.c.h.b16 %v1307
    %v1976 = vunpack.c.l.b16 %v1308
    %v1977 = vunpack.c.h.b16 %v1308
    %v1978 = vunpack.c.l.b16 %v1309
    %v1979 = vunpack.c.h.b16 %v1309
    %v1980 = vunpack.c.l.b16 %v1310
    %v1981 = vunpack.c.h.b16 %v1310
    %v1982 = vunpack.c.l.b16 %v1311
    %v1983 = vunpack.c.h.b16 %v1311
    %v1984 = vunpack.c.l.b16 %v1312
    %v1985 = vunpack.c.h.b16 %v1312
    %v1986 = vunpack.c.l.b16 %v1313
    %v1987 = vunpack.c.h.b16 %v1313
    %v1988 = vunpack.c.l.b16 %v1314
    %v1989 = vunpack.c.h.b16 %v1314
    %v1990 = vunpack.c.l.b16 %v1315
    %v1991 = vunpack.c.h.b16 %v1315
    %v1992 = vunpack.c.l.b16 %v1316
    %v1993 = vunpack.c.h.b16 %v1316
    %v1994 = vunpack.c.l.b16 %v1317
    %v1995 = vunpack.c.h.b16 %v1317
    %v1996 = vunpack.c.l.b16 %v1318
    %v1997 = vunpack.c.h.b16 %v1318
    %v1998 = vunpack.c.l.b16 %v1319
    %v1999 = vunpack.c.h.b16 %v1319
    %v2000 = vunpack.c.l.b16 %v1320
    %v2001 = vunpack.c.h.b16 %v1320
    %v2002 = vunpack.c.l.b16 %v1321
    %v2003 = vunpack.c.h.b16 %v1321
    %v2004 = vunpack.c.l.b16 %v1322
    %v2005 = vunpack.c.h.b16 %v1322
    %v2006 = vunpack.c.l.b16 %v1323
    %v2007 = vunpack.c.h.b16 %v1323
    %v2008 = vunpack.c.l.b16 %v1324
    %v2009 = vunpack.c.h.b16 %v1324
    %v2010 = vunpack.c.l.b16 %v1325
    %v2011 = vunpack.c.h.b16 %v1325
    %v2012 = vunpack.c.l.b16 %v1326
    %v2013 = vunpack.c.h.b16 %v1326
    %v2014 = vunpack.c.l.b16 %v1327
    %v2015 = vunpack.c.h.b16 %v1327
    %v2016 = vunpack.c.l.b16 %v1328
    %v2017 = vunpack.c.h.b16 %v1328
    %v2018 = vunpack.c.l.b16 %v1329
    %v2019 = vunpack.c.h.b16 %v1329
    %v2020 = vunpack.c.l.b16 %v1330
    %v2021 = vunpack.c.h.b16 %v1330
    %v2022 = vunpack.c.l.b16 %v1331
    %v2023 = vunpack.c.h.b16 %v1331
    %v2024 = vunpack.c.l.b16 %v1332
    %v2025 = vunpack.c.h.b16 %v1332
    %v2026 = vunpack.c.l.b16 %v1333
    %v2027 = vunpack.c.h.b16 %v1333
    %v2028 = vunpack.c.l.b16 %v1334
    %v2029 = vunpack.c.h.b16 %v1334
    %v2030 = vunpack.c.l.b16 %v1335
    %v2031 = vunpack.c.h.b16 %v1335
    %v2032 = vunpack.c.l.b16 %v1336
    %v2033 = vunpack.c.h.b16 %v1336
    %v2034 = vunpack.c.l.b16 %v1337
    %v2035 = vunpack.c.h.b16 %v1337
    %v2036 = vunpack.c.l.b16 %v1338
    %v2037 = vunpack.c.h.b16 %v1338
    %v2038 = vunpack.c.l.b16 %v1339
    %v2039 = vunpack.c.h.b16 %v1339
    %v2040 = vunpack.c.l.b16 %v1340
    %v2041 = vunpack.c.h.b16 %v1340
    %v2042 = vunpack.c.l.b16 %v1341
    %v2043 = vunpack.c.h.b16 %v1341
    %v2044 = vunpack.c.l.b16 %v1342
    %v2045 = vunpack.c.h.b16 %v1342
    %v2046 = vunpack.c.l.b16 %v1343
    %v2047 = vunpack.c.h.b16 %v1343
    %v2048 = vunpack.c.l.b16 %v1344
    %v2049 = vunpack.c.h.b16 %v1344
    %v2050 = vunpack.c.l.b16 %v1345
    %v2051 = vunpack.c.h.b16 %v1345
    %v2052 = vunpack.c.l.b16 %v1346
    %v2053 = vunpack.c.h.b16 %v1346
    %v2054 = vunpack.c.l.b16 %v1347
    %v2055 = vunpack.c.h.b16 %v1347
    %v2056 = vunpack.c.l.b16 %v1348
    %v2057 = vunpack.c.h.b16 %v1348
    %v2058 = vunpack.c.l.b16 %v1349
    %v2059 = vunpack.c.h.b16 %v1349
    %v2060 = vunpack.c.l.b16 %v1350
    %v2061 = vunpack.c.h.b16 %v1350
    %v2062 = vunpack.c.l.b16 %v1351
    %v2063 = vunpack.c.h.b16 %v1351
    %v2064 = vunpack.c.l.b16 %v1352
    %v2065 = vunpack.c.h.b16 %v1352
    %v2066 = vunpack.c.l.b16 %v1353
    %v2067 = vunpack.c.h.b16 %v1353
    %v2068 = vunpack.c.l.b16 %v1354
    %v2069 = vunpack.c.h.b16 %v1354
    %v2070 = vunpack.c.l.b16 %v1355
    %v2071 = vunpack.c.h.b16 %v1355
    %v2072 = vunpack.c.l.b16 %v1356
    %v2073 = vunpack.c.h.b16 %v1356
    %v2074 = vunpack.c.l.b16 %v1357
    %v2075 = vunpack.c.h.b16 %v1357
    %v2076 = vunpack.c.l.b16 %v1358
    %v2077 = vunpack.c.h.b16 %v1358
    %v2078 = vunpack.c.l.b16 %v1359
    %v2079 = vunpack.c.h.b16 %v1359
    %v2080 = vunpack.c.l.b16 %v1360
    %v2081 = vunpack.c.h.b16 %v1360
    %v2082 = vunpack.c.l.b16 %v1361
    %v2083 = vunpack.c.h.b16 %v1361
    %v2084 = vunpack.c.l.b16 %v1362
    %v2085 = vunpack.c.h.b16 %v1362
    %v2086 = vunpack.c.l.b16 %v1363
    %v2087 = vunpack.c.h.b16 %v1363
    %v2088 = vunpack.c.l.b16 %v1364
    %v2089 = vunpack.c.h.b16 %v1364
    %v2090 = vunpack.c.l.b16 %v1365
    %v2091 = vunpack.c.h.b16 %v1365
    %v2092 = vunpack.c.l.b16 %v1366
    %v2093 = vunpack.c.h.b16 %v1366
    %v2094 = vunpack.c.l.b16 %v1367
    %v2095 = vunpack.c.h.b16 %v1367
    %v2096 = vunpack.c.l.b16 %v1368
    %v2097 = vunpack.c.h.b16 %v1368
    %v2098 = vunpack.c.l.b16 %v1369
    %v2099 = vunpack.c.h.b16 %v1369
    %v2100 = vunpack.c.l.b16 %v1370
    %v2101 = vunpack.c.h.b16 %v1370
    %v2102 = vunpack.c.l.b16 %v1371
    %v2103 = vunpack.c.h.b16 %v1371
    %v2104 = vunpack.c.l.b16 %v1372
    %v2105 = vunpack.c.h.b16 %v1372
    %v2106 = vunpack.c.l.b16 %v1373
    %v2107 = vunpack.c.h.b16 %v1373
    %v2108 = vunpack.c.l.b16 %v1374
    %v2109 = vunpack.c.h.b16 %v1374
    %v2110 = vunpack.c.l.b16 %v1375
    %v2111 = vunpack.c.h.b16 %v1375
    %v2112 = vunpack.c.l.b16 %v1376
    %v2113 = vunpack.c.h.b16 %v1376
    %v2114 = vunpack.c.l.b16 %v1377
    %v2115 = vunpack.c.h.b16 %v1377
    %v2116 = vunpack.c.l.b16 %v1378
    %v2117 = vunpack.c.h.b16 %v1378
    %v2118 = vunpack.c.l.b16 %v1379
    %v2119 = vunpack.c.h.b16 %v1379
    %v2120 = vunpack.c.l.b16 %v1380
    %v2121 = vunpack.c.h.b16 %v1380
    %v2122 = vunpack.c.l.b16 %v1381
    %v2123 = vunpack.c.h.b16 %v1381
    %v2124 = vunpack.c.l.b16 %v1382
    %v2125 = vunpack.c.h.b16 %v1382
    %v2126 = vunpack.c.l.b16 %v1383
    %v2127 = vunpack.c.h.b16 %v1383
    %v2128 = vunpack.c.l.b16 %v1384
    %v2129 = vunpack.c.h.b16 %v1384
    %v2130 = vunpack.c.l.b16 %v1385
    %v2131 = vunpack.c.h.b16 %v1385
    %v2132 = vunpack.c.l.b16 %v1386
    %v2133 = vunpack.c.h.b16 %v1386
    %v2134 = vunpack.c.l.b16 %v1387
    %v2135 = vunpack.c.h.b16 %v1387
    %v2136 = vunpack.c.l.b16 %v1388
    %v2137 = vunpack.c.h.b16 %v1388
    %v2138 = vunpack.c.l.b16 %v1389
    %v2139 = vunpack.c.h.b16 %v1389
    %v2140 = vunpack.c.l.b16 %v1390
    %v2141 = vunpack.c.h.b16 %v1390
    %v2142 = vunpack.c.l.b16 %v1391
    %v2143 = vunpack.c.h.b16 %v1391
    %v2144 = vunpack.c.l.b16 %v1392
    %v2145 = vunpack.c.h.b16 %v1392
    %v2146 = vunpack.c.l.b16 %v1393
    %v2147 = vunpack.c.h.b16 %v1393
    %v2148 = vunpack.c.l.b16 %v1394
    %v2149 = vunpack.c.h.b16 %v1394
    %v2150 = vunpack.c.l.b16 %v1395
    %v2151 = vunpack.c.h.b16 %v1395
    %v2152 = vunpack.c.l.b16 %v1396
    %v2153 = vunpack.c.h.b16 %v1396
    %v2154 = vunpack.c.l.b16 %v1397
    %v2155 = vunpack.c.h.b16 %v1397
    %v2156 = vunpack.c.l.b16 %v1398
    %v2157 = vunpack.c.h.b16 %v1398
    %v2158 = vunpack.c.l.b16 %v1399
    %v2159 = vunpack.c.h.b16 %v1399
    %v2160 = vunpack.c.l.b16 %v1400
    %v2161 = vunpack.c.h.b16 %v1400
    %v2162 = vunpack.c.l.b16 %v1401
    %v2163 = vunpack.c.h.b16 %v1401
    %v2164 = vunpack.c.l.b16 %v1402
    %v2165 = vunpack.c.h.b16 %v1402
    %v2166 = vunpack.c.l.b16 %v1403
    %v2167 = vunpack.c.h.b16 %v1403
    %v2168 = vunpack.c.l.b16 %v1404
    %v2169 = vunpack.c.h.b16 %v1404
    %v2170 = vunpack.c.l.b16 %v1405
    %v2171 = vunpack.c.h.b16 %v1405
    %v2172 = vunpack.c.l.b16 %v1406
    %v2173 = vunpack.c.h.b16 %v1406
    %v2174 = vunpack.c.l.b16 %v1407
    %v2175 = vunpack.c.h.b16 %v1407
    %v2176 = vunpack.c.l.b16 %v1408
    %v2177 = vunpack.c.h.b16 %v1408
    %v2178 = vunpack.c.l.b16 %v1409
    %v2179 = vunpack.c.h.b16 %v1409
    %v2180 = vunpack.c.l.b16 %v1410
    %v2181 = vunpack.c.h.b16 %v1410
    %v2182 = vunpack.c.l.b16 %v1411
    %v2183 = vunpack.c.h.b16 %v1411
    %v2184 = vunpack.c.l.b16 %v1412
    %v2185 = vunpack.c.h.b16 %v1412
    %v2186 = vunpack.c.l.b16 %v1413
    %v2187 = vunpack.c.h.b16 %v1413
    %v2188 = vunpack.c.l.b16 %v1414
    %v2189 = vunpack.c.h.b16 %v1414
    %v2190 = vunpack.c.l.b16 %v1415
    %v2191 = vunpack.c.h.b16 %v1415
    %v2192 = vunpack.c.l.b16 %v1416
    %v2193 = vunpack.c.h.b16 %v1416
    %v2194 = vunpack.c.l.b16 %v1417
    %v2195 = vunpack.c.h.b16 %v1417
    %v2196 = vunpack.c.l.b16 %v1418
    %v2197 = vunpack.c.h.b16 %v1418
    %v2198 = vunpack.c.l.b16 %v1419
    %v2199 = vunpack.c.h.b16 %v1419
    %v2200 = vunpack.c.l.b16 %v1420
    %v2201 = vunpack.c.h.b16 %v1420
    %v2202 = vunpack.c.l.b16 %v1421
    %v2203 = vunpack.c.h.b16 %v1421
    %v2204 = vunpack.c.l.b16 %v1422
    %v2205 = vunpack.c.h.b16 %v1422
    %v2206 = vunpack.c.l.b16 %v1423
    %v2207 = vunpack.c.h.b16 %v1423
    %v2208 = vunpack.c.l.b16 %v1424
    %v2209 = vunpack.c.h.b16 %v1424
    %v2210 = vunpack.c.l.b16 %v1425
    %v2211 = vunpack.c.h.b16 %v1425
    %v2212 = vunpack.c.l.b16 %v1426
    %v2213 = vunpack.c.h.b16 %v1426
    %v2214 = vunpack.c.l.b16 %v1427
    %v2215 = vunpack.c.h.b16 %v1427
    %v2216 = vunpack.c.l.b16 %v1428
    %v2217 = vunpack.c.h.b16 %v1428
    %v2218 = vunpack.c.l.b16 %v1429
    %v2219 = vunpack.c.h.b16 %v1429
    %v2220 = vpack.c.b16 %v1712, %v1708
    %v2221 = vpack.c.b16 %v1713, %v1709
    %v2222 = vpack.c.b16 %v1714, %v1710
    %v2223 = vpack.c.b16 %v1715, %v1711
    %v2224 = vpack.c.b16 %v1720, %v1716
    %v2225 = vpack.c.b16 %v1721, %v1717
    %v2226 = vpack.c.b16 %v1722, %v1718
    %v2227 = vpack.c.b16 %v1723, %v1719
    %v2228 = vpack.c.b16 %v1728, %v1724
    %v2229 = vpack.c.b16 %v1729, %v1725
    %v2230 = vpack.c.b16 %v1730, %v1726
    %v2231 = vpack.c.b16 %v1731, %v1727
    %v2232 = vpack.c.b16 %v1736, %v1732
    %v2233 = vpack.c.b16 %v1737, %v1733
    %v2234 = vpack.c.b16 %v1738, %v1734
    %v2235 = vpack.c.b16 %v1739, %v1735
    %v2236 = vpack.c.b16 %v1744, %v1740
    %v2237 = vpack.c.b16 %v1745, %v1741
    %v2238 = vpack.c.b16 %v1746, %v1742
    %v2239 = vpack.c.b16 %v1747, %v1743
    %v2240 = vpack.c.b16 %v1752, %v1748
    %v2241 = vpack.c.b16 %v1753, %v1749
    %v2242 = vpack.c.b16 %v1754, %v1750
    %v2243 = vpack.c.b16 %v1755, %v1751
    %v2244 = vpack.c.b16 %v1760, %v1756
    %v2245 = vpack.c.b16 %v1761, %v1757
    %v2246 = vpack.c.b16 %v1762, %v1758
    %v2247 = vpack.c.b16 %v1763, %v1759
    %v2248 = vpack.c.b16 %v1768, %v1764
    %v2249 = vpack.c.b16 %v1769, %v1765
    %v2250 = vpack.c.b16 %v1770, %v1766
    %v2251 = vpack.c.b16 %v1771, %v1767
    %v2252 = vpack.c.b16 %v1776, %v1772
    %v2253 = vpack.c.b16 %v1777, %v1773
    %v2254 = vpack.c.b16 %v1778, %v1774
    %v2255 = vpack.c.b16 %v1779, %v1775
    %v2256 = vpack.c.b16 %v1784, %v1780
    %v2257 = vpack.c.b16 %v1785, %v1781
    %v2258 = vpack.c.b16 %v1786, %v1782
    %v2259 = vpack.c.b16 %v1787, %v1783
    %v2260 = vpack.c.b16 %v1792, %v1788
    %v2261 = vpack.c.b16 %v1793, %v1789
    %v2262 = vpack.c.b16 %v1794, %v1790
    %v2263 = vpack.c.b16 %v1795, %v1791
    %v2264 = vpack.c.b16 %v1800, %v1796
    %v2265 = vpack.c.b16 %v1801, %v1797
    %v2266 = vpack.c.b16 %v1802, %v1798
    %v2267 = vpack.c.b16 %v1803, %v1799
    %v2268 = vpack.c.b16 %v1808, %v1804
    %v2269 = vpack.c.b16 %v1809, %v1805
    %v2270 = vpack.c.b16 %v1810, %v1806
    %v2271 = vpack.c.b16 %v1811, %v1807
    %v2272 = vpack.c.b16 %v1816, %v1812
    %v2273 = vpack.c.b16 %v1817, %v1813
    %v2274 = vpack.c.b16 %v1818, %v1814
    %v2275 = vpack.c.b16 %v1819, %v1815
    %v2276 = vpack.c.b16 %v1824, %v1820
    %v2277 = vpack.c.b16 %v1825, %v1821
    %v2278 = vpack.c.b16 %v1826, %v1822
    %v2279 = vpack.c.b16 %v1827, %v1823
    %v2280 = vpack.c.b16 %v1832, %v1828
    %v2281 = vpack.c.b16 %v1833, %v1829
    %v2282 = vpack.c.b16 %v1834, %v1830
    %v2283 = vpack.c.b16 %v1835, %v1831
    %v2284 = vpack.c.b16 %v1840, %v1836
    %v2285 = vpack.c.b16 %v1841, %v1837
    %v2286 = vpack.c.b16 %v1842, %v1838
    %v2287 = vpack.c.b16 %v1843, %v1839
    %v2288 = vpack.c.b16 %v1848, %v1844
    %v2289 = vpack.c.b16 %v1849, %v1845
    %v2290 = vpack.c.b16 %v1850, %v1846
    %v2291 = vpack.c.b16 %v1851, %v1847
    %v2292 = vpack.c.b16 %v1856, %v1852
    %v2293 = vpack.c.b16 %v1857, %v1853
    %v2294 = vpack.c.b16 %v1858, %v1854
    %v2295 = vpack.c.b16 %v1859, %v1855
    %v2296 = vpack.c.b16 %v1864, %v1860
    %v2297 = vpack.c.b16 %v1865, %v1861
    %v2298 = vpack.c.b16 %v1866, %v1862
    %v2299 = vpack.c.b16 %v1867, %v1863
    %v2300 = vpack.c.b16 %v1872, %v1868
    %v2301 = vpack.c.b16 %v1873, %v1869
    %v2302 = vpack.c.b16 %v1874, %v1870
    %v2303 = vpack.c.b16 %v1875, %v1871
    %v2304 = vpack.c.b16 %v1880, %v1876
    %v2305 = vpack.c.b16 %v1881, %v1877
    %v2306 = vpack.c.b16 %v1882, %v1878
    %v2307 = vpack.c.b16 %v1883, %v1879
    %v2308 = vpack.c.b16 %v1888, %v1884
    %v2309 = vpack.c.b16 %v1889, %v1885
    %v2310 = vpack.c.b16 %v1890, %v1886
    %v2311 = vpack.c.b16 %v1891, %v1887
    %v2312 = vpack.c.b16 %v1896, %v1892
    %v2313 = vpack.c.b16 %v1897, %v1893
    %v2314 = vpack.c.b16 %v1898, %v1894
    %v2315 = vpack.c.b16 %v1899, %v1895
    %v2316 = vpack.c.b16 %v1904, %v1900
    %v2317 = vpack.c.b16 %v1905, %v1901
    %v2318 = vpack.c.b16 %v1906, %v1902
    %v2319 = vpack.c.b16 %v1907, %v1903
    %v2320 = vpack.c.b16 %v1912, %v1908
    %v2321 = vpack.c.b16 %v1913, %v1909
    %v2322 = vpack.c.b16 %v1914, %v1910
    %v2323 = vpack.c.b16 %v1915, %v1911
    %v2324 = vpack.c.b16 %v1920, %v1916
    %v2325 = vpack.c.b16 %v1921, %v1917
    %v2326 = vpack.c.b16 %v1922, %v1918
    %v2327 = vpack.c.b16 %v1923, %v1919
    %v2328 = vpack.c.b16 %v1928, %v1924
    %v2329 = vpack.c.b16 %v1929, %v1925
    %v2330 = vpack.c.b16 %v1930, %v1926
    %v2331 = vpack.c.b16 %v1931, %v1927
    %v2332 = vpack.c.b16 %v1936, %v1932
    %v2333 = vpack.c.b16 %v1937, %v1933
    %v2334 = vpack.c.b16 %v1938, %v1934
    %v2335 = vpack.c.b16 %v1939, %v1935
    %v2336 = vpack.c.b16 %v1944, %v1940
    %v2337 = vpack.c.b16 %v1945, %v1941
    %v2338 = vpack.c.b16 %v1946, %v1942
    %v2339 = vpack.c.b16 %v1947, %v1943
    %v2340 = vpack.c.b16 %v1952, %v1948
    %v2341 = vpack.c.b16 %v1953, %v1949
    %v2342 = vpack.c.b16 %v1954, %v1950
    %v2343 = vpack.c.b16 %v1955, %v1951
    %v2344 = vpack.c.b16 %v1960, %v1956
    %v2345 = vpack.c.b16 %v1961, %v1957
    %v2346 = vpack.c.b16 %v1962, %v1958
    %v2347 = vpack.c.b16 %v1963, %v1959
    %v2348 = vpack.c.b16 %v1968, %v1964
    %v2349 = vpack.c.b16 %v1969, %v1965
    %v2350 = vpack.c.b16 %v1970, %v1966
    %v2351 = vpack.c.b16 %v1971, %v1967
    %v2352 = vpack.c.b16 %v1976, %v1972
    %v2353 = vpack.c.b16 %v1977, %v1973
    %v2354 = vpack.c.b16 %v1978, %v1974
    %v2355 = vpack.c.b16 %v1979, %v1975
    %v2356 = vpack.c.b16 %v1984, %v1980
    %v2357 = vpack.c.b16 %v1985, %v1981
    %v2358 = vpack.c.b16 %v1986, %v1982
    %v2359 = vpack.c.b16 %v1987, %v1983
    %v2360 = vpack.c.b16 %v1992, %v1988
    %v2361 = vpack.c.b16 %v1993, %v1989
    %v2362 = vpack.c.b16 %v1994, %v1990
    %v2363 = vpack.c.b16 %v1995, %v1991
    %v2364 = vpack.c.b16 %v2000, %v1996
    %v2365 = vpack.c.b16 %v2001, %v1997
    %v2366 = vpack.c.b16 %v2002, %v1998
    %v2367 = vpack.c.b16 %v2003, %v1999
    %v2368 = vpack.c.b16 %v2008, %v2004
    %v2369 = vpack.c.b16 %v2009, %v2005
    %v2370 = vpack.c.b16 %v2010, %v2006
    %v2371 = vpack.c.b16 %v2011, %v2007
    %v2372 = vpack.c.b16 %v2016, %v2012
    %v2373 = vpack.c.b16 %v2017, %v2013
    %v2374 = vpack.c.b16 %v2018, %v2014
    %v2375 = vpack.c.b16 %v2019, %v2015
    %v2376 = vpack.c.b16 %v2024, %v2020
    %v2377 = vpack.c.b16 %v2025, %v2021
    %v2378 = vpack.c.b16 %v2026, %v2022
    %v2379 = vpack.c.b16 %v2027, %v2023
    %v2380 = vpack.c.b16 %v2032, %v2028
    %v2381 = vpack.c.b16 %v2033, %v2029
    %v2382 = vpack.c.b16 %v2034, %v2030
    %v2383 = vpack.c.b16 %v2035, %v2031
    %v2384 = vpack.c.b16 %v2040, %v2036
    %v2385 = vpack.c.b16 %v2041, %v2037
    %v2386 = vpack.c.b16 %v2042, %v2038
    %v2387 = vpack.c.b16 %v2043, %v2039
    %v2388 = vpack.c.b16 %v2048, %v2044
    %v2389 = vpack.c.b16 %v2049, %v2045
    %v2390 = vpack.c.b16 %v2050, %v2046
    %v2391 = vpack.c.b16 %v2051, %v2047
    %v2392 = vpack.c.b16 %v2056, %v2052
    %v2393 = vpack.c.b16 %v2057, %v2053
    %v2394 = vpack.c.b16 %v2058, %v2054
    %v2395 = vpack.c.b16 %v2059, %v2055
    %v2396 = vpack.c.b16 %v2064, %v2060
    %v2397 = vpack.c.b16 %v2065, %v2061
    %v2398 = vpack.c.b16 %v2066, %v2062
    %v2399 = vpack.c.b16 %v2067, %v2063
    %v2400 = vpack.c.b16 %v2072, %v2068
    %v2401 = vpack.c.b16 %v2073, %v2069
    %v2402 = vpack.c.b16 %v2074, %v2070
    %v2403 = vpack.c.b16 %v2075, %v2071
    %v2404 = vpack.c.b16 %v2080, %v2076
    %v2405 = vpack.c.b16 %v2081, %v2077
    %v2406 = vpack.c.b16 %v2082, %v2078
    %v2407 = vpack.c.b16 %v2083, %v2079
    %v2408 = vpack.c.b16 %v2088, %v2084
    %v2409 = vpack.c.b16 %v2089, %v2085
    %v2410 = vpack.c.b16 %v2090, %v2086
    %v2411 = vpack.c.b16 %v2091, %v2087
    %v2412 = vpack.c.b16 %v2096, %v2092
    %v2413 = vpack.c.b16 %v2097, %v2093
    %v2414 = vpack.c.b16 %v2098, %v2094
    %v2415 = vpack.c.b16 %v2099, %v2095
    %v2416 = vpack.c.b16 %v2104, %v2100
    %v2417 = vpack.c.b16 %v2105, %v2101
    %v2418 = vpack.c.b16 %v2106, %v2102
    %v2419 = vpack.c.b16 %v2107, %v2103
    %v2420 = vpack.c.b16 %v2112, %v2108
    %v2421 = vpack.c.b16 %v2113, %v2109
    %v2422 = vpack.c.b16 %v2114, %v2110
    %v2423 = vpack.c.b16 %v2115, %v2111
    %v2424 = vpack.c.b16 %v2120, %v2116
    %v2425 = vpack.c.b16 %v2121, %v2117
    %v2426 = vpack.c.b16 %v2122, %v2118
    %v2427 = vpack.c.b16 %v2123, %v2119
    %v2428 = vpack.c.b16 %v2128, %v2124
    %v2429 = vpack.c.b16 %v2129, %v2125
    %v2430 = vpack.c.b16 %v2130, %v2126
    %v2431 = vpack.c.b16 %v2131, %v2127
    %v2432 = vpack.c.b16 %v2136, %v2132
    %v2433 = vpack.c.b16 %v2137, %v2133
    %v2434 = vpack.c.b16 %v2138, %v2134
    %v2435 = vpack.c.b16 %v2139, %v2135
    %v2436 = vpack.c.b16 %v2144, %v2140
    %v2437 = vpack.c.b16 %v2145, %v2141
    %v2438 = vpack.c.b16 %v2146, %v2142
    %v2439 = vpack.c.b16 %v2147, %v2143
    %v2440 = vpack.c.b16 %v2152, %v2148
    %v2441 = vpack.c.b16 %v2153, %v2149
    %v2442 = vpack.c.b16 %v2154, %v2150
    %v2443 = vpack.c.b16 %v2155, %v2151
    %v2444 = vpack.c.b16 %v2160, %v2156
    %v2445 = vpack.c.b16 %v2161, %v2157
    %v2446 = vpack.c.b16 %v2162, %v2158
    %v2447 = vpack.c.b16 %v2163, %v2159
    %v2448 = vpack.c.b16 %v2168, %v2164
    %v2449 = vpack.c.b16 %v2169, %v2165
    %v2450 = vpack.c.b16 %v2170, %v2166
    %v2451 = vpack.c.b16 %v2171, %v2167
    %v2452 = vpack.c.b16 %v2176, %v2172
    %v2453 = vpack.c.b16 %v2177, %v2173
    %v2454 = vpack.c.b16 %v2178, %v2174
    %v2455 = vpack.c.b16 %v2179, %v2175
    %v2456 = vpack.c.b16 %v2184, %v2180
    %v2457 = vpack.c.b16 %v2185, %v2181
    %v2458 = vpack.c.b16 %v2186, %v2182
    %v2459 = vpack.c.b16 %v2187, %v2183
    %v2460 = vpack.c.b16 %v2192, %v2188
    %v2461 = vpack.c.b16 %v2193, %v2189
    %v2462 = vpack.c.b16 %v2194, %v2190
    %v2463 = vpack.c.b16 %v2195, %v2191
    %v2464 = vpack.c.b16 %v2200, %v2196
    %v2465 = vpack.c.b16 %v2201, %v2197
    %v2466 = vpack.c.b16 %v2202, %v2198
    %v2467 = vpack.c.b16 %v2203, %v2199
    %v2468 = vpack.c.b16 %v2208, %v2204
    %v2469 = vpack.c.b16 %v2209, %v2205
    %v2470 = vpack.c.b16 %v2210, %v2206
    %v2471 = vpack.c.b16 %v2211, %v2207
    %v2472 = vpack.c.b16 %v2216, %v2212
    %v2473 = vpack.c.b16 %v2217, %v2213
    %v2474 = vpack.c.b16 %v2218, %v2214
    %v2475 = vpack.c.b16 %v2219, %v2215
    %2732 = vmatprep.subr.bf16.mxu0 %v2221
    %2733 = vmatpush1.bf16.msra.mxu0 %v2220
    %2734 = vmatprep.subr.bf16.mxu0 %v2225
    %2735 = vmatpush1.bf16.msra.mxu0 %v2224
    %2736 = vmatprep.subr.bf16.mxu0 %v2229
    %2737 = vmatpush1.bf16.msra.mxu0 %v2228
    %2738 = vmatprep.subr.bf16.mxu0 %v2233
    %2739 = vmatpush1.bf16.msra.mxu0 %v2232
    %2740 = vmatprep.subr.bf16.mxu0 %v2237
    %2741 = vmatpush1.bf16.msra.mxu0 %v2236
    %2742 = vmatprep.subr.bf16.mxu0 %v2241
    %2743 = vmatpush1.bf16.msra.mxu0 %v2240
    %2744 = vmatprep.subr.bf16.mxu0 %v2245
    %2745 = vmatpush1.bf16.msra.mxu0 %v2244
    %2746 = vmatprep.subr.bf16.mxu0 %v2249
    %2747 = vmatpush1.bf16.msra.mxu0 %v2248
    %2748 = vmatprep.subr.bf16.mxu0 %v2253
    %2749 = vmatpush1.bf16.msra.mxu0 %v2252
    %2750 = vmatprep.subr.bf16.mxu0 %v2257
    %2751 = vmatpush1.bf16.msra.mxu0 %v2256
    %2752 = vmatprep.subr.bf16.mxu0 %v2261
    %2753 = vmatpush1.bf16.msra.mxu0 %v2260
    %2754 = vmatprep.subr.bf16.mxu0 %v2265
    %2755 = vmatpush1.bf16.msra.mxu0 %v2264
    %2756 = vmatprep.subr.bf16.mxu0 %v2269
    %2757 = vmatpush1.bf16.msra.mxu0 %v2268
    %2758 = vmatprep.subr.bf16.mxu0 %v2273
    %2759 = vmatpush1.bf16.msra.mxu0 %v2272
    %2760 = vmatprep.subr.bf16.mxu0 %v2277
    %2761 = vmatpush1.bf16.msra.mxu0 %v2276
    %2762 = vmatprep.subr.bf16.mxu0 %v2281
    %2763 = vmatpush1.bf16.msra.mxu0 %v2280
    %2764 = vmatprep.mubr.bf16.mxu0 %v1167
    %2765 = vmatmul.mubr.bf16.gmra.mrb[0].mxu0 %v1166
    %v2766 = vpop.f32.mrb[0].mxu0
    %v2767 = vadd.f32 %v1435, %v2766
    %v2768 = vpop.f32.mrb[0].mxu0
    %v2769 = vadd.f32 %v1439, %v2768
    %v2770 = vpop.f32.mrb[0].mxu0
    %v2771 = vpop.f32.mrb[0].mxu0
    %2772 = vdwg.mxu0
    %2773 = vmatprep.subr.bf16.mxu0 %v2285
    %2774 = vmatpush1.bf16.msra.mxu0 %v2284
    %2775 = vmatprep.subr.bf16.mxu0 %v2289
    %2776 = vmatpush1.bf16.msra.mxu0 %v2288
    %2777 = vmatprep.subr.bf16.mxu0 %v2293
    %2778 = vmatpush1.bf16.msra.mxu0 %v2292
    %2779 = vmatprep.subr.bf16.mxu0 %v2297
    %2780 = vmatpush1.bf16.msra.mxu0 %v2296
    %2781 = vmatprep.subr.bf16.mxu0 %v2301
    %2782 = vmatpush1.bf16.msra.mxu0 %v2300
    %2783 = vmatprep.subr.bf16.mxu0 %v2305
    %2784 = vmatpush1.bf16.msra.mxu0 %v2304
    %2785 = vmatprep.subr.bf16.mxu0 %v2309
    %2786 = vmatpush1.bf16.msra.mxu0 %v2308
    %2787 = vmatprep.subr.bf16.mxu0 %v2313
    %2788 = vmatpush1.bf16.msra.mxu0 %v2312
    %2789 = vmatprep.subr.bf16.mxu0 %v2317
    %2790 = vmatpush1.bf16.msra.mxu0 %v2316
    %2791 = vmatprep.subr.bf16.mxu0 %v2321
    %2792 = vmatpush1.bf16.msra.mxu0 %v2320
    %2793 = vmatprep.subr.bf16.mxu0 %v2325
    %2794 = vmatpush1.bf16.msra.mxu0 %v2324
    %2795 = vmatprep.subr.bf16.mxu0 %v2329
    %2796 = vmatpush1.bf16.msra.mxu0 %v2328
    %2797 = vmatprep.subr.bf16.mxu0 %v2333
    %2798 = vmatpush1.bf16.msra.mxu0 %v2332
    %2799 = vmatprep.subr.bf16.mxu0 %v2337
    %2800 = vmatpush1.bf16.msra.mxu0 %v2336
    %2801 = vmatprep.subr.bf16.mxu0 %v2341
    %2802 = vmatpush1.bf16.msra.mxu0 %v2340
    %2803 = vmatprep.subr.bf16.mxu0 %v2345
    %2804 = vmatpush1.bf16.msra.mxu0 %v2344
    %2805 = vmatprep.mubr.bf16.mxu0 %v1169
    %2806 = vmatmul.mubr.bf16.gmra.mrb[0].mxu0 %v1168
    %v2807 = vpop.f32.mrb[0].mxu0
    %v2808 = vadd.f32 %v2767, %v2807
    %v2809 = vpop.f32.mrb[0].mxu0
    %v2810 = vadd.f32 %v2769, %v2809
    %v2811 = vpop.f32.mrb[0].mxu0
    %v2812 = vpop.f32.mrb[0].mxu0
    %2813 = vdwg.mxu0
    %2814 = vmatprep.subr.bf16.mxu0 %v2349
    %2815 = vmatpush1.bf16.msra.mxu0 %v2348
    %2816 = vmatprep.subr.bf16.mxu0 %v2353
    %2817 = vmatpush1.bf16.msra.mxu0 %v2352
    %2818 = vmatprep.subr.bf16.mxu0 %v2357
    %2819 = vmatpush1.bf16.msra.mxu0 %v2356
    %2820 = vmatprep.subr.bf16.mxu0 %v2361
    %2821 = vmatpush1.bf16.msra.mxu0 %v2360
    %2822 = vmatprep.subr.bf16.mxu0 %v2365
    %2823 = vmatpush1.bf16.msra.mxu0 %v2364
    %2824 = vmatprep.subr.bf16.mxu0 %v2369
    %2825 = vmatpush1.bf16.msra.mxu0 %v2368
    %2826 = vmatprep.subr.bf16.mxu0 %v2373
    %2827 = vmatpush1.bf16.msra.mxu0 %v2372
    %2828 = vmatprep.subr.bf16.mxu0 %v2377
    %2829 = vmatpush1.bf16.msra.mxu0 %v2376
    %2830 = vmatprep.subr.bf16.mxu0 %v2381
    %2831 = vmatpush1.bf16.msra.mxu0 %v2380
    %2832 = vmatprep.subr.bf16.mxu0 %v2385
    %2833 = vmatpush1.bf16.msra.mxu0 %v2384
    %2834 = vmatprep.subr.bf16.mxu0 %v2389
    %2835 = vmatpush1.bf16.msra.mxu0 %v2388
    %2836 = vmatprep.subr.bf16.mxu0 %v2393
    %2837 = vmatpush1.bf16.msra.mxu0 %v2392
    %2838 = vmatprep.subr.bf16.mxu0 %v2397
    %2839 = vmatpush1.bf16.msra.mxu0 %v2396
    %2840 = vmatprep.subr.bf16.mxu0 %v2401
    %2841 = vmatpush1.bf16.msra.mxu0 %v2400
    %2842 = vmatprep.subr.bf16.mxu0 %v2405
    %2843 = vmatpush1.bf16.msra.mxu0 %v2404
    %2844 = vmatprep.subr.bf16.mxu0 %v2409
    %2845 = vmatpush1.bf16.msra.mxu0 %v2408
    %2846 = vmatprep.mubr.bf16.mxu0 %v1171
    %2847 = vmatmul.mubr.bf16.gmra.mrb[0].mxu0 %v1170
    %v2848 = vpop.f32.mrb[0].mxu0
    %v2849 = vadd.f32 %v2808, %v2848
    %v2850 = vpop.f32.mrb[0].mxu0
    %v2851 = vadd.f32 %v2810, %v2850
    %v2852 = vpop.f32.mrb[0].mxu0
    %v2853 = vpop.f32.mrb[0].mxu0
    %2854 = vdwg.mxu0
    %2855 = vmatprep.subr.bf16.mxu0 %v2413
    %2856 = vmatpush1.bf16.msra.mxu0 %v2412
    %2857 = vmatprep.subr.bf16.mxu0 %v2417
    %2858 = vmatpush1.bf16.msra.mxu0 %v2416
    %2859 = vmatprep.subr.bf16.mxu0 %v2421
    %2860 = vmatpush1.bf16.msra.mxu0 %v2420
    %2861 = vmatprep.subr.bf16.mxu0 %v2425
    %2862 = vmatpush1.bf16.msra.mxu0 %v2424
    %2863 = vmatprep.subr.bf16.mxu0 %v2429
    %2864 = vmatpush1.bf16.msra.mxu0 %v2428
    %2865 = vmatprep.subr.bf16.mxu0 %v2433
    %2866 = vmatpush1.bf16.msra.mxu0 %v2432
    %2867 = vmatprep.subr.bf16.mxu0 %v2437
    %2868 = vmatpush1.bf16.msra.mxu0 %v2436
    %2869 = vmatprep.subr.bf16.mxu0 %v2441
    %2870 = vmatpush1.bf16.msra.mxu0 %v2440
    %2871 = vmatprep.subr.bf16.mxu0 %v2445
    %2872 = vmatpush1.bf16.msra.mxu0 %v2444
    %2873 = vmatprep.subr.bf16.mxu0 %v2449
    %2874 = vmatpush1.bf16.msra.mxu0 %v2448
    %2875 = vmatprep.subr.bf16.mxu0 %v2453
    %2876 = vmatpush1.bf16.msra.mxu0 %v2452
    %2877 = vmatprep.subr.bf16.mxu0 %v2457
    %2878 = vmatpush1.bf16.msra.mxu0 %v2456
    %2879 = vmatprep.subr.bf16.mxu0 %v2461
    %2880 = vmatpush1.bf16.msra.mxu0 %v2460
    %2881 = vmatprep.subr.bf16.mxu0 %v2465
    %2882 = vmatpush1.bf16.msra.mxu0 %v2464
    %2883 = vmatprep.subr.bf16.mxu0 %v2469
    %2884 = vmatpush1.bf16.msra.mxu0 %v2468
    %2885 = vmatprep.subr.bf16.mxu0 %v2473
    %2886 = vmatpush1.bf16.msra.mxu0 %v2472
    %2887 = vmatprep.mubr.bf16.mxu0 %v1173
    %2888 = vmatmul.mubr.bf16.gmra.mrb[0].mxu0 %v1172
    %v2889 = vpop.f32.mrb[0].mxu0
    %v2890 = vadd.f32 %v2849, %v2889
    %v2891 = vpop.f32.mrb[0].mxu0
    %v2892 = vadd.f32 %v2851, %v2891
    %v2893 = vpop.f32.mrb[0].mxu0
    %v2894 = vpop.f32.mrb[0].mxu0
    %2895 = vdwg.mxu0
    %2896 = vmatprep.subr.bf16.mxu0 %v2223
    %2897 = vmatpush1.bf16.msra.mxu0 %v2222
    %2898 = vmatprep.subr.bf16.mxu0 %v2227
    %2899 = vmatpush1.bf16.msra.mxu0 %v2226
    %2900 = vmatprep.subr.bf16.mxu0 %v2231
    %2901 = vmatpush1.bf16.msra.mxu0 %v2230
    %2902 = vmatprep.subr.bf16.mxu0 %v2235
    %2903 = vmatpush1.bf16.msra.mxu0 %v2234
    %2904 = vmatprep.subr.bf16.mxu0 %v2239
    %2905 = vmatpush1.bf16.msra.mxu0 %v2238
    %2906 = vmatprep.subr.bf16.mxu0 %v2243
    %2907 = vmatpush1.bf16.msra.mxu0 %v2242
    %2908 = vmatprep.subr.bf16.mxu0 %v2247
    %2909 = vmatpush1.bf16.msra.mxu0 %v2246
    %2910 = vmatprep.subr.bf16.mxu0 %v2251
    %2911 = vmatpush1.bf16.msra.mxu0 %v2250
    %2912 = vmatprep.subr.bf16.mxu0 %v2255
    %2913 = vmatpush1.bf16.msra.mxu0 %v2254
    %2914 = vmatprep.subr.bf16.mxu0 %v2259
    %2915 = vmatpush1.bf16.msra.mxu0 %v2258
    %2916 = vmatprep.subr.bf16.mxu0 %v2263
    %2917 = vmatpush1.bf16.msra.mxu0 %v2262
    %2918 = vmatprep.subr.bf16.mxu0 %v2267
    %2919 = vmatpush1.bf16.msra.mxu0 %v2266
    %2920 = vmatprep.subr.bf16.mxu0 %v2271
    %2921 = vmatpush1.bf16.msra.mxu0 %v2270
    %2922 = vmatprep.subr.bf16.mxu0 %v2275
    %2923 = vmatpush1.bf16.msra.mxu0 %v2274
    %2924 = vmatprep.subr.bf16.mxu0 %v2279
    %2925 = vmatpush1.bf16.msra.mxu0 %v2278
    %2926 = vmatprep.subr.bf16.mxu0 %v2283
    %2927 = vmatpush1.bf16.msra.mxu0 %v2282
    %2928 = vmatprep.mubr.bf16.mxu0 %v1167
    %2929 = vmatmul.mubr.bf16.gmra.mrb[0].mxu0 %v1166
    %v2930 = vpop.f32.mrb[0].mxu0
    %v2931 = vadd.f32 %v1443, %v2930
    %v2932 = vpop.f32.mrb[0].mxu0
    %v2933 = vadd.f32 %v1447, %v2932
    %v2934 = vpop.f32.mrb[0].mxu0
    %v2935 = vpop.f32.mrb[0].mxu0
    %2936 = vdwg.mxu0
    %2937 = vmatprep.subr.bf16.mxu0 %v2287
    %2938 = vmatpush1.bf16.msra.mxu0 %v2286
    %2939 = vmatprep.subr.bf16.mxu0 %v2291
    %2940 = vmatpush1.bf16.msra.mxu0 %v2290
    %2941 = vmatprep.subr.bf16.mxu0 %v2295
    %2942 = vmatpush1.bf16.msra.mxu0 %v2294
    %2943 = vmatprep.subr.bf16.mxu0 %v2299
    %2944 = vmatpush1.bf16.msra.mxu0 %v2298
    %2945 = vmatprep.subr.bf16.mxu0 %v2303
    %2946 = vmatpush1.bf16.msra.mxu0 %v2302
    %2947 = vmatprep.subr.bf16.mxu0 %v2307
    %2948 = vmatpush1.bf16.msra.mxu0 %v2306
    %2949 = vmatprep.subr.bf16.mxu0 %v2311
    %2950 = vmatpush1.bf16.msra.mxu0 %v2310
    %2951 = vmatprep.subr.bf16.mxu0 %v2315
    %2952 = vmatpush1.bf16.msra.mxu0 %v2314
    %2953 = vmatprep.subr.bf16.mxu0 %v2319
    %2954 = vmatpush1.bf16.msra.mxu0 %v2318
    %2955 = vmatprep.subr.bf16.mxu0 %v2323
    %2956 = vmatpush1.bf16.msra.mxu0 %v2322
    %2957 = vmatprep.subr.bf16.mxu0 %v2327
    %2958 = vmatpush1.bf16.msra.mxu0 %v2326
    %2959 = vmatprep.subr.bf16.mxu0 %v2331
    %2960 = vmatpush1.bf16.msra.mxu0 %v2330
    %2961 = vmatprep.subr.bf16.mxu0 %v2335
    %2962 = vmatpush1.bf16.msra.mxu0 %v2334
    %2963 = vmatprep.subr.bf16.mxu0 %v2339
    %2964 = vmatpush1.bf16.msra.mxu0 %v2338
    %2965 = vmatprep.subr.bf16.mxu0 %v2343
    %2966 = vmatpush1.bf16.msra.mxu0 %v2342
    %2967 = vmatprep.subr.bf16.mxu0 %v2347
    %2968 = vmatpush1.bf16.msra.mxu0 %v2346
    %2969 = vmatprep.mubr.bf16.mxu0 %v1169
    %2970 = vmatmul.mubr.bf16.gmra.mrb[0].mxu0 %v1168
    %v2971 = vpop.f32.mrb[0].mxu0
    %v2972 = vadd.f32 %v2931, %v2971
    %v2973 = vpop.f32.mrb[0].mxu0
    %v2974 = vadd.f32 %v2933, %v2973
    %v2975 = vpop.f32.mrb[0].mxu0
    %v2976 = vpop.f32.mrb[0].mxu0
    %2977 = vdwg.mxu0
    %2978 = vmatprep.subr.bf16.mxu0 %v2351
    %2979 = vmatpush1.bf16.msra.mxu0 %v2350
    %2980 = vmatprep.subr.bf16.mxu0 %v2355
    %2981 = vmatpush1.bf16.msra.mxu0 %v2354
    %2982 = vmatprep.subr.bf16.mxu0 %v2359
    %2983 = vmatpush1.bf16.msra.mxu0 %v2358
    %2984 = vmatprep.subr.bf16.mxu0 %v2363
    %2985 = vmatpush1.bf16.msra.mxu0 %v2362
    %2986 = vmatprep.subr.bf16.mxu0 %v2367
    %2987 = vmatpush1.bf16.msra.mxu0 %v2366
    %2988 = vmatprep.subr.bf16.mxu0 %v2371
    %2989 = vmatpush1.bf16.msra.mxu0 %v2370
    %2990 = vmatprep.subr.bf16.mxu0 %v2375
    %2991 = vmatpush1.bf16.msra.mxu0 %v2374
    %2992 = vmatprep.subr.bf16.mxu0 %v2379
    %2993 = vmatpush1.bf16.msra.mxu0 %v2378
    %2994 = vmatprep.subr.bf16.mxu0 %v2383
    %2995 = vmatpush1.bf16.msra.mxu0 %v2382
    %2996 = vmatprep.subr.bf16.mxu0 %v2387
    %2997 = vmatpush1.bf16.msra.mxu0 %v2386
    %2998 = vmatprep.subr.bf16.mxu0 %v2391
    %2999 = vmatpush1.bf16.msra.mxu0 %v2390
    %3000 = vmatprep.subr.bf16.mxu0 %v2395
    %3001 = vmatpush1.bf16.msra.mxu0 %v2394
    %3002 = vmatprep.subr.bf16.mxu0 %v2399
    %3003 = vmatpush1.bf16.msra.mxu0 %v2398
    %3004 = vmatprep.subr.bf16.mxu0 %v2403
    %3005 = vmatpush1.bf16.msra.mxu0 %v2402
    %3006 = vmatprep.subr.bf16.mxu0 %v2407
    %3007 = vmatpush1.bf16.msra.mxu0 %v2406
    %3008 = vmatprep.subr.bf16.mxu0 %v2411
    %3009 = vmatpush1.bf16.msra.mxu0 %v2410
    %3010 = vmatprep.mubr.bf16.mxu0 %v1171
    %3011 = vmatmul.mubr.bf16.gmra.mrb[0].mxu0 %v1170
    %v3012 = vpop.f32.mrb[0].mxu0
    %v3013 = vadd.f32 %v2972, %v3012
    %v3014 = vpop.f32.mrb[0].mxu0
    %v3015 = vadd.f32 %v2974, %v3014
    %v3016 = vpop.f32.mrb[0].mxu0
    %v3017 = vpop.f32.mrb[0].mxu0
    %3018 = vdwg.mxu0
    %3019 = vmatprep.subr.bf16.mxu0 %v2415
    %3020 = vmatpush1.bf16.msra.mxu0 %v2414
    %3021 = vmatprep.subr.bf16.mxu0 %v2419
    %3022 = vmatpush1.bf16.msra.mxu0 %v2418
    %3023 = vmatprep.subr.bf16.mxu0 %v2423
    %3024 = vmatpush1.bf16.msra.mxu0 %v2422
    %3025 = vmatprep.subr.bf16.mxu0 %v2427
    %3026 = vmatpush1.bf16.msra.mxu0 %v2426
    %3027 = vmatprep.subr.bf16.mxu0 %v2431
    %3028 = vmatpush1.bf16.msra.mxu0 %v2430
    %3029 = vmatprep.subr.bf16.mxu0 %v2435
    %3030 = vmatpush1.bf16.msra.mxu0 %v2434
    %3031 = vmatprep.subr.bf16.mxu0 %v2439
    %3032 = vmatpush1.bf16.msra.mxu0 %v2438
    %3033 = vmatprep.subr.bf16.mxu0 %v2443
    %3034 = vmatpush1.bf16.msra.mxu0 %v2442
    %3035 = vmatprep.subr.bf16.mxu0 %v2447
    %3036 = vmatpush1.bf16.msra.mxu0 %v2446
    %3037 = vmatprep.subr.bf16.mxu0 %v2451
    %3038 = vmatpush1.bf16.msra.mxu0 %v2450
    %3039 = vmatprep.subr.bf16.mxu0 %v2455
    %3040 = vmatpush1.bf16.msra.mxu0 %v2454
    %3041 = vmatprep.subr.bf16.mxu0 %v2459
    %3042 = vmatpush1.bf16.msra.mxu0 %v2458
    %3043 = vmatprep.subr.bf16.mxu0 %v2463
    %3044 = vmatpush1.bf16.msra.mxu0 %v2462
    %3045 = vmatprep.subr.bf16.mxu0 %v2467
    %3046 = vmatpush1.bf16.msra.mxu0 %v2466
    %3047 = vmatprep.subr.bf16.mxu0 %v2471
    %3048 = vmatpush1.bf16.msra.mxu0 %v2470
    %3049 = vmatprep.subr.bf16.mxu0 %v2475
    %3050 = vmatpush1.bf16.msra.mxu0 %v2474
    %3051 = vmatprep.mubr.bf16.mxu0 %v1173
    %3052 = vmatmul.mubr.bf16.gmra.mrb[0].mxu0 %v1172
    %v3053 = vpop.f32.mrb[0].mxu0
    %v3054 = vadd.f32 %v3013, %v3053
    %v3055 = vpop.f32.mrb[0].mxu0
    %v3056 = vadd.f32 %v3015, %v3055
    %v3057 = vpop.f32.mrb[0].mxu0
    %v3058 = vpop.f32.mrb[0].mxu0
    %3059 = vdwg.mxu0
    %v3060 = vmax.f32 %v2890, 0.0
    %v3061 = vmax.f32 %v2892, 0.0
    %v3062 = vmax.f32 %v3054, 0.0
    %v3063 = vmax.f32 %v3056, 0.0
    %v3064 = vpack.c.bf16 %v3060, %v3060
    %v3065 = vpack.c.bf16 %v3061, %v3061
    %v3066 = vpack.c.bf16 %v3062, %v3062
    %v3067 = vpack.c.bf16 %v3063, %v3063
    %v3068 = vld [vmem:[#allocation7] sm:$0xff]
    %v3069 = vld [vmem:[#allocation7 + $0x8] sm:$0xff]
    %v3070 = vld [vmem:[#allocation7 + $0x10] sm:$0xff]
    %v3071 = vld [vmem:[#allocation7 + $0x18] sm:$0xff]
    %v3072 = vld [vmem:[#allocation7 + $0x20] sm:$0xff]
    %v3073 = vld [vmem:[#allocation7 + $0x28] sm:$0xff]
    %v3074 = vld [vmem:[#allocation7 + $0x30] sm:$0xff]
    %v3075 = vld [vmem:[#allocation7 + $0x38] sm:$0xff]
    %v3076 = vld [vmem:[#allocation7 + $0x40] sm:$0xff]
    %v3077 = vld [vmem:[#allocation7 + $0x48] sm:$0xff]
    %v3078 = vld [vmem:[#allocation7 + $0x50] sm:$0xff]
    %v3079 = vld [vmem:[#allocation7 + $0x58] sm:$0xff]
    %v3080 = vld [vmem:[#allocation7 + $0x60] sm:$0xff]
    %v3081 = vld [vmem:[#allocation7 + $0x68] sm:$0xff]
    %v3082 = vld [vmem:[#allocation7 + $0x70] sm:$0xff]
    %v3083 = vld [vmem:[#allocation7 + $0x78] sm:$0xff]
    %v3084 = vld [vmem:[#allocation7 + $0x80] sm:$0xff]
    %v3085 = vld [vmem:[#allocation7 + $0x88] sm:$0xff]
    %v3086 = vld [vmem:[#allocation7 + $0x90] sm:$0xff]
    %v3087 = vld [vmem:[#allocation7 + $0x98] sm:$0xff]
    %v3088 = vld [vmem:[#allocation7 + $0xa0] sm:$0xff]
    %v3089 = vld [vmem:[#allocation7 + $0xa8] sm:$0xff]
    %v3090 = vld [vmem:[#allocation7 + $0xb0] sm:$0xff]
    %v3091 = vld [vmem:[#allocation7 + $0xb8] sm:$0xff]
    %v3092 = vld [vmem:[#allocation7 + $0xc0] sm:$0xff]
    %v3093 = vld [vmem:[#allocation7 + $0xc8] sm:$0xff]
    %v3094 = vld [vmem:[#allocation7 + $0xd0] sm:$0xff]
    %v3095 = vld [vmem:[#allocation7 + $0xd8] sm:$0xff]
    %v3096 = vld [vmem:[#allocation7 + $0xe0] sm:$0xff]
    %v3097 = vld [vmem:[#allocation7 + $0xe8] sm:$0xff]
    %v3098 = vld [vmem:[#allocation7 + $0xf0] sm:$0xff]
    %v3099 = vld [vmem:[#allocation7 + $0xf8] sm:$0xff]
    %v3100 = vld [vmem:[#allocation7 + $0x100] sm:$0xff]
    %v3101 = vld [vmem:[#allocation7 + $0x108] sm:$0xff]
    %v3102 = vld [vmem:[#allocation7 + $0x110] sm:$0xff]
    %v3103 = vld [vmem:[#allocation7 + $0x118] sm:$0xff]
    %v3104 = vld [vmem:[#allocation7 + $0x120] sm:$0xff]
    %v3105 = vld [vmem:[#allocation7 + $0x128] sm:$0xff]
    %v3106 = vld [vmem:[#allocation7 + $0x130] sm:$0xff]
    %v3107 = vld [vmem:[#allocation7 + $0x138] sm:$0xff]
    %v3108 = vld [vmem:[#allocation7 + $0x140] sm:$0xff]
    %v3109 = vld [vmem:[#allocation7 + $0x148] sm:$0xff]
    %v3110 = vld [vmem:[#allocation7 + $0x150] sm:$0xff]
    %v3111 = vld [vmem:[#allocation7 + $0x158] sm:$0xff]
    %v3112 = vld [vmem:[#allocation7 + $0x160] sm:$0xff]
    %v3113 = vld [vmem:[#allocation7 + $0x168] sm:$0xff]
    %v3114 = vld [vmem:[#allocation7 + $0x170] sm:$0xff]
    %v3115 = vld [vmem:[#allocation7 + $0x178] sm:$0xff]
    %v3116 = vld [vmem:[#allocation7 + $0x180] sm:$0xff]
    %v3117 = vld [vmem:[#allocation7 + $0x188] sm:$0xff]
    %v3118 = vld [vmem:[#allocation7 + $0x190] sm:$0xff]
    %v3119 = vld [vmem:[#allocation7 + $0x198] sm:$0xff]
    %v3120 = vld [vmem:[#allocation7 + $0x1a0] sm:$0xff]
    %v3121 = vld [vmem:[#allocation7 + $0x1a8] sm:$0xff]
    %v3122 = vld [vmem:[#allocation7 + $0x1b0] sm:$0xff]
    %v3123 = vld [vmem:[#allocation7 + $0x1b8] sm:$0xff]
    %v3124 = vld [vmem:[#allocation7 + $0x1c0] sm:$0xff]
    %v3125 = vld [vmem:[#allocation7 + $0x1c8] sm:$0xff]
    %v3126 = vld [vmem:[#allocation7 + $0x1d0] sm:$0xff]
    %v3127 = vld [vmem:[#allocation7 + $0x1d8] sm:$0xff]
    %v3128 = vld [vmem:[#allocation7 + $0x1e0] sm:$0xff]
    %v3129 = vld [vmem:[#allocation7 + $0x1e8] sm:$0xff]
    %v3130 = vld [vmem:[#allocation7 + $0x1f0] sm:$0xff]
    %v3131 = vld [vmem:[#allocation7 + $0x1f8] sm:$0xff]
    %v3132 = vld [vmem:[%s6] sm:$0x3]
    %v3134 = vlaneseq
    %v3135 = vshrl.u32 %v3134, 7
    %v3136 = vsub.s32 0, %v3135
    %v3137 = vrot.slane %v3132, %v3136
    %v3138 = vlaneseq
    %v3139 = vshrl.u32 %v3138, 7
    %v3140 = vsub.s32 1, %v3139
    %v3141 = vrot.slane %v3132, %v3140
    %v3208 = vunpack.c.l.b16 %v3068
    %v3209 = vunpack.c.h.b16 %v3068
    %v3210 = vunpack.c.l.b16 %v3069
    %v3211 = vunpack.c.h.b16 %v3069
    %v3212 = vunpack.c.l.b16 %v3070
    %v3213 = vunpack.c.h.b16 %v3070
    %v3214 = vunpack.c.l.b16 %v3071
    %v3215 = vunpack.c.h.b16 %v3071
    %v3216 = vunpack.c.l.b16 %v3072
    %v3217 = vunpack.c.h.b16 %v3072
    %v3218 = vunpack.c.l.b16 %v3073
    %v3219 = vunpack.c.h.b16 %v3073
    %v3220 = vunpack.c.l.b16 %v3074
    %v3221 = vunpack.c.h.b16 %v3074
    %v3222 = vunpack.c.l.b16 %v3075
    %v3223 = vunpack.c.h.b16 %v3075
    %v3224 = vunpack.c.l.b16 %v3076
    %v3225 = vunpack.c.h.b16 %v3076
    %v3226 = vunpack.c.l.b16 %v3077
    %v3227 = vunpack.c.h.b16 %v3077
    %v3228 = vunpack.c.l.b16 %v3078
    %v3229 = vunpack.c.h.b16 %v3078
    %v3230 = vunpack.c.l.b16 %v3079
    %v3231 = vunpack.c.h.b16 %v3079
    %v3232 = vunpack.c.l.b16 %v3080
    %v3233 = vunpack.c.h.b16 %v3080
    %v3234 = vunpack.c.l.b16 %v3081
    %v3235 = vunpack.c.h.b16 %v3081
    %v3236 = vunpack.c.l.b16 %v3082
    %v3237 = vunpack.c.h.b16 %v3082
    %v3238 = vunpack.c.l.b16 %v3083
    %v3239 = vunpack.c.h.b16 %v3083
    %v3240 = vunpack.c.l.b16 %v3084
    %v3241 = vunpack.c.h.b16 %v3084
    %v3242 = vunpack.c.l.b16 %v3085
    %v3243 = vunpack.c.h.b16 %v3085
    %v3244 = vunpack.c.l.b16 %v3086
    %v3245 = vunpack.c.h.b16 %v3086
    %v3246 = vunpack.c.l.b16 %v3087
    %v3247 = vunpack.c.h.b16 %v3087
    %v3248 = vunpack.c.l.b16 %v3088
    %v3249 = vunpack.c.h.b16 %v3088
    %v3250 = vunpack.c.l.b16 %v3089
    %v3251 = vunpack.c.h.b16 %v3089
    %v3252 = vunpack.c.l.b16 %v3090
    %v3253 = vunpack.c.h.b16 %v3090
    %v3254 = vunpack.c.l.b16 %v3091
    %v3255 = vunpack.c.h.b16 %v3091
    %v3256 = vunpack.c.l.b16 %v3092
    %v3257 = vunpack.c.h.b16 %v3092
    %v3258 = vunpack.c.l.b16 %v3093
    %v3259 = vunpack.c.h.b16 %v3093
    %v3260 = vunpack.c.l.b16 %v3094
    %v3261 = vunpack.c.h.b16 %v3094
    %v3262 = vunpack.c.l.b16 %v3095
    %v3263 = vunpack.c.h.b16 %v3095
    %v3264 = vunpack.c.l.b16 %v3096
    %v3265 = vunpack.c.h.b16 %v3096
    %v3266 = vunpack.c.l.b16 %v3097
    %v3267 = vunpack.c.h.b16 %v3097
    %v3268 = vunpack.c.l.b16 %v3098
    %v3269 = vunpack.c.h.b16 %v3098
    %v3270 = vunpack.c.l.b16 %v3099
    %v3271 = vunpack.c.h.b16 %v3099
    %v3272 = vunpack.c.l.b16 %v3100
    %v3273 = vunpack.c.h.b16 %v3100
    %v3274 = vunpack.c.l.b16 %v3101
    %v3275 = vunpack.c.h.b16 %v3101
    %v3276 = vunpack.c.l.b16 %v3102
    %v3277 = vunpack.c.h.b16 %v3102
    %v3278 = vunpack.c.l.b16 %v3103
    %v3279 = vunpack.c.h.b16 %v3103
    %v3280 = vunpack.c.l.b16 %v3104
    %v3281 = vunpack.c.h.b16 %v3104
    %v3282 = vunpack.c.l.b16 %v3105
    %v3283 = vunpack.c.h.b16 %v3105
    %v3284 = vunpack.c.l.b16 %v3106
    %v3285 = vunpack.c.h.b16 %v3106
    %v3286 = vunpack.c.l.b16 %v3107
    %v3287 = vunpack.c.h.b16 %v3107
    %v3288 = vunpack.c.l.b16 %v3108
    %v3289 = vunpack.c.h.b16 %v3108
    %v3290 = vunpack.c.l.b16 %v3109
    %v3291 = vunpack.c.h.b16 %v3109
    %v3292 = vunpack.c.l.b16 %v3110
    %v3293 = vunpack.c.h.b16 %v3110
    %v3294 = vunpack.c.l.b16 %v3111
    %v3295 = vunpack.c.h.b16 %v3111
    %v3296 = vunpack.c.l.b16 %v3112
    %v3297 = vunpack.c.h.b16 %v3112
    %v3298 = vunpack.c.l.b16 %v3113
    %v3299 = vunpack.c.h.b16 %v3113
    %v3300 = vunpack.c.l.b16 %v3114
    %v3301 = vunpack.c.h.b16 %v3114
    %v3302 = vunpack.c.l.b16 %v3115
    %v3303 = vunpack.c.h.b16 %v3115
    %v3304 = vunpack.c.l.b16 %v3116
    %v3305 = vunpack.c.h.b16 %v3116
    %v3306 = vunpack.c.l.b16 %v3117
    %v3307 = vunpack.c.h.b16 %v3117
    %v3308 = vunpack.c.l.b16 %v3118
    %v3309 = vunpack.c.h.b16 %v3118
    %v3310 = vunpack.c.l.b16 %v3119
    %v3311 = vunpack.c.h.b16 %v3119
    %v3312 = vunpack.c.l.b16 %v3120
    %v3313 = vunpack.c.h.b16 %v3120
    %v3314 = vunpack.c.l.b16 %v3121
    %v3315 = vunpack.c.h.b16 %v3121
    %v3316 = vunpack.c.l.b16 %v3122
    %v3317 = vunpack.c.h.b16 %v3122
    %v3318 = vunpack.c.l.b16 %v3123
    %v3319 = vunpack.c.h.b16 %v3123
    %v3320 = vunpack.c.l.b16 %v3124
    %v3321 = vunpack.c.h.b16 %v3124
    %v3322 = vunpack.c.l.b16 %v3125
    %v3323 = vunpack.c.h.b16 %v3125
    %v3324 = vunpack.c.l.b16 %v3126
    %v3325 = vunpack.c.h.b16 %v3126
    %v3326 = vunpack.c.l.b16 %v3127
    %v3327 = vunpack.c.h.b16 %v3127
    %v3328 = vunpack.c.l.b16 %v3128
    %v3329 = vunpack.c.h.b16 %v3128
    %v3330 = vunpack.c.l.b16 %v3129
    %v3331 = vunpack.c.h.b16 %v3129
    %v3332 = vunpack.c.l.b16 %v3130
    %v3333 = vunpack.c.h.b16 %v3130
    %v3334 = vunpack.c.l.b16 %v3131
    %v3335 = vunpack.c.h.b16 %v3131
    %v3336 = vpack.c.b16 %v3210, %v3208
    %v3337 = vpack.c.b16 %v3211, %v3209
    %v3338 = vpack.c.b16 %v3214, %v3212
    %v3339 = vpack.c.b16 %v3215, %v3213
    %v3340 = vpack.c.b16 %v3218, %v3216
    %v3341 = vpack.c.b16 %v3219, %v3217
    %v3342 = vpack.c.b16 %v3222, %v3220
    %v3343 = vpack.c.b16 %v3223, %v3221
    %v3344 = vpack.c.b16 %v3226, %v3224
    %v3345 = vpack.c.b16 %v3227, %v3225
    %v3346 = vpack.c.b16 %v3230, %v3228
    %v3347 = vpack.c.b16 %v3231, %v3229
    %v3348 = vpack.c.b16 %v3234, %v3232
    %v3349 = vpack.c.b16 %v3235, %v3233
    %v3350 = vpack.c.b16 %v3238, %v3236
    %v3351 = vpack.c.b16 %v3239, %v3237
    %v3352 = vpack.c.b16 %v3242, %v3240
    %v3353 = vpack.c.b16 %v3243, %v3241
    %v3354 = vpack.c.b16 %v3246, %v3244
    %v3355 = vpack.c.b16 %v3247, %v3245
    %v3356 = vpack.c.b16 %v3250, %v3248
    %v3357 = vpack.c.b16 %v3251, %v3249
    %v3358 = vpack.c.b16 %v3254, %v3252
    %v3359 = vpack.c.b16 %v3255, %v3253
    %v3360 = vpack.c.b16 %v3258, %v3256
    %v3361 = vpack.c.b16 %v3259, %v3257
    %v3362 = vpack.c.b16 %v3262, %v3260
    %v3363 = vpack.c.b16 %v3263, %v3261
    %v3364 = vpack.c.b16 %v3266, %v3264
    %v3365 = vpack.c.b16 %v3267, %v3265
    %v3366 = vpack.c.b16 %v3270, %v3268
    %v3367 = vpack.c.b16 %v3271, %v3269
    %v3368 = vpack.c.b16 %v3274, %v3272
    %v3369 = vpack.c.b16 %v3275, %v3273
    %v3370 = vpack.c.b16 %v3278, %v3276
    %v3371 = vpack.c.b16 %v3279, %v3277
    %v3372 = vpack.c.b16 %v3282, %v3280
    %v3373 = vpack.c.b16 %v3283, %v3281
    %v3374 = vpack.c.b16 %v3286, %v3284
    %v3375 = vpack.c.b16 %v3287, %v3285
    %v3376 = vpack.c.b16 %v3290, %v3288
    %v3377 = vpack.c.b16 %v3291, %v3289
    %v3378 = vpack.c.b16 %v3294, %v3292
    %v3379 = vpack.c.b16 %v3295, %v3293
    %v3380 = vpack.c.b16 %v3298, %v3296
    %v3381 = vpack.c.b16 %v3299, %v3297
    %v3382 = vpack.c.b16 %v3302, %v3300
    %v3383 = vpack.c.b16 %v3303, %v3301
    %v3384 = vpack.c.b16 %v3306, %v3304
    %v3385 = vpack.c.b16 %v3307, %v3305
    %v3386 = vpack.c.b16 %v3310, %v3308
    %v3387 = vpack.c.b16 %v3311, %v3309
    %v3388 = vpack.c.b16 %v3314, %v3312
    %v3389 = vpack.c.b16 %v3315, %v3313
    %v3390 = vpack.c.b16 %v3318, %v3316
    %v3391 = vpack.c.b16 %v3319, %v3317
    %v3392 = vpack.c.b16 %v3322, %v3320
    %v3393 = vpack.c.b16 %v3323, %v3321
    %v3394 = vpack.c.b16 %v3326, %v3324
    %v3395 = vpack.c.b16 %v3327, %v3325
    %v3396 = vpack.c.b16 %v3330, %v3328
    %v3397 = vpack.c.b16 %v3331, %v3329
    %v3398 = vpack.c.b16 %v3334, %v3332
    %v3399 = vpack.c.b16 %v3335, %v3333
    %3464 = vmatprep.subr.bf16.mxu0 %v3337
    %3465 = vmatpush1.bf16.msra.mxu0 %v3336
    %3466 = vmatprep.subr.bf16.mxu0 %v3339
    %3467 = vmatpush1.bf16.msra.mxu0 %v3338
    %3468 = vmatprep.subr.bf16.mxu0 %v3341
    %3469 = vmatpush1.bf16.msra.mxu0 %v3340
    %3470 = vmatprep.subr.bf16.mxu0 %v3343
    %3471 = vmatpush1.bf16.msra.mxu0 %v3342
    %3472 = vmatprep.subr.bf16.mxu0 %v3345
    %3473 = vmatpush1.bf16.msra.mxu0 %v3344
    %3474 = vmatprep.subr.bf16.mxu0 %v3347
    %3475 = vmatpush1.bf16.msra.mxu0 %v3346
    %3476 = vmatprep.subr.bf16.mxu0 %v3349
    %3477 = vmatpush1.bf16.msra.mxu0 %v3348
    %3478 = vmatprep.subr.bf16.mxu0 %v3351
    %3479 = vmatpush1.bf16.msra.mxu0 %v3350
    %3480 = vmatprep.subr.bf16.mxu0 %v3353
    %3481 = vmatpush1.bf16.msra.mxu0 %v3352
    %3482 = vmatprep.subr.bf16.mxu0 %v3355
    %3483 = vmatpush1.bf16.msra.mxu0 %v3354
    %3484 = vmatprep.subr.bf16.mxu0 %v3357
    %3485 = vmatpush1.bf16.msra.mxu0 %v3356
    %3486 = vmatprep.subr.bf16.mxu0 %v3359
    %3487 = vmatpush1.bf16.msra.mxu0 %v3358
    %3488 = vmatprep.subr.bf16.mxu0 %v3361
    %3489 = vmatpush1.bf16.msra.mxu0 %v3360
    %3490 = vmatprep.subr.bf16.mxu0 %v3363
    %3491 = vmatpush1.bf16.msra.mxu0 %v3362
    %3492 = vmatprep.subr.bf16.mxu0 %v3365
    %3493 = vmatpush1.bf16.msra.mxu0 %v3364
    %3494 = vmatprep.subr.bf16.mxu0 %v3367
    %3495 = vmatpush1.bf16.msra.mxu0 %v3366
    %3496 = vmatprep.mubr.bf16.mxu0 %v3065
    %3497 = vmatmul.mubr.bf16.gmra.mrb[0].mxu0 %v3064
    %v3498 = vpop.f32.mrb[0].mxu0
    %v3499 = vadd.f32 %v3137, %v3498
    %v3500 = vpop.f32.mrb[0].mxu0
    %v3501 = vadd.f32 %v3141, %v3500
    %v3502 = vpop.f32.mrb[0].mxu0
    %v3503 = vpop.f32.mrb[0].mxu0
    %3504 = vdwg.mxu0
    %3505 = vmatprep.subr.bf16.mxu0 %v3369
    %3506 = vmatpush1.bf16.msra.mxu0 %v3368
    %3507 = vmatprep.subr.bf16.mxu0 %v3371
    %3508 = vmatpush1.bf16.msra.mxu0 %v3370
    %3509 = vmatprep.subr.bf16.mxu0 %v3373
    %3510 = vmatpush1.bf16.msra.mxu0 %v3372
    %3511 = vmatprep.subr.bf16.mxu0 %v3375
    %3512 = vmatpush1.bf16.msra.mxu0 %v3374
    %3513 = vmatprep.subr.bf16.mxu0 %v3377
    %3514 = vmatpush1.bf16.msra.mxu0 %v3376
    %3515 = vmatprep.subr.bf16.mxu0 %v3379
    %3516 = vmatpush1.bf16.msra.mxu0 %v3378
    %3517 = vmatprep.subr.bf16.mxu0 %v3381
    %3518 = vmatpush1.bf16.msra.mxu0 %v3380
    %3519 = vmatprep.subr.bf16.mxu0 %v3383
    %3520 = vmatpush1.bf16.msra.mxu0 %v3382
    %3521 = vmatprep.subr.bf16.mxu0 %v3385
    %3522 = vmatpush1.bf16.msra.mxu0 %v3384
    %3523 = vmatprep.subr.bf16.mxu0 %v3387
    %3524 = vmatpush1.bf16.msra.mxu0 %v3386
    %3525 = vmatprep.subr.bf16.mxu0 %v3389
    %3526 = vmatpush1.bf16.msra.mxu0 %v3388
    %3527 = vmatprep.subr.bf16.mxu0 %v3391
    %3528 = vmatpush1.bf16.msra.mxu0 %v3390
    %3529 = vmatprep.subr.bf16.mxu0 %v3393
    %3530 = vmatpush1.bf16.msra.mxu0 %v3392
    %3531 = vmatprep.subr.bf16.mxu0 %v3395
    %3532 = vmatpush1.bf16.msra.mxu0 %v3394
    %3533 = vmatprep.subr.bf16.mxu0 %v3397
    %3534 = vmatpush1.bf16.msra.mxu0 %v3396
    %3535 = vmatprep.subr.bf16.mxu0 %v3399
    %3536 = vmatpush1.bf16.msra.mxu0 %v3398
    %3537 = vmatprep.mubr.bf16.mxu0 %v3067
    %3538 = vmatmul.mubr.bf16.gmra.mrb[0].mxu0 %v3066
    %v3539 = vpop.f32.mrb[0].mxu0
    %v3540 = vadd.f32 %v3499, %v3539
    %v3541 = vpop.f32.mrb[0].mxu0
    %v3542 = vadd.f32 %v3501, %v3541
    %v3543 = vpop.f32.mrb[0].mxu0
    %v3544 = vpop.f32.mrb[0].mxu0
    %3545 = vdwg.mxu0
    %v3546 = vmax.f32 %v3540, 0.0
    %v3547 = vmax.f32 %v3542, 0.0
    %v3548 = vpack.c.bf16 %v174, %v174
    %v3549 = vpack.c.bf16 %v175, %v175
    %v3550 = vpack.c.bf16 %v176, %v176
    %v3551 = vpack.c.bf16 %v177, %v177
    %v3552 = vpack.c.bf16 %v178, %v178
    %v3553 = vpack.c.bf16 %v179, %v179
    %v3554 = vpack.c.bf16 %v180, %v180
    %v3555 = vpack.c.bf16 %v181, %v181
    %v3556 = vld [vmem:[#allocation9] sm:$0xf]
    %v3557 = vld [vmem:[#allocation9 + $0x4] sm:$0xf]
    %v3558 = vld [vmem:[#allocation9 + $0x8] sm:$0xf]
    %v3559 = vld [vmem:[#allocation9 + $0xc] sm:$0xf]
    %v3560 = vld [vmem:[#allocation9 + $0x10] sm:$0xf]
    %v3561 = vld [vmem:[#allocation9 + $0x14] sm:$0xf]
    %v3562 = vld [vmem:[#allocation9 + $0x18] sm:$0xf]
    %v3563 = vld [vmem:[#allocation9 + $0x1c] sm:$0xf]
    %v3564 = vld [vmem:[#allocation9 + $0x20] sm:$0xf]
    %v3565 = vld [vmem:[#allocation9 + $0x24] sm:$0xf]
    %v3566 = vld [vmem:[#allocation9 + $0x28] sm:$0xf]
    %v3567 = vld [vmem:[#allocation9 + $0x2c] sm:$0xf]
    %v3568 = vld [vmem:[#allocation9 + $0x30] sm:$0xf]
    %v3569 = vld [vmem:[#allocation9 + $0x34] sm:$0xf]
    %v3570 = vld [vmem:[#allocation9 + $0x38] sm:$0xf]
    %v3571 = vld [vmem:[#allocation9 + $0x3c] sm:$0xf]
    %v3572 = vld [vmem:[#allocation9 + $0x40] sm:$0xf]
    %v3573 = vld [vmem:[#allocation9 + $0x44] sm:$0xf]
    %v3574 = vld [vmem:[#allocation9 + $0x48] sm:$0xf]
    %v3575 = vld [vmem:[#allocation9 + $0x4c] sm:$0xf]
    %v3576 = vld [vmem:[#allocation9 + $0x50] sm:$0xf]
    %v3577 = vld [vmem:[#allocation9 + $0x54] sm:$0xf]
    %v3578 = vld [vmem:[#allocation9 + $0x58] sm:$0xf]
    %v3579 = vld [vmem:[#allocation9 + $0x5c] sm:$0xf]
    %v3580 = vld [vmem:[#allocation9 + $0x60] sm:$0xf]
    %v3581 = vld [vmem:[#allocation9 + $0x64] sm:$0xf]
    %v3582 = vld [vmem:[#allocation9 + $0x68] sm:$0xf]
    %v3583 = vld [vmem:[#allocation9 + $0x6c] sm:$0xf]
    %v3584 = vld [vmem:[#allocation9 + $0x70] sm:$0xf]
    %v3585 = vld [vmem:[#allocation9 + $0x74] sm:$0xf]
    %v3586 = vld [vmem:[#allocation9 + $0x78] sm:$0xf]
    %v3587 = vld [vmem:[#allocation9 + $0x7c] sm:$0xf]
    %v3588 = vld [vmem:[#allocation9 + $0x80] sm:$0xf]
    %v3589 = vld [vmem:[#allocation9 + $0x84] sm:$0xf]
    %v3590 = vld [vmem:[#allocation9 + $0x88] sm:$0xf]
    %v3591 = vld [vmem:[#allocation9 + $0x8c] sm:$0xf]
    %v3592 = vld [vmem:[#allocation9 + $0x90] sm:$0xf]
    %v3593 = vld [vmem:[#allocation9 + $0x94] sm:$0xf]
    %v3594 = vld [vmem:[#allocation9 + $0x98] sm:$0xf]
    %v3595 = vld [vmem:[#allocation9 + $0x9c] sm:$0xf]
    %v3596 = vld [vmem:[#allocation9 + $0xa0] sm:$0xf]
    %v3597 = vld [vmem:[#allocation9 + $0xa4] sm:$0xf]
    %v3598 = vld [vmem:[#allocation9 + $0xa8] sm:$0xf]
    %v3599 = vld [vmem:[#allocation9 + $0xac] sm:$0xf]
    %v3600 = vld [vmem:[#allocation9 + $0xb0] sm:$0xf]
    %v3601 = vld [vmem:[#allocation9 + $0xb4] sm:$0xf]
    %v3602 = vld [vmem:[#allocation9 + $0xb8] sm:$0xf]
    %v3603 = vld [vmem:[#allocation9 + $0xbc] sm:$0xf]
    %v3604 = vld [vmem:[#allocation9 + $0xc0] sm:$0xf]
    %v3605 = vld [vmem:[#allocation9 + $0xc4] sm:$0xf]
    %v3606 = vld [vmem:[#allocation9 + $0xc8] sm:$0xf]
    %v3607 = vld [vmem:[#allocation9 + $0xcc] sm:$0xf]
    %v3608 = vld [vmem:[#allocation9 + $0xd0] sm:$0xf]
    %v3609 = vld [vmem:[#allocation9 + $0xd4] sm:$0xf]
    %v3610 = vld [vmem:[#allocation9 + $0xd8] sm:$0xf]
    %v3611 = vld [vmem:[#allocation9 + $0xdc] sm:$0xf]
    %v3612 = vld [vmem:[#allocation9 + $0xe0] sm:$0xf]
    %v3613 = vld [vmem:[#allocation9 + $0xe4] sm:$0xf]
    %v3614 = vld [vmem:[#allocation9 + $0xe8] sm:$0xf]
    %v3615 = vld [vmem:[#allocation9 + $0xec] sm:$0xf]
    %v3616 = vld [vmem:[#allocation9 + $0xf0] sm:$0xf]
    %v3617 = vld [vmem:[#allocation9 + $0xf4] sm:$0xf]
    %v3618 = vld [vmem:[#allocation9 + $0xf8] sm:$0xf]
    %v3619 = vld [vmem:[#allocation9 + $0xfc] sm:$0xf]
    %v3620 = vld [vmem:[#allocation9 + $0x100] sm:$0xf]
    %v3621 = vld [vmem:[#allocation9 + $0x104] sm:$0xf]
    %v3622 = vld [vmem:[#allocation9 + $0x108] sm:$0xf]
    %v3623 = vld [vmem:[#allocation9 + $0x10c] sm:$0xf]
    %v3624 = vld [vmem:[#allocation9 + $0x110] sm:$0xf]
    %v3625 = vld [vmem:[#allocation9 + $0x114] sm:$0xf]
    %v3626 = vld [vmem:[#allocation9 + $0x118] sm:$0xf]
    %v3627 = vld [vmem:[#allocation9 + $0x11c] sm:$0xf]
    %v3628 = vld [vmem:[#allocation9 + $0x120] sm:$0xf]
    %v3629 = vld [vmem:[#allocation9 + $0x124] sm:$0xf]
    %v3630 = vld [vmem:[#allocation9 + $0x128] sm:$0xf]
    %v3631 = vld [vmem:[#allocation9 + $0x12c] sm:$0xf]
    %v3632 = vld [vmem:[#allocation9 + $0x130] sm:$0xf]
    %v3633 = vld [vmem:[#allocation9 + $0x134] sm:$0xf]
    %v3634 = vld [vmem:[#allocation9 + $0x138] sm:$0xf]
    %v3635 = vld [vmem:[#allocation9 + $0x13c] sm:$0xf]
    %v3636 = vld [vmem:[#allocation9 + $0x140] sm:$0xf]
    %v3637 = vld [vmem:[#allocation9 + $0x144] sm:$0xf]
    %v3638 = vld [vmem:[#allocation9 + $0x148] sm:$0xf]
    %v3639 = vld [vmem:[#allocation9 + $0x14c] sm:$0xf]
    %v3640 = vld [vmem:[#allocation9 + $0x150] sm:$0xf]
    %v3641 = vld [vmem:[#allocation9 + $0x154] sm:$0xf]
    %v3642 = vld [vmem:[#allocation9 + $0x158] sm:$0xf]
    %v3643 = vld [vmem:[#allocation9 + $0x15c] sm:$0xf]
    %v3644 = vld [vmem:[#allocation9 + $0x160] sm:$0xf]
    %v3645 = vld [vmem:[#allocation9 + $0x164] sm:$0xf]
    %v3646 = vld [vmem:[#allocation9 + $0x168] sm:$0xf]
    %v3647 = vld [vmem:[#allocation9 + $0x16c] sm:$0xf]
    %v3648 = vld [vmem:[#allocation9 + $0x170] sm:$0xf]
    %v3649 = vld [vmem:[#allocation9 + $0x174] sm:$0xf]
    %v3650 = vld [vmem:[#allocation9 + $0x178] sm:$0xf]
    %v3651 = vld [vmem:[#allocation9 + $0x17c] sm:$0xf]
    %v3652 = vld [vmem:[#allocation9 + $0x180] sm:$0xf]
    %v3653 = vld [vmem:[#allocation9 + $0x184] sm:$0xf]
    %v3654 = vld [vmem:[#allocation9 + $0x188] sm:$0xf]
    %v3655 = vld [vmem:[#allocation9 + $0x18c] sm:$0xf]
    %v3656 = vld [vmem:[#allocation9 + $0x190] sm:$0xf]
    %v3657 = vld [vmem:[#allocation9 + $0x194] sm:$0xf]
    %v3658 = vld [vmem:[#allocation9 + $0x198] sm:$0xf]
    %v3659 = vld [vmem:[#allocation9 + $0x19c] sm:$0xf]
    %v3660 = vld [vmem:[#allocation9 + $0x1a0] sm:$0xf]
    %v3661 = vld [vmem:[#allocation9 + $0x1a4] sm:$0xf]
    %v3662 = vld [vmem:[#allocation9 + $0x1a8] sm:$0xf]
    %v3663 = vld [vmem:[#allocation9 + $0x1ac] sm:$0xf]
    %v3664 = vld [vmem:[#allocation9 + $0x1b0] sm:$0xf]
    %v3665 = vld [vmem:[#allocation9 + $0x1b4] sm:$0xf]
    %v3666 = vld [vmem:[#allocation9 + $0x1b8] sm:$0xf]
    %v3667 = vld [vmem:[#allocation9 + $0x1bc] sm:$0xf]
    %v3668 = vld [vmem:[#allocation9 + $0x1c0] sm:$0xf]
    %v3669 = vld [vmem:[#allocation9 + $0x1c4] sm:$0xf]
    %v3670 = vld [vmem:[#allocation9 + $0x1c8] sm:$0xf]
    %v3671 = vld [vmem:[#allocation9 + $0x1cc] sm:$0xf]
    %v3672 = vld [vmem:[#allocation9 + $0x1d0] sm:$0xf]
    %v3673 = vld [vmem:[#allocation9 + $0x1d4] sm:$0xf]
    %v3674 = vld [vmem:[#allocation9 + $0x1d8] sm:$0xf]
    %v3675 = vld [vmem:[#allocation9 + $0x1dc] sm:$0xf]
    %v3676 = vld [vmem:[#allocation9 + $0x1e0] sm:$0xf]
    %v3677 = vld [vmem:[#allocation9 + $0x1e4] sm:$0xf]
    %v3678 = vld [vmem:[#allocation9 + $0x1e8] sm:$0xf]
    %v3679 = vld [vmem:[#allocation9 + $0x1ec] sm:$0xf]
    %v3680 = vld [vmem:[#allocation9 + $0x1f0] sm:$0xf]
    %v3681 = vld [vmem:[#allocation9 + $0x1f4] sm:$0xf]
    %v3682 = vld [vmem:[#allocation9 + $0x1f8] sm:$0xf]
    %v3683 = vld [vmem:[#allocation9 + $0x1fc] sm:$0xf]
    %v3684 = vld [vmem:[#allocation10] sm:$0x1]
    %v3686 = vlaneseq
    %v3687 = vshrl.u32 %v3686, 7
    %v3688 = vsub.s32 0, %v3687
    %v3689 = vrot.slane %v3684, %v3688
    %v3819 = vunpack.c.l.b16 %v3556
    %v3820 = vunpack.c.l.b16 %v3557
    %v3821 = vunpack.c.l.b16 %v3558
    %v3822 = vunpack.c.l.b16 %v3559
    %v3823 = vunpack.c.l.b16 %v3560
    %v3824 = vunpack.c.l.b16 %v3561
    %v3825 = vunpack.c.l.b16 %v3562
    %v3826 = vunpack.c.l.b16 %v3563
    %v3827 = vunpack.c.l.b16 %v3564
    %v3828 = vunpack.c.l.b16 %v3565
    %v3829 = vunpack.c.l.b16 %v3566
    %v3830 = vunpack.c.l.b16 %v3567
    %v3831 = vunpack.c.l.b16 %v3568
    %v3832 = vunpack.c.l.b16 %v3569
    %v3833 = vunpack.c.l.b16 %v3570
    %v3834 = vunpack.c.l.b16 %v3571
    %v3835 = vunpack.c.l.b16 %v3572
    %v3836 = vunpack.c.l.b16 %v3573
    %v3837 = vunpack.c.l.b16 %v3574
    %v3838 = vunpack.c.l.b16 %v3575
    %v3839 = vunpack.c.l.b16 %v3576
    %v3840 = vunpack.c.l.b16 %v3577
    %v3841 = vunpack.c.l.b16 %v3578
    %v3842 = vunpack.c.l.b16 %v3579
    %v3843 = vunpack.c.l.b16 %v3580
    %v3844 = vunpack.c.l.b16 %v3581
    %v3845 = vunpack.c.l.b16 %v3582
    %v3846 = vunpack.c.l.b16 %v3583
    %v3847 = vunpack.c.l.b16 %v3584
    %v3848 = vunpack.c.l.b16 %v3585
    %v3849 = vunpack.c.l.b16 %v3586
    %v3850 = vunpack.c.l.b16 %v3587
    %v3851 = vunpack.c.l.b16 %v3588
    %v3852 = vunpack.c.l.b16 %v3589
    %v3853 = vunpack.c.l.b16 %v3590
    %v3854 = vunpack.c.l.b16 %v3591
    %v3855 = vunpack.c.l.b16 %v3592
    %v3856 = vunpack.c.l.b16 %v3593
    %v3857 = vunpack.c.l.b16 %v3594
    %v3858 = vunpack.c.l.b16 %v3595
    %v3859 = vunpack.c.l.b16 %v3596
    %v3860 = vunpack.c.l.b16 %v3597
    %v3861 = vunpack.c.l.b16 %v3598
    %v3862 = vunpack.c.l.b16 %v3599
    %v3863 = vunpack.c.l.b16 %v3600
    %v3864 = vunpack.c.l.b16 %v3601
    %v3865 = vunpack.c.l.b16 %v3602
    %v3866 = vunpack.c.l.b16 %v3603
    %v3867 = vunpack.c.l.b16 %v3604
    %v3868 = vunpack.c.l.b16 %v3605
    %v3869 = vunpack.c.l.b16 %v3606
    %v3870 = vunpack.c.l.b16 %v3607
    %v3871 = vunpack.c.l.b16 %v3608
    %v3872 = vunpack.c.l.b16 %v3609
    %v3873 = vunpack.c.l.b16 %v3610
    %v3874 = vunpack.c.l.b16 %v3611
    %v3875 = vunpack.c.l.b16 %v3612
    %v3876 = vunpack.c.l.b16 %v3613
    %v3877 = vunpack.c.l.b16 %v3614
    %v3878 = vunpack.c.l.b16 %v3615
    %v3879 = vunpack.c.l.b16 %v3616
    %v3880 = vunpack.c.l.b16 %v3617
    %v3881 = vunpack.c.l.b16 %v3618
    %v3882 = vunpack.c.l.b16 %v3619
    %v3883 = vunpack.c.l.b16 %v3620
    %v3884 = vunpack.c.l.b16 %v3621
    %v3885 = vunpack.c.l.b16 %v3622
    %v3886 = vunpack.c.l.b16 %v3623
    %v3887 = vunpack.c.l.b16 %v3624
    %v3888 = vunpack.c.l.b16 %v3625
    %v3889 = vunpack.c.l.b16 %v3626
    %v3890 = vunpack.c.l.b16 %v3627
    %v3891 = vunpack.c.l.b16 %v3628
    %v3892 = vunpack.c.l.b16 %v3629
    %v3893 = vunpack.c.l.b16 %v3630
    %v3894 = vunpack.c.l.b16 %v3631
    %v3895 = vunpack.c.l.b16 %v3632
    %v3896 = vunpack.c.l.b16 %v3633
    %v3897 = vunpack.c.l.b16 %v3634
    %v3898 = vunpack.c.l.b16 %v3635
    %v3899 = vunpack.c.l.b16 %v3636
    %v3900 = vunpack.c.l.b16 %v3637
    %v3901 = vunpack.c.l.b16 %v3638
    %v3902 = vunpack.c.l.b16 %v3639
    %v3903 = vunpack.c.l.b16 %v3640
    %v3904 = vunpack.c.l.b16 %v3641
    %v3905 = vunpack.c.l.b16 %v3642
    %v3906 = vunpack.c.l.b16 %v3643
    %v3907 = vunpack.c.l.b16 %v3644
    %v3908 = vunpack.c.l.b16 %v3645
    %v3909 = vunpack.c.l.b16 %v3646
    %v3910 = vunpack.c.l.b16 %v3647
    %v3911 = vunpack.c.l.b16 %v3648
    %v3912 = vunpack.c.l.b16 %v3649
    %v3913 = vunpack.c.l.b16 %v3650
    %v3914 = vunpack.c.l.b16 %v3651
    %v3915 = vunpack.c.l.b16 %v3652
    %v3916 = vunpack.c.l.b16 %v3653
    %v3917 = vunpack.c.l.b16 %v3654
    %v3918 = vunpack.c.l.b16 %v3655
    %v3919 = vunpack.c.l.b16 %v3656
    %v3920 = vunpack.c.l.b16 %v3657
    %v3921 = vunpack.c.l.b16 %v3658
    %v3922 = vunpack.c.l.b16 %v3659
    %v3923 = vunpack.c.l.b16 %v3660
    %v3924 = vunpack.c.l.b16 %v3661
    %v3925 = vunpack.c.l.b16 %v3662
    %v3926 = vunpack.c.l.b16 %v3663
    %v3927 = vunpack.c.l.b16 %v3664
    %v3928 = vunpack.c.l.b16 %v3665
    %v3929 = vunpack.c.l.b16 %v3666
    %v3930 = vunpack.c.l.b16 %v3667
    %v3931 = vunpack.c.l.b16 %v3668
    %v3932 = vunpack.c.l.b16 %v3669
    %v3933 = vunpack.c.l.b16 %v3670
    %v3934 = vunpack.c.l.b16 %v3671
    %v3935 = vunpack.c.l.b16 %v3672
    %v3936 = vunpack.c.l.b16 %v3673
    %v3937 = vunpack.c.l.b16 %v3674
    %v3938 = vunpack.c.l.b16 %v3675
    %v3939 = vunpack.c.l.b16 %v3676
    %v3940 = vunpack.c.l.b16 %v3677
    %v3941 = vunpack.c.l.b16 %v3678
    %v3942 = vunpack.c.l.b16 %v3679
    %v3943 = vunpack.c.l.b16 %v3680
    %v3944 = vunpack.c.l.b16 %v3681
    %v3945 = vunpack.c.l.b16 %v3682
    %v3946 = vunpack.c.l.b16 %v3683
    %v3947 = vpack.c.b16 %v3820, %v3819
    %v3948 = vpack.c.b16 %v3822, %v3821
    %v3949 = vpack.c.b16 %v3824, %v3823
    %v3950 = vpack.c.b16 %v3826, %v3825
    %v3951 = vpack.c.b16 %v3828, %v3827
    %v3952 = vpack.c.b16 %v3830, %v3829
    %v3953 = vpack.c.b16 %v3832, %v3831
    %v3954 = vpack.c.b16 %v3834, %v3833
    %v3955 = vpack.c.b16 %v3836, %v3835
    %v3956 = vpack.c.b16 %v3838, %v3837
    %v3957 = vpack.c.b16 %v3840, %v3839
    %v3958 = vpack.c.b16 %v3842, %v3841
    %v3959 = vpack.c.b16 %v3844, %v3843
    %v3960 = vpack.c.b16 %v3846, %v3845
    %v3961 = vpack.c.b16 %v3848, %v3847
    %v3962 = vpack.c.b16 %v3850, %v3849
    %v3963 = vpack.c.b16 %v3852, %v3851
    %v3964 = vpack.c.b16 %v3854, %v3853
    %v3965 = vpack.c.b16 %v3856, %v3855
    %v3966 = vpack.c.b16 %v3858, %v3857
    %v3967 = vpack.c.b16 %v3860, %v3859
    %v3968 = vpack.c.b16 %v3862, %v3861
    %v3969 = vpack.c.b16 %v3864, %v3863
    %v3970 = vpack.c.b16 %v3866, %v3865
    %v3971 = vpack.c.b16 %v3868, %v3867
    %v3972 = vpack.c.b16 %v3870, %v3869
    %v3973 = vpack.c.b16 %v3872, %v3871
    %v3974 = vpack.c.b16 %v3874, %v3873
    %v3975 = vpack.c.b16 %v3876, %v3875
    %v3976 = vpack.c.b16 %v3878, %v3877
    %v3977 = vpack.c.b16 %v3880, %v3879
    %v3978 = vpack.c.b16 %v3882, %v3881
    %v3979 = vpack.c.b16 %v3884, %v3883
    %v3980 = vpack.c.b16 %v3886, %v3885
    %v3981 = vpack.c.b16 %v3888, %v3887
    %v3982 = vpack.c.b16 %v3890, %v3889
    %v3983 = vpack.c.b16 %v3892, %v3891
    %v3984 = vpack.c.b16 %v3894, %v3893
    %v3985 = vpack.c.b16 %v3896, %v3895
    %v3986 = vpack.c.b16 %v3898, %v3897
    %v3987 = vpack.c.b16 %v3900, %v3899
    %v3988 = vpack.c.b16 %v3902, %v3901
    %v3989 = vpack.c.b16 %v3904, %v3903
    %v3990 = vpack.c.b16 %v3906, %v3905
    %v3991 = vpack.c.b16 %v3908, %v3907
    %v3992 = vpack.c.b16 %v3910, %v3909
    %v3993 = vpack.c.b16 %v3912, %v3911
    %v3994 = vpack.c.b16 %v3914, %v3913
    %v3995 = vpack.c.b16 %v3916, %v3915
    %v3996 = vpack.c.b16 %v3918, %v3917
    %v3997 = vpack.c.b16 %v3920, %v3919
    %v3998 = vpack.c.b16 %v3922, %v3921
    %v3999 = vpack.c.b16 %v3924, %v3923
    %v4000 = vpack.c.b16 %v3926, %v3925
    %v4001 = vpack.c.b16 %v3928, %v3927
    %v4002 = vpack.c.b16 %v3930, %v3929
    %v4003 = vpack.c.b16 %v3932, %v3931
    %v4004 = vpack.c.b16 %v3934, %v3933
    %v4005 = vpack.c.b16 %v3936, %v3935
    %v4006 = vpack.c.b16 %v3938, %v3937
    %v4007 = vpack.c.b16 %v3940, %v3939
    %v4008 = vpack.c.b16 %v3942, %v3941
    %v4009 = vpack.c.b16 %v3944, %v3943
    %v4010 = vpack.c.b16 %v3946, %v3945
    %4075 = vmatprep.subr.bf16.mxu0 0
    %4076 = vmatpush1.bf16.msra.mxu0 %v3947
    %4077 = vmatprep.subr.bf16.mxu0 0
    %4078 = vmatpush1.bf16.msra.mxu0 %v3948
    %4079 = vmatprep.subr.bf16.mxu0 0
    %4080 = vmatpush1.bf16.msra.mxu0 %v3949
    %4081 = vmatprep.subr.bf16.mxu0 0
    %4082 = vmatpush1.bf16.msra.mxu0 %v3950
    %4083 = vmatprep.subr.bf16.mxu0 0
    %4084 = vmatpush1.bf16.msra.mxu0 %v3951
    %4085 = vmatprep.subr.bf16.mxu0 0
    %4086 = vmatpush1.bf16.msra.mxu0 %v3952
    %4087 = vmatprep.subr.bf16.mxu0 0
    %4088 = vmatpush1.bf16.msra.mxu0 %v3953
    %4089 = vmatprep.subr.bf16.mxu0 0
    %4090 = vmatpush1.bf16.msra.mxu0 %v3954
    %4091 = vmatprep.subr.bf16.mxu0 0
    %4092 = vmatpush1.bf16.msra.mxu0 %v3955
    %4093 = vmatprep.subr.bf16.mxu0 0
    %4094 = vmatpush1.bf16.msra.mxu0 %v3956
    %4095 = vmatprep.subr.bf16.mxu0 0
    %4096 = vmatpush1.bf16.msra.mxu0 %v3957
    %4097 = vmatprep.subr.bf16.mxu0 0
    %4098 = vmatpush1.bf16.msra.mxu0 %v3958
    %4099 = vmatprep.subr.bf16.mxu0 0
    %4100 = vmatpush1.bf16.msra.mxu0 %v3959
    %4101 = vmatprep.subr.bf16.mxu0 0
    %4102 = vmatpush1.bf16.msra.mxu0 %v3960
    %4103 = vmatprep.subr.bf16.mxu0 0
    %4104 = vmatpush1.bf16.msra.mxu0 %v3961
    %4105 = vmatprep.subr.bf16.mxu0 0
    %4106 = vmatpush1.bf16.msra.mxu0 %v3962
    %4107 = vmatprep.mubr.bf16.mxu0 %v3549
    %4108 = vmatmul.mubr.bf16.gmra.mrb[0].mxu0 %v3548
    %v4109 = vpop.f32.mrb[0].mxu0
    %v4110 = vadd.f32 %v3689, %v4109
    %v4111 = vpop.f32.mrb[0].mxu0
    %v4112 = vpop.f32.mrb[0].mxu0
    %v4113 = vpop.f32.mrb[0].mxu0
    %4114 = vdwg.mxu0
    %4115 = vmatprep.subr.bf16.mxu0 0
    %4116 = vmatpush1.bf16.msra.mxu0 %v3963
    %4117 = vmatprep.subr.bf16.mxu0 0
    %4118 = vmatpush1.bf16.msra.mxu0 %v3964
    %4119 = vmatprep.subr.bf16.mxu0 0
    %4120 = vmatpush1.bf16.msra.mxu0 %v3965
    %4121 = vmatprep.subr.bf16.mxu0 0
    %4122 = vmatpush1.bf16.msra.mxu0 %v3966
    %4123 = vmatprep.subr.bf16.mxu0 0
    %4124 = vmatpush1.bf16.msra.mxu0 %v3967
    %4125 = vmatprep.subr.bf16.mxu0 0
    %4126 = vmatpush1.bf16.msra.mxu0 %v3968
    %4127 = vmatprep.subr.bf16.mxu0 0
    %4128 = vmatpush1.bf16.msra.mxu0 %v3969
    %4129 = vmatprep.subr.bf16.mxu0 0
    %4130 = vmatpush1.bf16.msra.mxu0 %v3970
    %4131 = vmatprep.subr.bf16.mxu0 0
    %4132 = vmatpush1.bf16.msra.mxu0 %v3971
    %4133 = vmatprep.subr.bf16.mxu0 0
    %4134 = vmatpush1.bf16.msra.mxu0 %v3972
    %4135 = vmatprep.subr.bf16.mxu0 0
    %4136 = vmatpush1.bf16.msra.mxu0 %v3973
    %4137 = vmatprep.subr.bf16.mxu0 0
    %4138 = vmatpush1.bf16.msra.mxu0 %v3974
    %4139 = vmatprep.subr.bf16.mxu0 0
    %4140 = vmatpush1.bf16.msra.mxu0 %v3975
    %4141 = vmatprep.subr.bf16.mxu0 0
    %4142 = vmatpush1.bf16.msra.mxu0 %v3976
    %4143 = vmatprep.subr.bf16.mxu0 0
    %4144 = vmatpush1.bf16.msra.mxu0 %v3977
    %4145 = vmatprep.subr.bf16.mxu0 0
    %4146 = vmatpush1.bf16.msra.mxu0 %v3978
    %4147 = vmatprep.mubr.bf16.mxu0 %v3551
    %4148 = vmatmul.mubr.bf16.gmra.mrb[0].mxu0 %v3550
    %v4149 = vpop.f32.mrb[0].mxu0
    %v4150 = vadd.f32 %v4110, %v4149
    %v4151 = vpop.f32.mrb[0].mxu0
    %v4152 = vpop.f32.mrb[0].mxu0
    %v4153 = vpop.f32.mrb[0].mxu0
    %4154 = vdwg.mxu0
    %4155 = vmatprep.subr.bf16.mxu0 0
    %4156 = vmatpush1.bf16.msra.mxu0 %v3979
    %4157 = vmatprep.subr.bf16.mxu0 0
    %4158 = vmatpush1.bf16.msra.mxu0 %v3980
    %4159 = vmatprep.subr.bf16.mxu0 0
    %4160 = vmatpush1.bf16.msra.mxu0 %v3981
    %4161 = vmatprep.subr.bf16.mxu0 0
    %4162 = vmatpush1.bf16.msra.mxu0 %v3982
    %4163 = vmatprep.subr.bf16.mxu0 0
    %4164 = vmatpush1.bf16.msra.mxu0 %v3983
    %4165 = vmatprep.subr.bf16.mxu0 0
    %4166 = vmatpush1.bf16.msra.mxu0 %v3984
    %4167 = vmatprep.subr.bf16.mxu0 0
    %4168 = vmatpush1.bf16.msra.mxu0 %v3985
    %4169 = vmatprep.subr.bf16.mxu0 0
    %4170 = vmatpush1.bf16.msra.mxu0 %v3986
    %4171 = vmatprep.subr.bf16.mxu0 0
    %4172 = vmatpush1.bf16.msra.mxu0 %v3987
    %4173 = vmatprep.subr.bf16.mxu0 0
    %4174 = vmatpush1.bf16.msra.mxu0 %v3988
    %4175 = vmatprep.subr.bf16.mxu0 0
    %4176 = vmatpush1.bf16.msra.mxu0 %v3989
    %4177 = vmatprep.subr.bf16.mxu0 0
    %4178 = vmatpush1.bf16.msra.mxu0 %v3990
    %4179 = vmatprep.subr.bf16.mxu0 0
    %4180 = vmatpush1.bf16.msra.mxu0 %v3991
    %4181 = vmatprep.subr.bf16.mxu0 0
    %4182 = vmatpush1.bf16.msra.mxu0 %v3992
    %4183 = vmatprep.subr.bf16.mxu0 0
    %4184 = vmatpush1.bf16.msra.mxu0 %v3993
    %4185 = vmatprep.subr.bf16.mxu0 0
    %4186 = vmatpush1.bf16.msra.mxu0 %v3994
    %4187 = vmatprep.mubr.bf16.mxu0 %v3553
    %4188 = vmatmul.mubr.bf16.gmra.mrb[0].mxu0 %v3552
    %v4189 = vpop.f32.mrb[0].mxu0
    %v4190 = vadd.f32 %v4150, %v4189
    %v4191 = vpop.f32.mrb[0].mxu0
    %v4192 = vpop.f32.mrb[0].mxu0
    %v4193 = vpop.f32.mrb[0].mxu0
    %4194 = vdwg.mxu0
    %4195 = vmatprep.subr.bf16.mxu0 0
    %4196 = vmatpush1.bf16.msra.mxu0 %v3995
    %4197 = vmatprep.subr.bf16.mxu0 0
    %4198 = vmatpush1.bf16.msra.mxu0 %v3996
    %4199 = vmatprep.subr.bf16.mxu0 0
    %4200 = vmatpush1.bf16.msra.mxu0 %v3997
    %4201 = vmatprep.subr.bf16.mxu0 0
    %4202 = vmatpush1.bf16.msra.mxu0 %v3998
    %4203 = vmatprep.subr.bf16.mxu0 0
    %4204 = vmatpush1.bf16.msra.mxu0 %v3999
    %4205 = vmatprep.subr.bf16.mxu0 0
    %4206 = vmatpush1.bf16.msra.mxu0 %v4000
    %4207 = vmatprep.subr.bf16.mxu0 0
    %4208 = vmatpush1.bf16.msra.mxu0 %v4001
    %4209 = vmatprep.subr.bf16.mxu0 0
    %4210 = vmatpush1.bf16.msra.mxu0 %v4002
    %4211 = vmatprep.subr.bf16.mxu0 0
    %4212 = vmatpush1.bf16.msra.mxu0 %v4003
    %4213 = vmatprep.subr.bf16.mxu0 0
    %4214 = vmatpush1.bf16.msra.mxu0 %v4004
    %4215 = vmatprep.subr.bf16.mxu0 0
    %4216 = vmatpush1.bf16.msra.mxu0 %v4005
    %4217 = vmatprep.subr.bf16.mxu0 0
    %4218 = vmatpush1.bf16.msra.mxu0 %v4006
    %4219 = vmatprep.subr.bf16.mxu0 0
    %4220 = vmatpush1.bf16.msra.mxu0 %v4007
    %4221 = vmatprep.subr.bf16.mxu0 0
    %4222 = vmatpush1.bf16.msra.mxu0 %v4008
    %4223 = vmatprep.subr.bf16.mxu0 0
    %4224 = vmatpush1.bf16.msra.mxu0 %v4009
    %4225 = vmatprep.subr.bf16.mxu0 0
    %4226 = vmatpush1.bf16.msra.mxu0 %v4010
    %4227 = vmatprep.mubr.bf16.mxu0 %v3555
    %4228 = vmatmul.mubr.bf16.gmra.mrb[0].mxu0 %v3554
    %v4229 = vpop.f32.mrb[0].mxu0
    %v4230 = vadd.f32 %v4190, %v4229
    %v4231 = vpop.f32.mrb[0].mxu0
    %v4232 = vpop.f32.mrb[0].mxu0
    %v4233 = vpop.f32.mrb[0].mxu0
    %4234 = vdwg.mxu0
    %v4235 = vmax.f32 %v4230, 0.0
    %v4236 = vpack.c.bf16 %v4235, %v4235
    %v4237 = vld [vmem:[%s9] sm:$0xff]
    %v4238 = vld [vmem:[%s9 + $0x8] sm:$0xff]
    %v4239 = vld [vmem:[%s9 + $0x10] sm:$0xff]
    %v4240 = vld [vmem:[%s9 + $0x18] sm:$0xff]
    %v4241 = vld [vmem:[%s9 + $0x20] sm:$0xff]
    %v4242 = vld [vmem:[%s9 + $0x28] sm:$0xff]
    %v4243 = vld [vmem:[%s9 + $0x30] sm:$0xff]
    %v4244 = vld [vmem:[%s9 + $0x38] sm:$0xff]
    %v4245 = vld [vmem:[%s9 + $0x40] sm:$0xff]
    %v4246 = vld [vmem:[%s9 + $0x48] sm:$0xff]
    %v4247 = vld [vmem:[%s9 + $0x50] sm:$0xff]
    %v4248 = vld [vmem:[%s9 + $0x58] sm:$0xff]
    %v4249 = vld [vmem:[%s9 + $0x60] sm:$0xff]
    %v4250 = vld [vmem:[%s9 + $0x68] sm:$0xff]
    %v4251 = vld [vmem:[%s9 + $0x70] sm:$0xff]
    %v4252 = vld [vmem:[%s9 + $0x78] sm:$0xff]
    %v4253 = vld [vmem:[%s10] sm:$0x3]
    %v4255 = vlaneseq
    %v4256 = vshrl.u32 %v4255, 7
    %v4257 = vsub.s32 0, %v4256
    %v4258 = vrot.slane %v4253, %v4257
    %v4259 = vlaneseq
    %v4260 = vshrl.u32 %v4259, 7
    %v4261 = vsub.s32 1, %v4260
    %v4262 = vrot.slane %v4253, %v4261
    %v4281 = vunpack.c.l.b16 %v4237
    %v4282 = vunpack.c.h.b16 %v4237
    %v4283 = vunpack.c.l.b16 %v4238
    %v4284 = vunpack.c.h.b16 %v4238
    %v4285 = vunpack.c.l.b16 %v4239
    %v4286 = vunpack.c.h.b16 %v4239
    %v4287 = vunpack.c.l.b16 %v4240
    %v4288 = vunpack.c.h.b16 %v4240
    %v4289 = vunpack.c.l.b16 %v4241
    %v4290 = vunpack.c.h.b16 %v4241
    %v4291 = vunpack.c.l.b16 %v4242
    %v4292 = vunpack.c.h.b16 %v4242
    %v4293 = vunpack.c.l.b16 %v4243
    %v4294 = vunpack.c.h.b16 %v4243
    %v4295 = vunpack.c.l.b16 %v4244
    %v4296 = vunpack.c.h.b16 %v4244
    %v4297 = vunpack.c.l.b16 %v4245
    %v4298 = vunpack.c.h.b16 %v4245
    %v4299 = vunpack.c.l.b16 %v4246
    %v4300 = vunpack.c.h.b16 %v4246
    %v4301 = vunpack.c.l.b16 %v4247
    %v4302 = vunpack.c.h.b16 %v4247
    %v4303 = vunpack.c.l.b16 %v4248
    %v4304 = vunpack.c.h.b16 %v4248
    %v4305 = vunpack.c.l.b16 %v4249
    %v4306 = vunpack.c.h.b16 %v4249
    %v4307 = vunpack.c.l.b16 %v4250
    %v4308 = vunpack.c.h.b16 %v4250
    %v4309 = vunpack.c.l.b16 %v4251
    %v4310 = vunpack.c.h.b16 %v4251
    %v4311 = vunpack.c.l.b16 %v4252
    %v4312 = vunpack.c.h.b16 %v4252
    %v4313 = vpack.c.b16 %v4283, %v4281
    %v4314 = vpack.c.b16 %v4284, %v4282
    %v4315 = vpack.c.b16 %v4287, %v4285
    %v4316 = vpack.c.b16 %v4288, %v4286
    %v4317 = vpack.c.b16 %v4291, %v4289
    %v4318 = vpack.c.b16 %v4292, %v4290
    %v4319 = vpack.c.b16 %v4295, %v4293
    %v4320 = vpack.c.b16 %v4296, %v4294
    %v4321 = vpack.c.b16 %v4299, %v4297
    %v4322 = vpack.c.b16 %v4300, %v4298
    %v4323 = vpack.c.b16 %v4303, %v4301
    %v4324 = vpack.c.b16 %v4304, %v4302
    %v4325 = vpack.c.b16 %v4307, %v4305
    %v4326 = vpack.c.b16 %v4308, %v4306
    %v4327 = vpack.c.b16 %v4311, %v4309
    %v4328 = vpack.c.b16 %v4312, %v4310
    %4345 = vmatprep.subr.bf16.mxu0 %v4314
    %4346 = vmatpush1.bf16.msra.mxu0 %v4313
    %4347 = vmatprep.subr.bf16.mxu0 %v4316
    %4348 = vmatpush1.bf16.msra.mxu0 %v4315
    %4349 = vmatprep.subr.bf16.mxu0 %v4318
    %4350 = vmatpush1.bf16.msra.mxu0 %v4317
    %4351 = vmatprep.subr.bf16.mxu0 %v4320
    %4352 = vmatpush1.bf16.msra.mxu0 %v4319
    %4353 = vmatprep.subr.bf16.mxu0 %v4322
    %4354 = vmatpush1.bf16.msra.mxu0 %v4321
    %4355 = vmatprep.subr.bf16.mxu0 %v4324
    %4356 = vmatpush1.bf16.msra.mxu0 %v4323
    %4357 = vmatprep.subr.bf16.mxu0 %v4326
    %4358 = vmatpush1.bf16.msra.mxu0 %v4325
    %4359 = vmatprep.subr.bf16.mxu0 %v4328
    %4360 = vmatpush1.bf16.msra.mxu0 %v4327
    %4361 = vmatprep.subr.bf16.mxu0 0
    %4362 = vmatpush1.bf16.msra.mxu0 0
    %4363 = vmatprep.subr.bf16.mxu0 0
    %4364 = vmatpush1.bf16.msra.mxu0 0
    %4365 = vmatprep.subr.bf16.mxu0 0
    %4366 = vmatpush1.bf16.msra.mxu0 0
    %4367 = vmatprep.subr.bf16.mxu0 0
    %4368 = vmatpush1.bf16.msra.mxu0 0
    %4369 = vmatprep.subr.bf16.mxu0 0
    %4370 = vmatpush1.bf16.msra.mxu0 0
    %4371 = vmatprep.subr.bf16.mxu0 0
    %4372 = vmatpush1.bf16.msra.mxu0 0
    %4373 = vmatprep.subr.bf16.mxu0 0
    %4374 = vmatpush1.bf16.msra.mxu0 0
    %4375 = vmatprep.subr.bf16.mxu0 0
    %4376 = vmatpush1.bf16.msra.mxu0 0
    %4377 = vmatprep.mubr.bf16.mxu0 0
    %4378 = vmatmul.mubr.bf16.gmra.mrb[0].mxu0 %v4236
    %v4379 = vpop.f32.mrb[0].mxu0
    %v4380 = vadd.f32 %v4258, %v4379
    %v4381 = vpop.f32.mrb[0].mxu0
    %v4382 = vadd.f32 %v4262, %v4381
    %v4383 = vpop.f32.mrb[0].mxu0
    %v4384 = vpop.f32.mrb[0].mxu0
    %4385 = vdwg.mxu0
    %v4386 = vmax.f32 %v4380, 0.0
    %v4387 = vmax.f32 %v4382, 0.0
    %v4388 = vpack.c.bf16 %v3546, %v3546
    %v4389 = vpack.c.bf16 %v3547, %v3547
    %v4390 = vld [vmem:[#allocation12] sm:$0xff]
    %v4391 = vld [vmem:[#allocation12 + $0x8] sm:$0xff]
    %v4392 = vld [vmem:[#allocation12 + $0x10] sm:$0xff]
    %v4393 = vld [vmem:[#allocation12 + $0x18] sm:$0xff]
    %v4394 = vld [vmem:[#allocation12 + $0x20] sm:$0xff]
    %v4395 = vld [vmem:[#allocation12 + $0x28] sm:$0xff]
    %v4396 = vld [vmem:[#allocation12 + $0x30] sm:$0xff]
    %v4397 = vld [vmem:[#allocation12 + $0x38] sm:$0xff]
    %v4398 = vld [vmem:[#allocation12 + $0x40] sm:$0xff]
    %v4399 = vld [vmem:[#allocation12 + $0x48] sm:$0xff]
    %v4400 = vld [vmem:[#allocation12 + $0x50] sm:$0xff]
    %v4401 = vld [vmem:[#allocation12 + $0x58] sm:$0xff]
    %v4402 = vld [vmem:[#allocation12 + $0x60] sm:$0xff]
    %v4403 = vld [vmem:[#allocation12 + $0x68] sm:$0xff]
    %v4404 = vld [vmem:[#allocation12 + $0x70] sm:$0xff]
    %v4405 = vld [vmem:[#allocation12 + $0x78] sm:$0xff]
    %v4406 = vld [vmem:[#allocation12 + $0x80] sm:$0xff]
    %v4407 = vld [vmem:[#allocation12 + $0x88] sm:$0xff]
    %v4408 = vld [vmem:[#allocation12 + $0x90] sm:$0xff]
    %v4409 = vld [vmem:[#allocation12 + $0x98] sm:$0xff]
    %v4410 = vld [vmem:[#allocation12 + $0xa0] sm:$0xff]
    %v4411 = vld [vmem:[#allocation12 + $0xa8] sm:$0xff]
    %v4412 = vld [vmem:[#allocation12 + $0xb0] sm:$0xff]
    %v4413 = vld [vmem:[#allocation12 + $0xb8] sm:$0xff]
    %v4414 = vld [vmem:[#allocation12 + $0xc0] sm:$0xff]
    %v4415 = vld [vmem:[#allocation12 + $0xc8] sm:$0xff]
    %v4416 = vld [vmem:[#allocation12 + $0xd0] sm:$0xff]
    %v4417 = vld [vmem:[#allocation12 + $0xd8] sm:$0xff]
    %v4418 = vld [vmem:[#allocation12 + $0xe0] sm:$0xff]
    %v4419 = vld [vmem:[#allocation12 + $0xe8] sm:$0xff]
    %v4420 = vld [vmem:[#allocation12 + $0xf0] sm:$0xff]
    %v4421 = vld [vmem:[#allocation12 + $0xf8] sm:$0xff]
    %v4422 = vpack.c.bf16 %v4386, %v4386
    %v4423 = vpack.c.bf16 %v4387, %v4387
    %v4424 = vld [vmem:[#allocation13] sm:$0xff]
    %v4425 = vld [vmem:[#allocation13 + $0x8] sm:$0xff]
    %v4426 = vld [vmem:[#allocation13 + $0x10] sm:$0xff]
    %v4427 = vld [vmem:[#allocation13 + $0x18] sm:$0xff]
    %v4428 = vld [vmem:[#allocation13 + $0x20] sm:$0xff]
    %v4429 = vld [vmem:[#allocation13 + $0x28] sm:$0xff]
    %v4430 = vld [vmem:[#allocation13 + $0x30] sm:$0xff]
    %v4431 = vld [vmem:[#allocation13 + $0x38] sm:$0xff]
    %v4432 = vld [vmem:[#allocation13 + $0x40] sm:$0xff]
    %v4433 = vld [vmem:[#allocation13 + $0x48] sm:$0xff]
    %v4434 = vld [vmem:[#allocation13 + $0x50] sm:$0xff]
    %v4435 = vld [vmem:[#allocation13 + $0x58] sm:$0xff]
    %v4436 = vld [vmem:[#allocation13 + $0x60] sm:$0xff]
    %v4437 = vld [vmem:[#allocation13 + $0x68] sm:$0xff]
    %v4438 = vld [vmem:[#allocation13 + $0x70] sm:$0xff]
    %v4439 = vld [vmem:[#allocation13 + $0x78] sm:$0xff]
    %v4440 = vld [vmem:[#allocation13 + $0x80] sm:$0xff]
    %v4441 = vld [vmem:[#allocation13 + $0x88] sm:$0xff]
    %v4442 = vld [vmem:[#allocation13 + $0x90] sm:$0xff]
    %v4443 = vld [vmem:[#allocation13 + $0x98] sm:$0xff]
    %v4444 = vld [vmem:[#allocation13 + $0xa0] sm:$0xff]
    %v4445 = vld [vmem:[#allocation13 + $0xa8] sm:$0xff]
    %v4446 = vld [vmem:[#allocation13 + $0xb0] sm:$0xff]
    %v4447 = vld [vmem:[#allocation13 + $0xb8] sm:$0xff]
    %v4448 = vld [vmem:[#allocation13 + $0xc0] sm:$0xff]
    %v4449 = vld [vmem:[#allocation13 + $0xc8] sm:$0xff]
    %v4450 = vld [vmem:[#allocation13 + $0xd0] sm:$0xff]
    %v4451 = vld [vmem:[#allocation13 + $0xd8] sm:$0xff]
    %v4452 = vld [vmem:[#allocation13 + $0xe0] sm:$0xff]
    %v4453 = vld [vmem:[#allocation13 + $0xe8] sm:$0xff]
    %v4454 = vld [vmem:[#allocation13 + $0xf0] sm:$0xff]
    %v4455 = vld [vmem:[#allocation13 + $0xf8] sm:$0xff]
    %v4488 = vunpack.c.l.b16 %v4424
    %v4489 = vunpack.c.h.b16 %v4424
    %v4490 = vunpack.c.l.b16 %v4425
    %v4491 = vunpack.c.h.b16 %v4425
    %v4492 = vunpack.c.l.b16 %v4426
    %v4493 = vunpack.c.h.b16 %v4426
    %v4494 = vunpack.c.l.b16 %v4427
    %v4495 = vunpack.c.h.b16 %v4427
    %v4496 = vunpack.c.l.b16 %v4428
    %v4497 = vunpack.c.h.b16 %v4428
    %v4498 = vunpack.c.l.b16 %v4429
    %v4499 = vunpack.c.h.b16 %v4429
    %v4500 = vunpack.c.l.b16 %v4430
    %v4501 = vunpack.c.h.b16 %v4430
    %v4502 = vunpack.c.l.b16 %v4431
    %v4503 = vunpack.c.h.b16 %v4431
    %v4504 = vunpack.c.l.b16 %v4432
    %v4505 = vunpack.c.h.b16 %v4432
    %v4506 = vunpack.c.l.b16 %v4433
    %v4507 = vunpack.c.h.b16 %v4433
    %v4508 = vunpack.c.l.b16 %v4434
    %v4509 = vunpack.c.h.b16 %v4434
    %v4510 = vunpack.c.l.b16 %v4435
    %v4511 = vunpack.c.h.b16 %v4435
    %v4512 = vunpack.c.l.b16 %v4436
    %v4513 = vunpack.c.h.b16 %v4436
    %v4514 = vunpack.c.l.b16 %v4437
    %v4515 = vunpack.c.h.b16 %v4437
    %v4516 = vunpack.c.l.b16 %v4438
    %v4517 = vunpack.c.h.b16 %v4438
    %v4518 = vunpack.c.l.b16 %v4439
    %v4519 = vunpack.c.h.b16 %v4439
    %v4520 = vunpack.c.l.b16 %v4440
    %v4521 = vunpack.c.h.b16 %v4440
    %v4522 = vunpack.c.l.b16 %v4441
    %v4523 = vunpack.c.h.b16 %v4441
    %v4524 = vunpack.c.l.b16 %v4442
    %v4525 = vunpack.c.h.b16 %v4442
    %v4526 = vunpack.c.l.b16 %v4443
    %v4527 = vunpack.c.h.b16 %v4443
    %v4528 = vunpack.c.l.b16 %v4444
    %v4529 = vunpack.c.h.b16 %v4444
    %v4530 = vunpack.c.l.b16 %v4445
    %v4531 = vunpack.c.h.b16 %v4445
    %v4532 = vunpack.c.l.b16 %v4446
    %v4533 = vunpack.c.h.b16 %v4446
    %v4534 = vunpack.c.l.b16 %v4447
    %v4535 = vunpack.c.h.b16 %v4447
    %v4536 = vunpack.c.l.b16 %v4448
    %v4537 = vunpack.c.h.b16 %v4448
    %v4538 = vunpack.c.l.b16 %v4449
    %v4539 = vunpack.c.h.b16 %v4449
    %v4540 = vunpack.c.l.b16 %v4450
    %v4541 = vunpack.c.h.b16 %v4450
    %v4542 = vunpack.c.l.b16 %v4451
    %v4543 = vunpack.c.h.b16 %v4451
    %v4544 = vunpack.c.l.b16 %v4452
    %v4545 = vunpack.c.h.b16 %v4452
    %v4546 = vunpack.c.l.b16 %v4453
    %v4547 = vunpack.c.h.b16 %v4453
    %v4548 = vunpack.c.l.b16 %v4454
    %v4549 = vunpack.c.h.b16 %v4454
    %v4550 = vunpack.c.l.b16 %v4455
    %v4551 = vunpack.c.h.b16 %v4455
    %v4552 = vpack.c.b16 %v4490, %v4488
    %v4553 = vpack.c.b16 %v4491, %v4489
    %v4554 = vpack.c.b16 %v4494, %v4492
    %v4555 = vpack.c.b16 %v4495, %v4493
    %v4556 = vpack.c.b16 %v4498, %v4496
    %v4557 = vpack.c.b16 %v4499, %v4497
    %v4558 = vpack.c.b16 %v4502, %v4500
    %v4559 = vpack.c.b16 %v4503, %v4501
    %v4560 = vpack.c.b16 %v4506, %v4504
    %v4561 = vpack.c.b16 %v4507, %v4505
    %v4562 = vpack.c.b16 %v4510, %v4508
    %v4563 = vpack.c.b16 %v4511, %v4509
    %v4564 = vpack.c.b16 %v4514, %v4512
    %v4565 = vpack.c.b16 %v4515, %v4513
    %v4566 = vpack.c.b16 %v4518, %v4516
    %v4567 = vpack.c.b16 %v4519, %v4517
    %v4568 = vpack.c.b16 %v4522, %v4520
    %v4569 = vpack.c.b16 %v4523, %v4521
    %v4570 = vpack.c.b16 %v4526, %v4524
    %v4571 = vpack.c.b16 %v4527, %v4525
    %v4572 = vpack.c.b16 %v4530, %v4528
    %v4573 = vpack.c.b16 %v4531, %v4529
    %v4574 = vpack.c.b16 %v4534, %v4532
    %v4575 = vpack.c.b16 %v4535, %v4533
    %v4576 = vpack.c.b16 %v4538, %v4536
    %v4577 = vpack.c.b16 %v4539, %v4537
    %v4578 = vpack.c.b16 %v4542, %v4540
    %v4579 = vpack.c.b16 %v4543, %v4541
    %v4580 = vpack.c.b16 %v4546, %v4544
    %v4581 = vpack.c.b16 %v4547, %v4545
    %v4582 = vpack.c.b16 %v4550, %v4548
    %v4583 = vpack.c.b16 %v4551, %v4549
    %4616 = vmatprep.subr.bf16.mxu0 %v4553
    %4617 = vmatpush1.bf16.msra.mxu0 %v4552
    %4618 = vmatprep.subr.bf16.mxu0 %v4555
    %4619 = vmatpush1.bf16.msra.mxu0 %v4554
    %4620 = vmatprep.subr.bf16.mxu0 %v4557
    %4621 = vmatpush1.bf16.msra.mxu0 %v4556
    %4622 = vmatprep.subr.bf16.mxu0 %v4559
    %4623 = vmatpush1.bf16.msra.mxu0 %v4558
    %4624 = vmatprep.subr.bf16.mxu0 %v4561
    %4625 = vmatpush1.bf16.msra.mxu0 %v4560
    %4626 = vmatprep.subr.bf16.mxu0 %v4563
    %4627 = vmatpush1.bf16.msra.mxu0 %v4562
    %4628 = vmatprep.subr.bf16.mxu0 %v4565
    %4629 = vmatpush1.bf16.msra.mxu0 %v4564
    %4630 = vmatprep.subr.bf16.mxu0 %v4567
    %4631 = vmatpush1.bf16.msra.mxu0 %v4566
    %4632 = vmatprep.subr.bf16.mxu0 %v4569
    %4633 = vmatpush1.bf16.msra.mxu0 %v4568
    %4634 = vmatprep.subr.bf16.mxu0 %v4571
    %4635 = vmatpush1.bf16.msra.mxu0 %v4570
    %4636 = vmatprep.subr.bf16.mxu0 %v4573
    %4637 = vmatpush1.bf16.msra.mxu0 %v4572
    %4638 = vmatprep.subr.bf16.mxu0 %v4575
    %4639 = vmatpush1.bf16.msra.mxu0 %v4574
    %4640 = vmatprep.subr.bf16.mxu0 %v4577
    %4641 = vmatpush1.bf16.msra.mxu0 %v4576
    %4642 = vmatprep.subr.bf16.mxu0 %v4579
    %4643 = vmatpush1.bf16.msra.mxu0 %v4578
    %4644 = vmatprep.subr.bf16.mxu0 %v4581
    %4645 = vmatpush1.bf16.msra.mxu0 %v4580
    %4646 = vmatprep.subr.bf16.mxu0 %v4583
    %4647 = vmatpush1.bf16.msra.mxu0 %v4582
    %4648 = vmatprep.mubr.bf16.mxu0 %v4423
    %4649 = vmatmul.mubr.bf16.gmra.mrb[0].mxu0 %v4422
    %v4650 = vpop.f32.mrb[0].mxu0
    %v4651 = vadd.f32 0.0, %v4650
    %v4652 = vpop.f32.mrb[0].mxu0
    %v4653 = vadd.f32 0.0, %v4652
    %v4654 = vpop.f32.mrb[0].mxu0
    %v4655 = vpop.f32.mrb[0].mxu0
    %4656 = vdwg.mxu0
    %v4689 = vunpack.c.l.b16 %v4390
    %v4690 = vunpack.c.h.b16 %v4390
    %v4691 = vunpack.c.l.b16 %v4391
    %v4692 = vunpack.c.h.b16 %v4391
    %v4693 = vunpack.c.l.b16 %v4392
    %v4694 = vunpack.c.h.b16 %v4392
    %v4695 = vunpack.c.l.b16 %v4393
    %v4696 = vunpack.c.h.b16 %v4393
    %v4697 = vunpack.c.l.b16 %v4394
    %v4698 = vunpack.c.h.b16 %v4394
    %v4699 = vunpack.c.l.b16 %v4395
    %v4700 = vunpack.c.h.b16 %v4395
    %v4701 = vunpack.c.l.b16 %v4396
    %v4702 = vunpack.c.h.b16 %v4396
    %v4703 = vunpack.c.l.b16 %v4397
    %v4704 = vunpack.c.h.b16 %v4397
    %v4705 = vunpack.c.l.b16 %v4398
    %v4706 = vunpack.c.h.b16 %v4398
    %v4707 = vunpack.c.l.b16 %v4399
    %v4708 = vunpack.c.h.b16 %v4399
    %v4709 = vunpack.c.l.b16 %v4400
    %v4710 = vunpack.c.h.b16 %v4400
    %v4711 = vunpack.c.l.b16 %v4401
    %v4712 = vunpack.c.h.b16 %v4401
    %v4713 = vunpack.c.l.b16 %v4402
    %v4714 = vunpack.c.h.b16 %v4402
    %v4715 = vunpack.c.l.b16 %v4403
    %v4716 = vunpack.c.h.b16 %v4403
    %v4717 = vunpack.c.l.b16 %v4404
    %v4718 = vunpack.c.h.b16 %v4404
    %v4719 = vunpack.c.l.b16 %v4405
    %v4720 = vunpack.c.h.b16 %v4405
    %v4721 = vunpack.c.l.b16 %v4406
    %v4722 = vunpack.c.h.b16 %v4406
    %v4723 = vunpack.c.l.b16 %v4407
    %v4724 = vunpack.c.h.b16 %v4407
    %v4725 = vunpack.c.l.b16 %v4408
    %v4726 = vunpack.c.h.b16 %v4408
    %v4727 = vunpack.c.l.b16 %v4409
    %v4728 = vunpack.c.h.b16 %v4409
    %v4729 = vunpack.c.l.b16 %v4410
    %v4730 = vunpack.c.h.b16 %v4410
    %v4731 = vunpack.c.l.b16 %v4411
    %v4732 = vunpack.c.h.b16 %v4411
    %v4733 = vunpack.c.l.b16 %v4412
    %v4734 = vunpack.c.h.b16 %v4412
    %v4735 = vunpack.c.l.b16 %v4413
    %v4736 = vunpack.c.h.b16 %v4413
    %v4737 = vunpack.c.l.b16 %v4414
    %v4738 = vunpack.c.h.b16 %v4414
    %v4739 = vunpack.c.l.b16 %v4415
    %v4740 = vunpack.c.h.b16 %v4415
    %v4741 = vunpack.c.l.b16 %v4416
    %v4742 = vunpack.c.h.b16 %v4416
    %v4743 = vunpack.c.l.b16 %v4417
    %v4744 = vunpack.c.h.b16 %v4417
    %v4745 = vunpack.c.l.b16 %v4418
    %v4746 = vunpack.c.h.b16 %v4418
    %v4747 = vunpack.c.l.b16 %v4419
    %v4748 = vunpack.c.h.b16 %v4419
    %v4749 = vunpack.c.l.b16 %v4420
    %v4750 = vunpack.c.h.b16 %v4420
    %v4751 = vunpack.c.l.b16 %v4421
    %v4752 = vunpack.c.h.b16 %v4421
    %v4753 = vpack.c.b16 %v4691, %v4689
    %v4754 = vpack.c.b16 %v4692, %v4690
    %v4755 = vpack.c.b16 %v4695, %v4693
    %v4756 = vpack.c.b16 %v4696, %v4694
    %v4757 = vpack.c.b16 %v4699, %v4697
    %v4758 = vpack.c.b16 %v4700, %v4698
    %v4759 = vpack.c.b16 %v4703, %v4701
    %v4760 = vpack.c.b16 %v4704, %v4702
    %v4761 = vpack.c.b16 %v4707, %v4705
    %v4762 = vpack.c.b16 %v4708, %v4706
    %v4763 = vpack.c.b16 %v4711, %v4709
    %v4764 = vpack.c.b16 %v4712, %v4710
    %v4765 = vpack.c.b16 %v4715, %v4713
    %v4766 = vpack.c.b16 %v4716, %v4714
    %v4767 = vpack.c.b16 %v4719, %v4717
    %v4768 = vpack.c.b16 %v4720, %v4718
    %v4769 = vpack.c.b16 %v4723, %v4721
    %v4770 = vpack.c.b16 %v4724, %v4722
    %v4771 = vpack.c.b16 %v4727, %v4725
    %v4772 = vpack.c.b16 %v4728, %v4726
    %v4773 = vpack.c.b16 %v4731, %v4729
    %v4774 = vpack.c.b16 %v4732, %v4730
    %v4775 = vpack.c.b16 %v4735, %v4733
    %v4776 = vpack.c.b16 %v4736, %v4734
    %v4777 = vpack.c.b16 %v4739, %v4737
    %v4778 = vpack.c.b16 %v4740, %v4738
    %v4779 = vpack.c.b16 %v4743, %v4741
    %v4780 = vpack.c.b16 %v4744, %v4742
    %v4781 = vpack.c.b16 %v4747, %v4745
    %v4782 = vpack.c.b16 %v4748, %v4746
    %v4783 = vpack.c.b16 %v4751, %v4749
    %v4784 = vpack.c.b16 %v4752, %v4750
    %4817 = vmatprep.subr.bf16.mxu0 %v4754
    %4818 = vmatpush1.bf16.msra.mxu0 %v4753
    %4819 = vmatprep.subr.bf16.mxu0 %v4756
    %4820 = vmatpush1.bf16.msra.mxu0 %v4755
    %4821 = vmatprep.subr.bf16.mxu0 %v4758
    %4822 = vmatpush1.bf16.msra.mxu0 %v4757
    %4823 = vmatprep.subr.bf16.mxu0 %v4760
    %4824 = vmatpush1.bf16.msra.mxu0 %v4759
    %4825 = vmatprep.subr.bf16.mxu0 %v4762
    %4826 = vmatpush1.bf16.msra.mxu0 %v4761
    %4827 = vmatprep.subr.bf16.mxu0 %v4764
    %4828 = vmatpush1.bf16.msra.mxu0 %v4763
    %4829 = vmatprep.subr.bf16.mxu0 %v4766
    %4830 = vmatpush1.bf16.msra.mxu0 %v4765
    %4831 = vmatprep.subr.bf16.mxu0 %v4768
    %4832 = vmatpush1.bf16.msra.mxu0 %v4767
    %4833 = vmatprep.subr.bf16.mxu0 %v4770
    %4834 = vmatpush1.bf16.msra.mxu0 %v4769
    %4835 = vmatprep.subr.bf16.mxu0 %v4772
    %4836 = vmatpush1.bf16.msra.mxu0 %v4771
    %4837 = vmatprep.subr.bf16.mxu0 %v4774
    %4838 = vmatpush1.bf16.msra.mxu0 %v4773
    %4839 = vmatprep.subr.bf16.mxu0 %v4776
    %4840 = vmatpush1.bf16.msra.mxu0 %v4775
    %4841 = vmatprep.subr.bf16.mxu0 %v4778
    %4842 = vmatpush1.bf16.msra.mxu0 %v4777
    %4843 = vmatprep.subr.bf16.mxu0 %v4780
    %4844 = vmatpush1.bf16.msra.mxu0 %v4779
    %4845 = vmatprep.subr.bf16.mxu0 %v4782
    %4846 = vmatpush1.bf16.msra.mxu0 %v4781
    %4847 = vmatprep.subr.bf16.mxu0 %v4784
    %4848 = vmatpush1.bf16.msra.mxu0 %v4783
    %4849 = vmatprep.mubr.bf16.mxu0 %v4389
    %4850 = vmatmul.mubr.bf16.gmra.mrb[0].mxu0 %v4388
    %v4851 = vpop.f32.mrb[0].mxu0
    %v4852 = vadd.f32 %v4651, %v4851
    %v4853 = vpop.f32.mrb[0].mxu0
    %v4854 = vadd.f32 %v4653, %v4853
    %v4855 = vpop.f32.mrb[0].mxu0
    %v4856 = vpop.f32.mrb[0].mxu0
    %4857 = vdwg.mxu0
    %v4858 = vld [vmem:[%s13] sm:$0x3]
    %v4860 = vlaneseq
    %v4861 = vshrl.u32 %v4860, 7
    %v4862 = vsub.s32 0, %v4861
    %v4863 = vrot.slane %v4858, %v4862
    %v4864 = vlaneseq
    %v4865 = vshrl.u32 %v4864, 7
    %v4866 = vsub.s32 1, %v4865
    %v4867 = vrot.slane %v4858, %v4866
    %v4870 = vadd.f32 %v4852, %v4863
    %v4871 = vadd.f32 %v4854, %v4867
    %v4872 = vmax.f32 %v4870, 0.0
    %v4873 = vmax.f32 %v4871, 0.0
    %v4874 = vpack.c.bf16 %v4872, %v4872
    %v4875 = vpack.c.bf16 %v4873, %v4873
    %v4876 = vld [vmem:[#allocation15] sm:$0xf]
    %v4877 = vld [vmem:[#allocation15 + $0x4] sm:$0xf]
    %v4878 = vld [vmem:[#allocation15 + $0x8] sm:$0xf]
    %v4879 = vld [vmem:[#allocation15 + $0xc] sm:$0xf]
    %v4880 = vld [vmem:[#allocation15 + $0x10] sm:$0xf]
    %v4881 = vld [vmem:[#allocation15 + $0x14] sm:$0xf]
    %v4882 = vld [vmem:[#allocation15 + $0x18] sm:$0xf]
    %v4883 = vld [vmem:[#allocation15 + $0x1c] sm:$0xf]
    %v4884 = vld [vmem:[#allocation15 + $0x20] sm:$0xf]
    %v4885 = vld [vmem:[#allocation15 + $0x24] sm:$0xf]
    %v4886 = vld [vmem:[#allocation15 + $0x28] sm:$0xf]
    %v4887 = vld [vmem:[#allocation15 + $0x2c] sm:$0xf]
    %v4888 = vld [vmem:[#allocation15 + $0x30] sm:$0xf]
    %v4889 = vld [vmem:[#allocation15 + $0x34] sm:$0xf]
    %v4890 = vld [vmem:[#allocation15 + $0x38] sm:$0xf]
    %v4891 = vld [vmem:[#allocation15 + $0x3c] sm:$0xf]
    %v4892 = vld [vmem:[#allocation15 + $0x40] sm:$0xf]
    %v4893 = vld [vmem:[#allocation15 + $0x44] sm:$0xf]
    %v4894 = vld [vmem:[#allocation15 + $0x48] sm:$0xf]
    %v4895 = vld [vmem:[#allocation15 + $0x4c] sm:$0xf]
    %v4896 = vld [vmem:[#allocation15 + $0x50] sm:$0xf]
    %v4897 = vld [vmem:[#allocation15 + $0x54] sm:$0xf]
    %v4898 = vld [vmem:[#allocation15 + $0x58] sm:$0xf]
    %v4899 = vld [vmem:[#allocation15 + $0x5c] sm:$0xf]
    %v4900 = vld [vmem:[#allocation15 + $0x60] sm:$0xf]
    %v4901 = vld [vmem:[#allocation15 + $0x64] sm:$0xf]
    %v4902 = vld [vmem:[#allocation15 + $0x68] sm:$0xf]
    %v4903 = vld [vmem:[#allocation15 + $0x6c] sm:$0xf]
    %v4904 = vld [vmem:[#allocation15 + $0x70] sm:$0xf]
    %v4905 = vld [vmem:[#allocation15 + $0x74] sm:$0xf]
    %v4906 = vld [vmem:[#allocation15 + $0x78] sm:$0xf]
    %v4907 = vld [vmem:[#allocation15 + $0x7c] sm:$0xf]
    %v4908 = vld [vmem:[%s15] sm:$0x1]
    %v4910 = vlaneseq
    %v4911 = vshrl.u32 %v4910, 7
    %v4912 = vsub.s32 0, %v4911
    %v4913 = vrot.slane %v4908, %v4912
    %v4947 = vunpack.c.l.b16 %v4876
    %v4948 = vunpack.c.l.b16 %v4877
    %v4949 = vunpack.c.l.b16 %v4878
    %v4950 = vunpack.c.l.b16 %v4879
    %v4951 = vunpack.c.l.b16 %v4880
    %v4952 = vunpack.c.l.b16 %v4881
    %v4953 = vunpack.c.l.b16 %v4882
    %v4954 = vunpack.c.l.b16 %v4883
    %v4955 = vunpack.c.l.b16 %v4884
    %v4956 = vunpack.c.l.b16 %v4885
    %v4957 = vunpack.c.l.b16 %v4886
    %v4958 = vunpack.c.l.b16 %v4887
    %v4959 = vunpack.c.l.b16 %v4888
    %v4960 = vunpack.c.l.b16 %v4889
    %v4961 = vunpack.c.l.b16 %v4890
    %v4962 = vunpack.c.l.b16 %v4891
    %v4963 = vunpack.c.l.b16 %v4892
    %v4964 = vunpack.c.l.b16 %v4893
    %v4965 = vunpack.c.l.b16 %v4894
    %v4966 = vunpack.c.l.b16 %v4895
    %v4967 = vunpack.c.l.b16 %v4896
    %v4968 = vunpack.c.l.b16 %v4897
    %v4969 = vunpack.c.l.b16 %v4898
    %v4970 = vunpack.c.l.b16 %v4899
    %v4971 = vunpack.c.l.b16 %v4900
    %v4972 = vunpack.c.l.b16 %v4901
    %v4973 = vunpack.c.l.b16 %v4902
    %v4974 = vunpack.c.l.b16 %v4903
    %v4975 = vunpack.c.l.b16 %v4904
    %v4976 = vunpack.c.l.b16 %v4905
    %v4977 = vunpack.c.l.b16 %v4906
    %v4978 = vunpack.c.l.b16 %v4907
    %v4979 = vpack.c.b16 %v4948, %v4947
    %v4980 = vpack.c.b16 %v4950, %v4949
    %v4981 = vpack.c.b16 %v4952, %v4951
    %v4982 = vpack.c.b16 %v4954, %v4953
    %v4983 = vpack.c.b16 %v4956, %v4955
    %v4984 = vpack.c.b16 %v4958, %v4957
    %v4985 = vpack.c.b16 %v4960, %v4959
    %v4986 = vpack.c.b16 %v4962, %v4961
    %v4987 = vpack.c.b16 %v4964, %v4963
    %v4988 = vpack.c.b16 %v4966, %v4965
    %v4989 = vpack.c.b16 %v4968, %v4967
    %v4990 = vpack.c.b16 %v4970, %v4969
    %v4991 = vpack.c.b16 %v4972, %v4971
    %v4992 = vpack.c.b16 %v4974, %v4973
    %v4993 = vpack.c.b16 %v4976, %v4975
    %v4994 = vpack.c.b16 %v4978, %v4977
    %5011 = vmatprep.subr.bf16.mxu0 0
    %5012 = vmatpush1.bf16.msra.mxu0 %v4979
    %5013 = vmatprep.subr.bf16.mxu0 0
    %5014 = vmatpush1.bf16.msra.mxu0 %v4980
    %5015 = vmatprep.subr.bf16.mxu0 0
    %5016 = vmatpush1.bf16.msra.mxu0 %v4981
    %5017 = vmatprep.subr.bf16.mxu0 0
    %5018 = vmatpush1.bf16.msra.mxu0 %v4982
    %5019 = vmatprep.subr.bf16.mxu0 0
    %5020 = vmatpush1.bf16.msra.mxu0 %v4983
    %5021 = vmatprep.subr.bf16.mxu0 0
    %5022 = vmatpush1.bf16.msra.mxu0 %v4984
    %5023 = vmatprep.subr.bf16.mxu0 0
    %5024 = vmatpush1.bf16.msra.mxu0 %v4985
    %5025 = vmatprep.subr.bf16.mxu0 0
    %5026 = vmatpush1.bf16.msra.mxu0 %v4986
    %5027 = vmatprep.subr.bf16.mxu0 0
    %5028 = vmatpush1.bf16.msra.mxu0 %v4987
    %5029 = vmatprep.subr.bf16.mxu0 0
    %5030 = vmatpush1.bf16.msra.mxu0 %v4988
    %5031 = vmatprep.subr.bf16.mxu0 0
    %5032 = vmatpush1.bf16.msra.mxu0 %v4989
    %5033 = vmatprep.subr.bf16.mxu0 0
    %5034 = vmatpush1.bf16.msra.mxu0 %v4990
    %5035 = vmatprep.subr.bf16.mxu0 0
    %5036 = vmatpush1.bf16.msra.mxu0 %v4991
    %5037 = vmatprep.subr.bf16.mxu0 0
    %5038 = vmatpush1.bf16.msra.mxu0 %v4992
    %5039 = vmatprep.subr.bf16.mxu0 0
    %5040 = vmatpush1.bf16.msra.mxu0 %v4993
    %5041 = vmatprep.subr.bf16.mxu0 0
    %5042 = vmatpush1.bf16.msra.mxu0 %v4994
    %5043 = vmatprep.mubr.bf16.mxu0 %v4875
    %5044 = vmatmul.mubr.bf16.gmra.mrb[0].mxu0 %v4874
    %v5045 = vpop.f32.mrb[0].mxu0
    %v5046 = vadd.f32 %v4913, %v5045
    %v5047 = vpop.f32.mrb[0].mxu0
    %v5048 = vpop.f32.mrb[0].mxu0
    %v5049 = vpop.f32.mrb[0].mxu0
    %5050 = vdwg.mxu0
    %v5051 = vsub.f32 0.0, %v5046
    %v5052 = vmul.f32 %v5051, 1.442695
    %v5053 = vpow.pop %v5052
    %v5054 = vadd.f32 %v5053, 1.0
    %v5055 = vrcp.pop %v5054
    %5056 = vst [vmem:[%s16] sm:$0xff] %v5055
    // Predicated region
    $region102: #{vortexviz_forward.1} parent=1 // pred_check
      _
    $region103: #{vortexviz_forward.1} parent=1 // pred_check_branch
      %5058 = sbr.rel (0) target = $region105
    $region104: #{vortexviz_forward.1} parent=1 // pred_region
      _
    $region105: #{vortexviz_forward.1} parent=1 // pred_fallthru
      _
    // Predicated region
    $region106: #{vortexviz_forward.1} parent=1 // pred_check
      _
    $region107: #{vortexviz_forward.1} parent=1 // pred_check_branch
      %5060 = sbr.rel (0) target = $region109
    $region108: #{vortexviz_forward.1} parent=1 // pred_region
      _
    $region109: #{vortexviz_forward.1} parent=1 // pred_fallthru
      _
    %5061 = vsyncpa [#allocation3], 1
    %5062 = vsyncpa [#allocation5], 1
    %5063 = vsyncpa [#allocation8], 1
    %5064 = vsyncpa [#allocation11], 1
    %5065 = vsyncpa [#allocation14], 1

</llo_original>
